<compile_context>
chip_gen: v7x
topology: tpu7x:2x2x1
jax: 0.10.0
libtpu: 0.0.40
codegen_flags: <defaults>
</compile_context>

<pallas_src>
import functools
import math

import jax
import jax.numpy as jnp
from jax import lax
from jax.experimental import pallas as pl
from jax.experimental.pallas import tpu as pltpu

LN_EPS = 1e-5
NEG_INF = -1e9


def _layernorm(x, g, b):
    # PyTorch nn.LayerNorm: biased variance, eps=1e-5.  x: (M, C); g, b broadcast.
    mu = jnp.mean(x, axis=-1, keepdims=True)
    var = jnp.mean((x - mu) * (x - mu), axis=-1, keepdims=True)
    return (x - mu) * lax.rsqrt(var + LN_EPS) * g + b


def _gelu_exact(x):
    # nn.GELU() default: exact erf-based GELU.
    return 0.5 * x * (1.0 + lax.erf(x * (1.0 / math.sqrt(2.0))))


def fused_transformer_kernel(
        x_ref,
        ln1_g_ref, ln1_b_ref, wf_ref, bf_ref, wp_ref, bp_ref,
        ln2_g_ref, ln2_b_ref, w1_ref, b1_ref, w2_ref, b2_ref,
        lnf_g_ref, lnf_b_ref,
        xout_ref, kout_ref, vout_ref,
        *, num_layers, num_heads, batch, seq_len):
    M, C = x_ref.shape                       # M = batch * seq_len (flattened tokens)
    T = seq_len
    H = num_heads
    hd = C // H
    scale = 1.0 / math.sqrt(hd)

    src = x_ref[...]                         # drop(sequences) with p=0 => identity
    x = src

    # Block-diagonal causal additive mask over the flattened token axis, built once
    # in-kernel (no HBM input / DMA).  Comparisons + selects only — no vector int
    # div/mod needed (the batch loop below is a static, tiny Python loop).
    rr = lax.broadcasted_iota(jnp.int32, (M, M), 0)
    cc = lax.broadcasted_iota(jnp.int32, (M, M), 1)
    same_batch = None
    for b in range(batch):
        lo, hi = b * T, (b + 1) * T
        blk = (rr >= lo) & (rr < hi) & (cc >= lo) & (cc < hi)
        same_batch = blk if same_batch is None else (same_batch | blk)
    mask = jnp.where(same_batch & (cc <= rr), 0.0, NEG_INF).astype(jnp.float32)

    # Contract head_dim of q against head_dim of k => q @ k^T without an explicit
    # (XLU) transpose op.
    qk_dims = (((1,), (1,)), ((), ()))

    for l in range(num_layers):              # static loop: all layers stay in VMEM
        # --- ln1 ---
        x_norm = _layernorm(x, ln1_g_ref[l], ln1_b_ref[l])

        # --- fused Q|K|V|Z|R projection: one (M,C) x (C,5C) matmul per layer ---
        fused = jnp.dot(x_norm, wf_ref[l], preferred_element_type=jnp.float32) + bf_ref[l]
        q = fused[:, 0 * C:1 * C] * scale    # fold 1/sqrt(hd) into q once
        k = fused[:, 1 * C:2 * C]
        v = fused[:, 2 * C:3 * C]
        z = jax.nn.sigmoid(fused[:, 3 * C:4 * C])
        r = jax.nn.sigmoid(fused[:, 4 * C:5 * C])

        # --- per-layer K/V outputs: one (M, C) store each, no reshape in-kernel ---
        kout_ref[l] = k.astype(kout_ref.dtype)
        vout_ref[l] = v.astype(vout_ref.dtype)

        # --- causal attention, batched over all tokens via the block-diagonal mask.
        #     Only the static head loop remains (H is tiny); each head is two 2-D
        #     MXU matmuls + a masked softmax. ---
        heads = []
        for h in range(H):
            qh = q[:, h * hd:(h + 1) * hd]
            kh = k[:, h * hd:(h + 1) * hd]
            vh = v[:, h * hd:(h + 1) * hd]
            att = lax.dot_general(qh, kh, qk_dims,
                                  preferred_element_type=jnp.float32) + mask
            att = att - jnp.max(att, axis=-1, keepdims=True)
            p = jnp.exp(att)
            p = p / jnp.sum(p, axis=-1, keepdims=True)   # exact divide (torch.softmax parity)
            heads.append(jnp.dot(p, vh, preferred_element_type=jnp.float32))
        y = jnp.concatenate(heads, axis=-1)              # 'b h t e -> b t (h e)'

        # --- output projection + GRU-style gating (z, r computed once from ln1(x)
        #     and shared by both sub-layers — exactly as in the PyTorch Block) ---
        x_attn = jnp.dot(y, wp_ref[l], preferred_element_type=jnp.float32) + bp_ref[l]
        h_tilde = jnp.tanh(r * x_attn)
        x1 = (1.0 - z) * x + z * h_tilde

        # --- ln2 + MLP ---
        x_mlp = _layernorm(x1, ln2_g_ref[l], ln2_b_ref[l])
        h1 = _gelu_exact(jnp.dot(x_mlp, w1_ref[l],
                                 preferred_element_type=jnp.float32) + b1_ref[l])
        mlp_out = jnp.dot(h1, w2_ref[l], preferred_element_type=jnp.float32) + b2_ref[l]
        x2 = (1.0 - z) * x1 + z * mlp_out

        # --- outer residual (x = x + src in RLTransformer.forward) ---
        x = x2 + src

    # --- final LayerNorm (ln_f), fused into the same kernel ---
    xout_ref[...] = _layernorm(x, lnf_g_ref[...], lnf_b_ref[...]).astype(xout_ref.dtype)


def _fuse_params(params):
    """Stack per-layer params along a leading L axis; fuse q/k/v/z/r into (C, 5C)."""
    blocks = params["blocks"]

    def stack(fn):
        return jnp.stack([fn(p) for p in blocks], axis=0)

    return {
        "ln1_g": stack(lambda p: p["ln1_g"]),
        "ln1_b": stack(lambda p: p["ln1_b"]),
        "wf": stack(lambda p: jnp.concatenate(
            [p["wq"], p["wk"], p["wv"], p["wz"], p["wr"]], axis=1)),
        "bf": stack(lambda p: jnp.concatenate(
            [p["bq"], p["bk"], p["bv"], p["bz"], p["br"]], axis=1)),
        "wp": stack(lambda p: p["wp"]),
        "bp": stack(lambda p: p["bp"]),
        "ln2_g": stack(lambda p: p["ln2_g"]),
        "ln2_b": stack(lambda p: p["ln2_b"]),
        "w1": stack(lambda p: p["w1"]),
        "b1": stack(lambda p: p["b1"]),
        "w2": stack(lambda p: p["w2"]),
        "b2": stack(lambda p: p["b2"]),
        "lnf_g": params["ln_f_g"],
        "lnf_b": params["ln_f_b"],
    }


def rl_transformer_forward(params, sequences, num_heads):
    B, T, C = sequences.shape
    L = len(params["blocks"])
    H = num_heads
    hd = C // H
    M = B * T
    fp = _fuse_params(params)

    # Flatten tokens host-side: one dense contiguous (M, C) input block, no in-kernel
    # reshapes needed anywhere.
    x_flat = sequences.reshape(M, C)

    param_order = ["ln1_g", "ln1_b", "wf", "bf", "wp", "bp",
                   "ln2_g", "ln2_b", "w1", "b1", "w2", "b2", "lnf_g", "lnf_b"]
    plist = [fp[name] for name in param_order]

    def full_spec(arr):
        nd = arr.ndim
        return pl.BlockSpec(arr.shape, lambda i, _nd=nd: (0,) * _nd)

    in_specs = ([pl.BlockSpec((M, C), lambda i: (0, 0))]
                + [full_spec(p) for p in plist])
    out_specs = (pl.BlockSpec((M, C), lambda i: (0, 0)),
                 pl.BlockSpec((L, M, C), lambda i: (0, 0, 0)),
                 pl.BlockSpec((L, M, C), lambda i: (0, 0, 0)))
    out_shapes = (jax.ShapeDtypeStruct((M, C), jnp.float32),
                  jax.ShapeDtypeStruct((L, M, C), jnp.float32),
                  jax.ShapeDtypeStruct((L, M, C), jnp.float32))

    # Scaling guidance (not needed at this toy size): stream weights over an
    # "arbitrary" layer grid axis, bf16 matmul operands with f32 accumulation, and an
    # explicit vmem_limit_bytes sized from the resident footprint.
    x_flat_out, k_flat, v_flat = pl.pallas_call(
        functools.partial(fused_transformer_kernel,
                          num_layers=L, num_heads=H, batch=B, seq_len=T),
        out_shape=out_shapes,
        grid=(1,),                                         # single step: no per-step overhead
        in_specs=in_specs,
        out_specs=out_specs,
        compiler_params=pltpu.CompilerParams(dimension_semantics=("arbitrary",)),
    )(x_flat, *plist)

    # Layout plumbing outside the kernel:
    #   (M, C) -> (B, T, C); (L, M, C) -> (L, B, H, T, hd)  (== torch.stack of 'b h t e')
    x_out = x_flat_out.reshape(B, T, C)
    k_out = k_flat.reshape(L, B, T, H, hd).transpose(0, 1, 3, 2, 4)
    v_out = v_flat.reshape(L, B, T, H, hd).transpose(0, 1, 3, 2, 4)
    return x_out, {"k": k_out, "v": v_out}


# --- pure-JAX (XLA) reference mirroring RLTransformer.forward, for correctness ---
def reference_forward(params, sequences, num_heads):
    B, T, C = sequences.shape
    hd = C // num_heads

    def ln(x, g, b):
        mu = jnp.mean(x, axis=-1, keepdims=True)
        var = jnp.mean((x - mu) ** 2, axis=-1, keepdims=True)
        return (x - mu) / jnp.sqrt(var + LN_EPS) * g + b

    tril = jnp.tril(jnp.ones((T, T), jnp.float32))
    x = sequences
    src = x
    ks, vs = [], []
    for p in params["blocks"]:
        xn = ln(x, p["ln1_g"], p["ln1_b"])
        q = (xn @ p["wq"] + p["bq"]).reshape(B, T, num_heads, hd).transpose(0, 2, 1, 3)
        k = (xn @ p["wk"] + p["bk"]).reshape(B, T, num_heads, hd).transpose(0, 2, 1, 3)
        v = (xn @ p["wv"] + p["bv"]).reshape(B, T, num_heads, hd).transpose(0, 2, 1, 3)
        ks.append(k)
        vs.append(v)
        att = jnp.einsum("bhqd,bhkd->bhqk", q, k) * (1.0 / math.sqrt(hd))
        att = jnp.where(tril[None, None] == 0, -jnp.inf, att)
        att = jax.nn.softmax(att, axis=-1)
        y = jnp.einsum("bhqk,bhkd->bhqd", att, v)
        y = y.transpose(0, 2, 1, 3).reshape(B, T, C)
        x_attn = y @ p["wp"] + p["bp"]
        z = jax.nn.sigmoid(xn @ p["wz"] + p["bz"])
        r = jax.nn.sigmoid(xn @ p["wr"] + p["br"])
        h_tilde = jnp.tanh(r * x_attn)
        x = (1.0 - z) * x + z * h_tilde
        xm = ln(x, p["ln2_g"], p["ln2_b"])
        mlp = jax.nn.gelu(xm @ p["w1"] + p["b1"], approximate=False) @ p["w2"] + p["b2"]
        x = (1.0 - z) * x + z * mlp
        x = x + src
    x = ln(x, params["ln_f_g"], params["ln_f_b"])
    return x, jnp.stack(ks), jnp.stack(vs)


# --- deterministic parameter init (mirrors _init_weights: xavier_uniform, zero bias,
#     LayerNorm weight=1 / bias=0). Linear weights stored as (in, out). ---
def _xavier_uniform(key, fan_in, fan_out):
    a = math.sqrt(6.0 / (fan_in + fan_out))
    return jax.random.uniform(key, (fan_in, fan_out), jnp.float32, -a, a)


def init_params(key, num_layers, embed_dim, num_heads):
    del num_heads  # head split is a view of embed_dim
    C = embed_dim
    blocks = []
    for l in range(num_layers):
        lk = jax.random.fold_in(key, l)
        ks = jax.random.split(lk, 8)
        blocks.append({
            "ln1_g": jnp.ones((1, C), jnp.float32),
            "ln1_b": jnp.zeros((1, C), jnp.float32),
            "wq": _xavier_uniform(ks[0], C, C), "bq": jnp.zeros((1, C), jnp.float32),
            "wk": _xavier_uniform(ks[1], C, C), "bk": jnp.zeros((1, C), jnp.float32),
            "wv": _xavier_uniform(ks[2], C, C), "bv": jnp.zeros((1, C), jnp.float32),
            "wp": _xavier_uniform(ks[3], C, C), "bp": jnp.zeros((1, C), jnp.float32),
            "wz": _xavier_uniform(ks[4], C, C), "bz": jnp.zeros((1, C), jnp.float32),
            "wr": _xavier_uniform(ks[5], C, C), "br": jnp.zeros((1, C), jnp.float32),
            "ln2_g": jnp.ones((1, C), jnp.float32),
            "ln2_b": jnp.zeros((1, C), jnp.float32),
            "w1": _xavier_uniform(ks[6], C, 4 * C), "b1": jnp.zeros((1, 4 * C), jnp.float32),
            "w2": _xavier_uniform(ks[7], 4 * C, C), "b2": jnp.zeros((1, C), jnp.float32),
        })
    return {
        "blocks": blocks,
        "ln_f_g": jnp.ones((1, C), jnp.float32),
        "ln_f_b": jnp.zeros((1, C), jnp.float32),
    }


if __name__ == "__main__":
    # config: max_seq_len=8, num_layers=2, num_heads=4, embed_dim=32,
    #         attention='causal', attention_impl='original', all dropout = 0.0
    B, T, C, NUM_HEADS, NUM_LAYERS = 2, 8, 32, 4, 2

    key = jax.random.PRNGKey(0)
    params = init_params(key, NUM_LAYERS, C, NUM_HEADS)
    sequences = jax.random.normal(jax.random.fold_in(key, 12345), (B, T, C), jnp.float32)

    out, kvs = rl_transformer_forward(params, sequences, NUM_HEADS)
    jax.block_until_ready((out, kvs))

    # Correctness against a pure-JAX reference of the PyTorch module.
    ref_out, ref_k, ref_v = reference_forward(params, sequences, NUM_HEADS)
    jax.block_until_ready((ref_out, ref_k, ref_v))

    assert out.shape == (B, T, C)
    assert kvs["k"].shape == (NUM_LAYERS, B, NUM_HEADS, T, C // NUM_HEADS)
    assert kvs["v"].shape == (NUM_LAYERS, B, NUM_HEADS, T, C // NUM_HEADS)
    assert bool(jnp.all(jnp.isfinite(out)))
    assert bool(jnp.allclose(out, ref_out, atol=1e-3, rtol=1e-3))
    assert bool(jnp.allclose(kvs["k"], ref_k, atol=1e-3, rtol=1e-3))
    assert bool(jnp.allclose(kvs["v"], ref_v, atol=1e-3, rtol=1e-3))
    print("KERNEL_OK")
</pallas_src>

<mosaic_0001>
module attributes {stable_mosaic.version = 11 : i64} {
  func.func @fused_transformer_kernel(%arg0: i32, %arg1: memref<16x32xf32, #tpu.memory_space<vmem>>, %arg2: memref<2x1x32xf32, #tpu.memory_space<vmem>>, %arg3: memref<2x1x32xf32, #tpu.memory_space<vmem>>, %arg4: memref<2x32x160xf32, #tpu.memory_space<vmem>>, %arg5: memref<2x1x160xf32, #tpu.memory_space<vmem>>, %arg6: memref<2x32x32xf32, #tpu.memory_space<vmem>>, %arg7: memref<2x1x32xf32, #tpu.memory_space<vmem>>, %arg8: memref<2x1x32xf32, #tpu.memory_space<vmem>>, %arg9: memref<2x1x32xf32, #tpu.memory_space<vmem>>, %arg10: memref<2x32x128xf32, #tpu.memory_space<vmem>>, %arg11: memref<2x1x128xf32, #tpu.memory_space<vmem>>, %arg12: memref<2x128x32xf32, #tpu.memory_space<vmem>>, %arg13: memref<2x1x32xf32, #tpu.memory_space<vmem>>, %arg14: memref<1x32xf32, #tpu.memory_space<vmem>>, %arg15: memref<1x32xf32, #tpu.memory_space<vmem>>, %arg16: memref<16x32xf32, #tpu.memory_space<vmem>>, %arg17: memref<2x16x32xf32, #tpu.memory_space<vmem>>, %arg18: memref<2x16x32xf32, #tpu.memory_space<vmem>>) attributes {dimension_semantics = [#tpu.dimension_semantics<arbitrary>], iteration_bounds = array<i64: 1>, scalar_prefetch = 0 : i64, scratch_operands = 0 : i64, tpu.core_type = #tpu.core_type<tc>, window_params = [{pipeline_mode = #tpu.pipeline_mode<synchronous>, transform_indices = @transform_0, window_bounds = array<i64: 16, 32>}, {pipeline_mode = #tpu.pipeline_mode<synchronous>, transform_indices = @transform_1, window_bounds = array<i64: 2, 1, 32>}, {pipeline_mode = #tpu.pipeline_mode<synchronous>, transform_indices = @transform_2, window_bounds = array<i64: 2, 1, 32>}, {pipeline_mode = #tpu.pipeline_mode<synchronous>, transform_indices = @transform_3, window_bounds = array<i64: 2, 32, 160>}, {pipeline_mode = #tpu.pipeline_mode<synchronous>, transform_indices = @transform_4, window_bounds = array<i64: 2, 1, 160>}, {pipeline_mode = #tpu.pipeline_mode<synchronous>, transform_indices = @transform_5, window_bounds = array<i64: 2, 32, 32>}, {pipeline_mode = #tpu.pipeline_mode<synchronous>, transform_indices = @transform_6, window_bounds = array<i64: 2, 1, 32>}, {pipeline_mode = #tpu.pipeline_mode<synchronous>, transform_indices = @transform_7, window_bounds = array<i64: 2, 1, 32>}, {pipeline_mode = #tpu.pipeline_mode<synchronous>, transform_indices = @transform_8, window_bounds = array<i64: 2, 1, 32>}, {pipeline_mode = #tpu.pipeline_mode<synchronous>, transform_indices = @transform_9, window_bounds = array<i64: 2, 32, 128>}, {pipeline_mode = #tpu.pipeline_mode<synchronous>, transform_indices = @transform_10, window_bounds = array<i64: 2, 1, 128>}, {pipeline_mode = #tpu.pipeline_mode<synchronous>, transform_indices = @transform_11, window_bounds = array<i64: 2, 128, 32>}, {pipeline_mode = #tpu.pipeline_mode<synchronous>, transform_indices = @transform_12, window_bounds = array<i64: 2, 1, 32>}, {pipeline_mode = #tpu.pipeline_mode<synchronous>, transform_indices = @transform_13, window_bounds = array<i64: 1, 32>}, {pipeline_mode = #tpu.pipeline_mode<synchronous>, transform_indices = @transform_14, window_bounds = array<i64: 1, 32>}, {pipeline_mode = #tpu.pipeline_mode<synchronous>, transform_indices = @transform_15, window_bounds = array<i64: 16, 32>}, {pipeline_mode = #tpu.pipeline_mode<synchronous>, transform_indices = @transform_16, window_bounds = array<i64: 2, 16, 32>}, {pipeline_mode = #tpu.pipeline_mode<synchronous>, transform_indices = @transform_17, window_bounds = array<i64: 2, 16, 32>}]} {
    %c0 = arith.constant 0 : index
    %c0_0 = arith.constant 0 : index
    %0 = vector.load %arg1[%c0, %c0_0] : memref<16x32xf32, #tpu.memory_space<vmem>>, vector<16x32xf32>
    %1 = tpu.iota {dimensions = array<i32: 0>} : vector<16x16xi32>
    %2 = tpu.iota {dimensions = array<i32: 1>} : vector<16x16xi32>
    %c0_i32 = arith.constant 0 : i32
    %3 = vector.broadcast %c0_i32 : i32 to vector<16x16xi32>
    %4 = arith.cmpi sge, %1, %3 : vector<16x16xi32>
    %c8_i32 = arith.constant 8 : i32
    %5 = vector.broadcast %c8_i32 : i32 to vector<16x16xi32>
    %6 = arith.cmpi slt, %1, %5 : vector<16x16xi32>
    %7 = arith.andi %4, %6 : vector<16x16xi1>
    %c0_i32_1 = arith.constant 0 : i32
    %8 = vector.broadcast %c0_i32_1 : i32 to vector<16x16xi32>
    %9 = arith.cmpi sge, %2, %8 : vector<16x16xi32>
    %10 = arith.andi %7, %9 : vector<16x16xi1>
    %c8_i32_2 = arith.constant 8 : i32
    %11 = vector.broadcast %c8_i32_2 : i32 to vector<16x16xi32>
    %12 = arith.cmpi slt, %2, %11 : vector<16x16xi32>
    %13 = arith.andi %10, %12 : vector<16x16xi1>
    %c8_i32_3 = arith.constant 8 : i32
    %14 = vector.broadcast %c8_i32_3 : i32 to vector<16x16xi32>
    %15 = arith.cmpi sge, %1, %14 : vector<16x16xi32>
    %c16_i32 = arith.constant 16 : i32
    %16 = vector.broadcast %c16_i32 : i32 to vector<16x16xi32>
    %17 = arith.cmpi slt, %1, %16 : vector<16x16xi32>
    %18 = arith.andi %15, %17 : vector<16x16xi1>
    %c8_i32_4 = arith.constant 8 : i32
    %19 = vector.broadcast %c8_i32_4 : i32 to vector<16x16xi32>
    %20 = arith.cmpi sge, %2, %19 : vector<16x16xi32>
    %21 = arith.andi %18, %20 : vector<16x16xi1>
    %c16_i32_5 = arith.constant 16 : i32
    %22 = vector.broadcast %c16_i32_5 : i32 to vector<16x16xi32>
    %23 = arith.cmpi slt, %2, %22 : vector<16x16xi32>
    %24 = arith.andi %21, %23 : vector<16x16xi1>
    %25 = arith.ori %13, %24 : vector<16x16xi1>
    %26 = arith.cmpi sle, %2, %1 : vector<16x16xi32>
    %27 = arith.andi %25, %26 : vector<16x16xi1>
    %cst = arith.constant 0.000000e+00 : f32
    %cst_6 = arith.constant -1.000000e+09 : f32
    %28 = vector.broadcast %cst : f32 to vector<16x16xf32>
    %29 = vector.broadcast %cst_6 : f32 to vector<16x16xf32>
    %30 = arith.select %27, %28, %29 : vector<16x16xi1>, vector<16x16xf32>
    %c0_7 = arith.constant 0 : index
    %c0_8 = arith.constant 0 : index
    %c0_9 = arith.constant 0 : index
    %31 = vector.load %arg2[%c0_7, %c0_8, %c0_9] : memref<2x1x32xf32, #tpu.memory_space<vmem>>, vector<1x1x32xf32>
    %32 = vector.shape_cast %31 : vector<1x1x32xf32> to vector<1x32xf32>
    %c0_10 = arith.constant 0 : index
    %c0_11 = arith.constant 0 : index
    %c0_12 = arith.constant 0 : index
    %33 = vector.load %arg3[%c0_10, %c0_11, %c0_12] : memref<2x1x32xf32, #tpu.memory_space<vmem>>, vector<1x1x32xf32>
    %34 = vector.shape_cast %33 : vector<1x1x32xf32> to vector<1x32xf32>
    %cst_13 = arith.constant dense<0.000000e+00> : vector<16xf32>
    %35 = vector.multi_reduction <add>, %0, %cst_13 [1] : vector<16x32xf32> to vector<16xf32>
    %36 = vector.shape_cast %35 : vector<16xf32> to vector<16x1xf32>
    %cst_14 = arith.constant 3.200000e+01 : f32
    %37 = vector.broadcast %cst_14 : f32 to vector<16x1xf32>
    %38 = arith.divf %36, %37 : vector<16x1xf32>
    %39 = vector.broadcast %38 : vector<16x1xf32> to vector<16x32xf32>
    %40 = arith.subf %0, %39 : vector<16x32xf32>
    %41 = vector.broadcast %38 : vector<16x1xf32> to vector<16x32xf32>
    %42 = arith.subf %0, %41 : vector<16x32xf32>
    %43 = arith.mulf %40, %42 : vector<16x32xf32>
    %cst_15 = arith.constant dense<0.000000e+00> : vector<16xf32>
    %44 = vector.multi_reduction <add>, %43, %cst_15 [1] : vector<16x32xf32> to vector<16xf32>
    %45 = vector.shape_cast %44 : vector<16xf32> to vector<16x1xf32>
    %cst_16 = arith.constant 3.200000e+01 : f32
    %46 = vector.broadcast %cst_16 : f32 to vector<16x1xf32>
    %47 = arith.divf %45, %46 : vector<16x1xf32>
    %48 = vector.broadcast %38 : vector<16x1xf32> to vector<16x32xf32>
    %49 = arith.subf %0, %48 : vector<16x32xf32>
    %cst_17 = arith.constant 9.99999974E-6 : f32
    %50 = vector.broadcast %cst_17 : f32 to vector<16x1xf32>
    %51 = arith.addf %47, %50 : vector<16x1xf32>
    %52 = math.rsqrt %51 : vector<16x1xf32>
    %53 = vector.broadcast %52 : vector<16x1xf32> to vector<16x32xf32>
    %54 = arith.mulf %49, %53 : vector<16x32xf32>
    %55 = vector.broadcast %32 : vector<1x32xf32> to vector<16x32xf32>
    %56 = arith.mulf %54, %55 : vector<16x32xf32>
    %57 = vector.broadcast %34 : vector<1x32xf32> to vector<16x32xf32>
    %58 = arith.addf %56, %57 : vector<16x32xf32>
    %c0_18 = arith.constant 0 : index
    %c0_19 = arith.constant 0 : index
    %c0_20 = arith.constant 0 : index
    %59 = vector.load %arg4[%c0_18, %c0_19, %c0_20] : memref<2x32x160xf32, #tpu.memory_space<vmem>>, vector<1x32x160xf32>
    %60 = vector.shape_cast %59 : vector<1x32x160xf32> to vector<32x160xf32>
    %cst_21 = arith.constant dense<0.000000e+00> : vector<16x160xf32>
    %61 = tpu.matmul %58, %60, %cst_21 {dimension_numbers = #tpu.dot_dimension_numbers<[1], [0], [0], [1], [0, 0, 1, 1], [], []>} : vector<16x32xf32>, vector<32x160xf32>, vector<16x160xf32> -> vector<16x160xf32>
    %c0_22 = arith.constant 0 : index
    %c0_23 = arith.constant 0 : index
    %c0_24 = arith.constant 0 : index
    %62 = vector.load %arg5[%c0_22, %c0_23, %c0_24] : memref<2x1x160xf32, #tpu.memory_space<vmem>>, vector<1x1x160xf32>
    %63 = vector.shape_cast %62 : vector<1x1x160xf32> to vector<1x160xf32>
    %64 = vector.broadcast %63 : vector<1x160xf32> to vector<16x160xf32>
    %65 = arith.addf %61, %64 : vector<16x160xf32>
    %66 = vector.extract_strided_slice %65 {offsets = [0, 0], sizes = [16, 32], strides = [1, 1]} : vector<16x160xf32> to vector<16x32xf32>
    %cst_25 = arith.constant 0.353553385 : f32
    %67 = vector.broadcast %cst_25 : f32 to vector<16x32xf32>
    %68 = arith.mulf %66, %67 : vector<16x32xf32>
    %69 = vector.extract_strided_slice %65 {offsets = [0, 32], sizes = [16, 32], strides = [1, 1]} : vector<16x160xf32> to vector<16x32xf32>
    %70 = vector.extract_strided_slice %65 {offsets = [0, 64], sizes = [16, 32], strides = [1, 1]} : vector<16x160xf32> to vector<16x32xf32>
    %71 = vector.extract_strided_slice %65 {offsets = [0, 96], sizes = [16, 32], strides = [1, 1]} : vector<16x160xf32> to vector<16x32xf32>
    %72 = arith.negf %71 : vector<16x32xf32>
    %73 = math.exp %72 : vector<16x32xf32>
    %cst_26 = arith.constant 1.000000e+00 : f32
    %74 = vector.broadcast %cst_26 : f32 to vector<16x32xf32>
    %75 = arith.addf %74, %73 : vector<16x32xf32>
    %76 = arith.divf %74, %75 : vector<16x32xf32>
    %77 = vector.extract_strided_slice %65 {offsets = [0, 128], sizes = [16, 32], strides = [1, 1]} : vector<16x160xf32> to vector<16x32xf32>
    %78 = arith.negf %77 : vector<16x32xf32>
    %79 = math.exp %78 : vector<16x32xf32>
    %cst_27 = arith.constant 1.000000e+00 : f32
    %80 = vector.broadcast %cst_27 : f32 to vector<16x32xf32>
    %81 = arith.addf %80, %79 : vector<16x32xf32>
    %82 = arith.divf %80, %81 : vector<16x32xf32>
    %c0_28 = arith.constant 0 : index
    %c0_29 = arith.constant 0 : index
    %c0_30 = arith.constant 0 : index
    %83 = vector.load %arg17[%c0_28, %c0_29, %c0_30] : memref<2x16x32xf32, #tpu.memory_space<vmem>>, vector<1x16x32xf32>
    %84 = vector.shape_cast %83 : vector<1x16x32xf32> to vector<16x32xf32>
    %85 = vector.shape_cast %69 : vector<16x32xf32> to vector<1x16x32xf32>
    tpu.vector_store %arg17[%c0_28, %c0_29, %c0_30], %85 {strides = array<i32>} : memref<2x16x32xf32, #tpu.memory_space<vmem>>, vector<1x16x32xf32>,
    %c0_31 = arith.constant 0 : index
    %c0_32 = arith.constant 0 : index
    %c0_33 = arith.constant 0 : index
    %86 = vector.load %arg18[%c0_31, %c0_32, %c0_33] : memref<2x16x32xf32, #tpu.memory_space<vmem>>, vector<1x16x32xf32>
    %87 = vector.shape_cast %86 : vector<1x16x32xf32> to vector<16x32xf32>
    %88 = vector.shape_cast %70 : vector<16x32xf32> to vector<1x16x32xf32>
    tpu.vector_store %arg18[%c0_31, %c0_32, %c0_33], %88 {strides = array<i32>} : memref<2x16x32xf32, #tpu.memory_space<vmem>>, vector<1x16x32xf32>,
    %89 = vector.extract_strided_slice %68 {offsets = [0, 0], sizes = [16, 8], strides = [1, 1]} : vector<16x32xf32> to vector<16x8xf32>
    %90 = vector.extract_strided_slice %69 {offsets = [0, 0], sizes = [16, 8], strides = [1, 1]} : vector<16x32xf32> to vector<16x8xf32>
    %91 = vector.extract_strided_slice %70 {offsets = [0, 0], sizes = [16, 8], strides = [1, 1]} : vector<16x32xf32> to vector<16x8xf32>
    %cst_34 = arith.constant dense<0.000000e+00> : vector<16x16xf32>
    %92 = tpu.matmul %89, %90, %cst_34 {dimension_numbers = #tpu.dot_dimension_numbers<[1], [1], [0], [0], [0, 0, 1, 0], [], []>} : vector<16x8xf32>, vector<16x8xf32>, vector<16x16xf32> -> vector<16x16xf32>
    %93 = arith.addf %92, %30 : vector<16x16xf32>
    %cst_35 = arith.constant dense<0xFF800000> : vector<16xf32>
    %94 = vector.multi_reduction <maximumf>, %93, %cst_35 [1] : vector<16x16xf32> to vector<16xf32>
    %95 = vector.shape_cast %94 : vector<16xf32> to vector<16x1xf32>
    %96 = vector.broadcast %95 : vector<16x1xf32> to vector<16x16xf32>
    %97 = arith.subf %93, %96 : vector<16x16xf32>
    %98 = math.exp %97 : vector<16x16xf32>
    %cst_36 = arith.constant dense<0.000000e+00> : vector<16xf32>
    %99 = vector.multi_reduction <add>, %98, %cst_36 [1] : vector<16x16xf32> to vector<16xf32>
    %100 = vector.shape_cast %99 : vector<16xf32> to vector<16x1xf32>
    %101 = vector.broadcast %100 : vector<16x1xf32> to vector<16x16xf32>
    %102 = arith.divf %98, %101 : vector<16x16xf32>
    %cst_37 = arith.constant dense<0.000000e+00> : vector<16x8xf32>
    %103 = tpu.matmul %102, %91, %cst_37 {dimension_numbers = #tpu.dot_dimension_numbers<[1], [0], [0], [1], [0, 0, 1, 1], [], []>} : vector<16x16xf32>, vector<16x8xf32>, vector<16x8xf32> -> vector<16x8xf32>
    %104 = vector.extract_strided_slice %68 {offsets = [0, 8], sizes = [16, 8], strides = [1, 1]} : vector<16x32xf32> to vector<16x8xf32>
    %105 = vector.extract_strided_slice %69 {offsets = [0, 8], sizes = [16, 8], strides = [1, 1]} : vector<16x32xf32> to vector<16x8xf32>
    %106 = vector.extract_strided_slice %70 {offsets = [0, 8], sizes = [16, 8], strides = [1, 1]} : vector<16x32xf32> to vector<16x8xf32>
    %cst_38 = arith.constant dense<0.000000e+00> : vector<16x16xf32>
    %107 = tpu.matmul %104, %105, %cst_38 {dimension_numbers = #tpu.dot_dimension_numbers<[1], [1], [0], [0], [0, 0, 1, 0], [], []>} : vector<16x8xf32>, vector<16x8xf32>, vector<16x16xf32> -> vector<16x16xf32>
    %108 = arith.addf %107, %30 : vector<16x16xf32>
    %cst_39 = arith.constant dense<0xFF800000> : vector<16xf32>
    %109 = vector.multi_reduction <maximumf>, %108, %cst_39 [1] : vector<16x16xf32> to vector<16xf32>
    %110 = vector.shape_cast %109 : vector<16xf32> to vector<16x1xf32>
    %111 = vector.broadcast %110 : vector<16x1xf32> to vector<16x16xf32>
    %112 = arith.subf %108, %111 : vector<16x16xf32>
    %113 = math.exp %112 : vector<16x16xf32>
    %cst_40 = arith.constant dense<0.000000e+00> : vector<16xf32>
    %114 = vector.multi_reduction <add>, %113, %cst_40 [1] : vector<16x16xf32> to vector<16xf32>
    %115 = vector.shape_cast %114 : vector<16xf32> to vector<16x1xf32>
    %116 = vector.broadcast %115 : vector<16x1xf32> to vector<16x16xf32>
    %117 = arith.divf %113, %116 : vector<16x16xf32>
    %cst_41 = arith.constant dense<0.000000e+00> : vector<16x8xf32>
    %118 = tpu.matmul %117, %106, %cst_41 {dimension_numbers = #tpu.dot_dimension_numbers<[1], [0], [0], [1], [0, 0, 1, 1], [], []>} : vector<16x16xf32>, vector<16x8xf32>, vector<16x8xf32> -> vector<16x8xf32>
    %119 = vector.extract_strided_slice %68 {offsets = [0, 16], sizes = [16, 8], strides = [1, 1]} : vector<16x32xf32> to vector<16x8xf32>
    %120 = vector.extract_strided_slice %69 {offsets = [0, 16], sizes = [16, 8], strides = [1, 1]} : vector<16x32xf32> to vector<16x8xf32>
    %121 = vector.extract_strided_slice %70 {offsets = [0, 16], sizes = [16, 8], strides = [1, 1]} : vector<16x32xf32> to vector<16x8xf32>
    %cst_42 = arith.constant dense<0.000000e+00> : vector<16x16xf32>
    %122 = tpu.matmul %119, %120, %cst_42 {dimension_numbers = #tpu.dot_dimension_numbers<[1], [1], [0], [0], [0, 0, 1, 0], [], []>} : vector<16x8xf32>, vector<16x8xf32>, vector<16x16xf32> -> vector<16x16xf32>
    %123 = arith.addf %122, %30 : vector<16x16xf32>
    %cst_43 = arith.constant dense<0xFF800000> : vector<16xf32>
    %124 = vector.multi_reduction <maximumf>, %123, %cst_43 [1] : vector<16x16xf32> to vector<16xf32>
    %125 = vector.shape_cast %124 : vector<16xf32> to vector<16x1xf32>
    %126 = vector.broadcast %125 : vector<16x1xf32> to vector<16x16xf32>
    %127 = arith.subf %123, %126 : vector<16x16xf32>
    %128 = math.exp %127 : vector<16x16xf32>
    %cst_44 = arith.constant dense<0.000000e+00> : vector<16xf32>
    %129 = vector.multi_reduction <add>, %128, %cst_44 [1] : vector<16x16xf32> to vector<16xf32>
    %130 = vector.shape_cast %129 : vector<16xf32> to vector<16x1xf32>
    %131 = vector.broadcast %130 : vector<16x1xf32> to vector<16x16xf32>
    %132 = arith.divf %128, %131 : vector<16x16xf32>
    %cst_45 = arith.constant dense<0.000000e+00> : vector<16x8xf32>
    %133 = tpu.matmul %132, %121, %cst_45 {dimension_numbers = #tpu.dot_dimension_numbers<[1], [0], [0], [1], [0, 0, 1, 1], [], []>} : vector<16x16xf32>, vector<16x8xf32>, vector<16x8xf32> -> vector<16x8xf32>
    %134 = vector.extract_strided_slice %68 {offsets = [0, 24], sizes = [16, 8], strides = [1, 1]} : vector<16x32xf32> to vector<16x8xf32>
    %135 = vector.extract_strided_slice %69 {offsets = [0, 24], sizes = [16, 8], strides = [1, 1]} : vector<16x32xf32> to vector<16x8xf32>
    %136 = vector.extract_strided_slice %70 {offsets = [0, 24], sizes = [16, 8], strides = [1, 1]} : vector<16x32xf32> to vector<16x8xf32>
    %cst_46 = arith.constant dense<0.000000e+00> : vector<16x16xf32>
    %137 = tpu.matmul %134, %135, %cst_46 {dimension_numbers = #tpu.dot_dimension_numbers<[1], [1], [0], [0], [0, 0, 1, 0], [], []>} : vector<16x8xf32>, vector<16x8xf32>, vector<16x16xf32> -> vector<16x16xf32>
    %138 = arith.addf %137, %30 : vector<16x16xf32>
    %cst_47 = arith.constant dense<0xFF800000> : vector<16xf32>
    %139 = vector.multi_reduction <maximumf>, %138, %cst_47 [1] : vector<16x16xf32> to vector<16xf32>
    %140 = vector.shape_cast %139 : vector<16xf32> to vector<16x1xf32>
    %141 = vector.broadcast %140 : vector<16x1xf32> to vector<16x16xf32>
    %142 = arith.subf %138, %141 : vector<16x16xf32>
    %143 = math.exp %142 : vector<16x16xf32>
    %cst_48 = arith.constant dense<0.000000e+00> : vector<16xf32>
    %144 = vector.multi_reduction <add>, %143, %cst_48 [1] : vector<16x16xf32> to vector<16xf32>
    %145 = vector.shape_cast %144 : vector<16xf32> to vector<16x1xf32>
    %146 = vector.broadcast %145 : vector<16x1xf32> to vector<16x16xf32>
    %147 = arith.divf %143, %146 : vector<16x16xf32>
    %cst_49 = arith.constant dense<0.000000e+00> : vector<16x8xf32>
    %148 = tpu.matmul %147, %136, %cst_49 {dimension_numbers = #tpu.dot_dimension_numbers<[1], [0], [0], [1], [0, 0, 1, 1], [], []>} : vector<16x16xf32>, vector<16x8xf32>, vector<16x8xf32> -> vector<16x8xf32>
    %149 = tpu.concatenate %103, %118, %133, %148 in 1 : vector<16x8xf32>, vector<16x8xf32>, vector<16x8xf32>, vector<16x8xf32> -> vector<16x32xf32>
    %c0_50 = arith.constant 0 : index
    %c0_51 = arith.constant 0 : index
    %c0_52 = arith.constant 0 : index
    %150 = vector.load %arg6[%c0_50, %c0_51, %c0_52] : memref<2x32x32xf32, #tpu.memory_space<vmem>>, vector<1x32x32xf32>
    %151 = vector.shape_cast %150 : vector<1x32x32xf32> to vector<32x32xf32>
    %cst_53 = arith.constant dense<0.000000e+00> : vector<16x32xf32>
    %152 = tpu.matmul %149, %151, %cst_53 {dimension_numbers = #tpu.dot_dimension_numbers<[1], [0], [0], [1], [0, 0, 1, 1], [], []>} : vector<16x32xf32>, vector<32x32xf32>, vector<16x32xf32> -> vector<16x32xf32>
    %c0_54 = arith.constant 0 : index
    %c0_55 = arith.constant 0 : index
    %c0_56 = arith.constant 0 : index
    %153 = vector.load %arg7[%c0_54, %c0_55, %c0_56] : memref<2x1x32xf32, #tpu.memory_space<vmem>>, vector<1x1x32xf32>
    %154 = vector.shape_cast %153 : vector<1x1x32xf32> to vector<1x32xf32>
    %155 = vector.broadcast %154 : vector<1x32xf32> to vector<16x32xf32>
    %156 = arith.addf %152, %155 : vector<16x32xf32>
    %157 = arith.mulf %82, %156 : vector<16x32xf32>
    %158 = math.tanh %157 : vector<16x32xf32>
    %cst_57 = arith.constant 1.000000e+00 : f32
    %159 = vector.broadcast %cst_57 : f32 to vector<16x32xf32>
    %160 = arith.subf %159, %76 : vector<16x32xf32>
    %161 = arith.mulf %160, %0 : vector<16x32xf32>
    %162 = arith.mulf %76, %158 : vector<16x32xf32>
    %163 = arith.addf %161, %162 : vector<16x32xf32>
    %c0_58 = arith.constant 0 : index
    %c0_59 = arith.constant 0 : index
    %c0_60 = arith.constant 0 : index
    %164 = vector.load %arg8[%c0_58, %c0_59, %c0_60] : memref<2x1x32xf32, #tpu.memory_space<vmem>>, vector<1x1x32xf32>
    %165 = vector.shape_cast %164 : vector<1x1x32xf32> to vector<1x32xf32>
    %c0_61 = arith.constant 0 : index
    %c0_62 = arith.constant 0 : index
    %c0_63 = arith.constant 0 : index
    %166 = vector.load %arg9[%c0_61, %c0_62, %c0_63] : memref<2x1x32xf32, #tpu.memory_space<vmem>>, vector<1x1x32xf32>
    %167 = vector.shape_cast %166 : vector<1x1x32xf32> to vector<1x32xf32>
    %cst_64 = arith.constant dense<0.000000e+00> : vector<16xf32>
    %168 = vector.multi_reduction <add>, %163, %cst_64 [1] : vector<16x32xf32> to vector<16xf32>
    %169 = vector.shape_cast %168 : vector<16xf32> to vector<16x1xf32>
    %cst_65 = arith.constant 3.200000e+01 : f32
    %170 = vector.broadcast %cst_65 : f32 to vector<16x1xf32>
    %171 = arith.divf %169, %170 : vector<16x1xf32>
    %172 = vector.broadcast %171 : vector<16x1xf32> to vector<16x32xf32>
    %173 = arith.subf %163, %172 : vector<16x32xf32>
    %174 = vector.broadcast %171 : vector<16x1xf32> to vector<16x32xf32>
    %175 = arith.subf %163, %174 : vector<16x32xf32>
    %176 = arith.mulf %173, %175 : vector<16x32xf32>
    %cst_66 = arith.constant dense<0.000000e+00> : vector<16xf32>
    %177 = vector.multi_reduction <add>, %176, %cst_66 [1] : vector<16x32xf32> to vector<16xf32>
    %178 = vector.shape_cast %177 : vector<16xf32> to vector<16x1xf32>
    %cst_67 = arith.constant 3.200000e+01 : f32
    %179 = vector.broadcast %cst_67 : f32 to vector<16x1xf32>
    %180 = arith.divf %178, %179 : vector<16x1xf32>
    %181 = vector.broadcast %171 : vector<16x1xf32> to vector<16x32xf32>
    %182 = arith.subf %163, %181 : vector<16x32xf32>
    %cst_68 = arith.constant 9.99999974E-6 : f32
    %183 = vector.broadcast %cst_68 : f32 to vector<16x1xf32>
    %184 = arith.addf %180, %183 : vector<16x1xf32>
    %185 = math.rsqrt %184 : vector<16x1xf32>
    %186 = vector.broadcast %185 : vector<16x1xf32> to vector<16x32xf32>
    %187 = arith.mulf %182, %186 : vector<16x32xf32>
    %188 = vector.broadcast %165 : vector<1x32xf32> to vector<16x32xf32>
    %189 = arith.mulf %187, %188 : vector<16x32xf32>
    %190 = vector.broadcast %167 : vector<1x32xf32> to vector<16x32xf32>
    %191 = arith.addf %189, %190 : vector<16x32xf32>
    %c0_69 = arith.constant 0 : index
    %c0_70 = arith.constant 0 : index
    %c0_71 = arith.constant 0 : index
    %192 = vector.load %arg10[%c0_69, %c0_70, %c0_71] : memref<2x32x128xf32, #tpu.memory_space<vmem>>, vector<1x32x128xf32>
    %193 = vector.shape_cast %192 : vector<1x32x128xf32> to vector<32x128xf32>
    %cst_72 = arith.constant dense<0.000000e+00> : vector<16x128xf32>
    %194 = tpu.matmul %191, %193, %cst_72 {dimension_numbers = #tpu.dot_dimension_numbers<[1], [0], [0], [1], [0, 0, 1, 1], [], []>} : vector<16x32xf32>, vector<32x128xf32>, vector<16x128xf32> -> vector<16x128xf32>
    %c0_73 = arith.constant 0 : index
    %c0_74 = arith.constant 0 : index
    %c0_75 = arith.constant 0 : index
    %195 = vector.load %arg11[%c0_73, %c0_74, %c0_75] : memref<2x1x128xf32, #tpu.memory_space<vmem>>, vector<1x1x128xf32>
    %196 = vector.shape_cast %195 : vector<1x1x128xf32> to vector<1x128xf32>
    %197 = vector.broadcast %196 : vector<1x128xf32> to vector<16x128xf32>
    %198 = arith.addf %194, %197 : vector<16x128xf32>
    %cst_76 = arith.constant 5.000000e-01 : f32
    %199 = vector.broadcast %cst_76 : f32 to vector<16x128xf32>
    %200 = arith.mulf %199, %198 : vector<16x128xf32>
    %cst_77 = arith.constant 0.707106769 : f32
    %201 = vector.broadcast %cst_77 : f32 to vector<16x128xf32>
    %202 = arith.mulf %198, %201 : vector<16x128xf32>
    %203 = math.erf %202 : vector<16x128xf32>
    %cst_78 = arith.constant 1.000000e+00 : f32
    %204 = vector.broadcast %cst_78 : f32 to vector<16x128xf32>
    %205 = arith.addf %204, %203 : vector<16x128xf32>
    %206 = arith.mulf %200, %205 : vector<16x128xf32>
    %c0_79 = arith.constant 0 : index
    %c0_80 = arith.constant 0 : index
    %c0_81 = arith.constant 0 : index
    %207 = vector.load %arg12[%c0_79, %c0_80, %c0_81] : memref<2x128x32xf32, #tpu.memory_space<vmem>>, vector<1x128x32xf32>
    %208 = vector.shape_cast %207 : vector<1x128x32xf32> to vector<128x32xf32>
    %cst_82 = arith.constant dense<0.000000e+00> : vector<16x32xf32>
    %209 = tpu.matmul %206, %208, %cst_82 {dimension_numbers = #tpu.dot_dimension_numbers<[1], [0], [0], [1], [0, 0, 1, 1], [], []>} : vector<16x128xf32>, vector<128x32xf32>, vector<16x32xf32> -> vector<16x32xf32>
    %c0_83 = arith.constant 0 : index
    %c0_84 = arith.constant 0 : index
    %c0_85 = arith.constant 0 : index
    %210 = vector.load %arg13[%c0_83, %c0_84, %c0_85] : memref<2x1x32xf32, #tpu.memory_space<vmem>>, vector<1x1x32xf32>
    %211 = vector.shape_cast %210 : vector<1x1x32xf32> to vector<1x32xf32>
    %212 = vector.broadcast %211 : vector<1x32xf32> to vector<16x32xf32>
    %213 = arith.addf %209, %212 : vector<16x32xf32>
    %cst_86 = arith.constant 1.000000e+00 : f32
    %214 = vector.broadcast %cst_86 : f32 to vector<16x32xf32>
    %215 = arith.subf %214, %76 : vector<16x32xf32>
    %216 = arith.mulf %215, %163 : vector<16x32xf32>
    %217 = arith.mulf %76, %213 : vector<16x32xf32>
    %218 = arith.addf %216, %217 : vector<16x32xf32>
    %219 = arith.addf %218, %0 : vector<16x32xf32>
    %c1 = arith.constant 1 : index
    %c0_87 = arith.constant 0 : index
    %c0_88 = arith.constant 0 : index
    %220 = vector.load %arg2[%c1, %c0_87, %c0_88] : memref<2x1x32xf32, #tpu.memory_space<vmem>>, vector<1x1x32xf32>
    %221 = vector.shape_cast %220 : vector<1x1x32xf32> to vector<1x32xf32>
    %c1_89 = arith.constant 1 : index
    %c0_90 = arith.constant 0 : index
    %c0_91 = arith.constant 0 : index
    %222 = vector.load %arg3[%c1_89, %c0_90, %c0_91] : memref<2x1x32xf32, #tpu.memory_space<vmem>>, vector<1x1x32xf32>
    %223 = vector.shape_cast %222 : vector<1x1x32xf32> to vector<1x32xf32>
    %cst_92 = arith.constant dense<0.000000e+00> : vector<16xf32>
    %224 = vector.multi_reduction <add>, %219, %cst_92 [1] : vector<16x32xf32> to vector<16xf32>
    %225 = vector.shape_cast %224 : vector<16xf32> to vector<16x1xf32>
    %cst_93 = arith.constant 3.200000e+01 : f32
    %226 = vector.broadcast %cst_93 : f32 to vector<16x1xf32>
    %227 = arith.divf %225, %226 : vector<16x1xf32>
    %228 = vector.broadcast %227 : vector<16x1xf32> to vector<16x32xf32>
    %229 = arith.subf %219, %228 : vector<16x32xf32>
    %230 = vector.broadcast %227 : vector<16x1xf32> to vector<16x32xf32>
    %231 = arith.subf %219, %230 : vector<16x32xf32>
    %232 = arith.mulf %229, %231 : vector<16x32xf32>
    %cst_94 = arith.constant dense<0.000000e+00> : vector<16xf32>
    %233 = vector.multi_reduction <add>, %232, %cst_94 [1] : vector<16x32xf32> to vector<16xf32>
    %234 = vector.shape_cast %233 : vector<16xf32> to vector<16x1xf32>
    %cst_95 = arith.constant 3.200000e+01 : f32
    %235 = vector.broadcast %cst_95 : f32 to vector<16x1xf32>
    %236 = arith.divf %234, %235 : vector<16x1xf32>
    %237 = vector.broadcast %227 : vector<16x1xf32> to vector<16x32xf32>
    %238 = arith.subf %219, %237 : vector<16x32xf32>
    %cst_96 = arith.constant 9.99999974E-6 : f32
    %239 = vector.broadcast %cst_96 : f32 to vector<16x1xf32>
    %240 = arith.addf %236, %239 : vector<16x1xf32>
    %241 = math.rsqrt %240 : vector<16x1xf32>
    %242 = vector.broadcast %241 : vector<16x1xf32> to vector<16x32xf32>
    %243 = arith.mulf %238, %242 : vector<16x32xf32>
    %244 = vector.broadcast %221 : vector<1x32xf32> to vector<16x32xf32>
    %245 = arith.mulf %243, %244 : vector<16x32xf32>
    %246 = vector.broadcast %223 : vector<1x32xf32> to vector<16x32xf32>
    %247 = arith.addf %245, %246 : vector<16x32xf32>
    %c1_97 = arith.constant 1 : index
    %c0_98 = arith.constant 0 : index
    %c0_99 = arith.constant 0 : index
    %248 = vector.load %arg4[%c1_97, %c0_98, %c0_99] : memref<2x32x160xf32, #tpu.memory_space<vmem>>, vector<1x32x160xf32>
    %249 = vector.shape_cast %248 : vector<1x32x160xf32> to vector<32x160xf32>
    %cst_100 = arith.constant dense<0.000000e+00> : vector<16x160xf32>
    %250 = tpu.matmul %247, %249, %cst_100 {dimension_numbers = #tpu.dot_dimension_numbers<[1], [0], [0], [1], [0, 0, 1, 1], [], []>} : vector<16x32xf32>, vector<32x160xf32>, vector<16x160xf32> -> vector<16x160xf32>
    %c1_101 = arith.constant 1 : index
    %c0_102 = arith.constant 0 : index
    %c0_103 = arith.constant 0 : index
    %251 = vector.load %arg5[%c1_101, %c0_102, %c0_103] : memref<2x1x160xf32, #tpu.memory_space<vmem>>, vector<1x1x160xf32>
    %252 = vector.shape_cast %251 : vector<1x1x160xf32> to vector<1x160xf32>
    %253 = vector.broadcast %252 : vector<1x160xf32> to vector<16x160xf32>
    %254 = arith.addf %250, %253 : vector<16x160xf32>
    %255 = vector.extract_strided_slice %254 {offsets = [0, 0], sizes = [16, 32], strides = [1, 1]} : vector<16x160xf32> to vector<16x32xf32>
    %cst_104 = arith.constant 0.353553385 : f32
    %256 = vector.broadcast %cst_104 : f32 to vector<16x32xf32>
    %257 = arith.mulf %255, %256 : vector<16x32xf32>
    %258 = vector.extract_strided_slice %254 {offsets = [0, 32], sizes = [16, 32], strides = [1, 1]} : vector<16x160xf32> to vector<16x32xf32>
    %259 = vector.extract_strided_slice %254 {offsets = [0, 64], sizes = [16, 32], strides = [1, 1]} : vector<16x160xf32> to vector<16x32xf32>
    %260 = vector.extract_strided_slice %254 {offsets = [0, 96], sizes = [16, 32], strides = [1, 1]} : vector<16x160xf32> to vector<16x32xf32>
    %261 = arith.negf %260 : vector<16x32xf32>
    %262 = math.exp %261 : vector<16x32xf32>
    %cst_105 = arith.constant 1.000000e+00 : f32
    %263 = vector.broadcast %cst_105 : f32 to vector<16x32xf32>
    %264 = arith.addf %263, %262 : vector<16x32xf32>
    %265 = arith.divf %263, %264 : vector<16x32xf32>
    %266 = vector.extract_strided_slice %254 {offsets = [0, 128], sizes = [16, 32], strides = [1, 1]} : vector<16x160xf32> to vector<16x32xf32>
    %267 = arith.negf %266 : vector<16x32xf32>
    %268 = math.exp %267 : vector<16x32xf32>
    %cst_106 = arith.constant 1.000000e+00 : f32
    %269 = vector.broadcast %cst_106 : f32 to vector<16x32xf32>
    %270 = arith.addf %269, %268 : vector<16x32xf32>
    %271 = arith.divf %269, %270 : vector<16x32xf32>
    %c1_107 = arith.constant 1 : index
    %c0_108 = arith.constant 0 : index
    %c0_109 = arith.constant 0 : index
    %272 = vector.load %arg17[%c1_107, %c0_108, %c0_109] : memref<2x16x32xf32, #tpu.memory_space<vmem>>, vector<1x16x32xf32>
    %273 = vector.shape_cast %272 : vector<1x16x32xf32> to vector<16x32xf32>
    %274 = vector.shape_cast %258 : vector<16x32xf32> to vector<1x16x32xf32>
    tpu.vector_store %arg17[%c1_107, %c0_108, %c0_109], %274 {strides = array<i32>} : memref<2x16x32xf32, #tpu.memory_space<vmem>>, vector<1x16x32xf32>,
    %c1_110 = arith.constant 1 : index
    %c0_111 = arith.constant 0 : index
    %c0_112 = arith.constant 0 : index
    %275 = vector.load %arg18[%c1_110, %c0_111, %c0_112] : memref<2x16x32xf32, #tpu.memory_space<vmem>>, vector<1x16x32xf32>
    %276 = vector.shape_cast %275 : vector<1x16x32xf32> to vector<16x32xf32>
    %277 = vector.shape_cast %259 : vector<16x32xf32> to vector<1x16x32xf32>
    tpu.vector_store %arg18[%c1_110, %c0_111, %c0_112], %277 {strides = array<i32>} : memref<2x16x32xf32, #tpu.memory_space<vmem>>, vector<1x16x32xf32>,
    %278 = vector.extract_strided_slice %257 {offsets = [0, 0], sizes = [16, 8], strides = [1, 1]} : vector<16x32xf32> to vector<16x8xf32>
    %279 = vector.extract_strided_slice %258 {offsets = [0, 0], sizes = [16, 8], strides = [1, 1]} : vector<16x32xf32> to vector<16x8xf32>
    %280 = vector.extract_strided_slice %259 {offsets = [0, 0], sizes = [16, 8], strides = [1, 1]} : vector<16x32xf32> to vector<16x8xf32>
    %cst_113 = arith.constant dense<0.000000e+00> : vector<16x16xf32>
    %281 = tpu.matmul %278, %279, %cst_113 {dimension_numbers = #tpu.dot_dimension_numbers<[1], [1], [0], [0], [0, 0, 1, 0], [], []>} : vector<16x8xf32>, vector<16x8xf32>, vector<16x16xf32> -> vector<16x16xf32>
    %282 = arith.addf %281, %30 : vector<16x16xf32>
    %cst_114 = arith.constant dense<0xFF800000> : vector<16xf32>
    %283 = vector.multi_reduction <maximumf>, %282, %cst_114 [1] : vector<16x16xf32> to vector<16xf32>
    %284 = vector.shape_cast %283 : vector<16xf32> to vector<16x1xf32>
    %285 = vector.broadcast %284 : vector<16x1xf32> to vector<16x16xf32>
    %286 = arith.subf %282, %285 : vector<16x16xf32>
    %287 = math.exp %286 : vector<16x16xf32>
    %cst_115 = arith.constant dense<0.000000e+00> : vector<16xf32>
    %288 = vector.multi_reduction <add>, %287, %cst_115 [1] : vector<16x16xf32> to vector<16xf32>
    %289 = vector.shape_cast %288 : vector<16xf32> to vector<16x1xf32>
    %290 = vector.broadcast %289 : vector<16x1xf32> to vector<16x16xf32>
    %291 = arith.divf %287, %290 : vector<16x16xf32>
    %cst_116 = arith.constant dense<0.000000e+00> : vector<16x8xf32>
    %292 = tpu.matmul %291, %280, %cst_116 {dimension_numbers = #tpu.dot_dimension_numbers<[1], [0], [0], [1], [0, 0, 1, 1], [], []>} : vector<16x16xf32>, vector<16x8xf32>, vector<16x8xf32> -> vector<16x8xf32>
    %293 = vector.extract_strided_slice %257 {offsets = [0, 8], sizes = [16, 8], strides = [1, 1]} : vector<16x32xf32> to vector<16x8xf32>
    %294 = vector.extract_strided_slice %258 {offsets = [0, 8], sizes = [16, 8], strides = [1, 1]} : vector<16x32xf32> to vector<16x8xf32>
    %295 = vector.extract_strided_slice %259 {offsets = [0, 8], sizes = [16, 8], strides = [1, 1]} : vector<16x32xf32> to vector<16x8xf32>
    %cst_117 = arith.constant dense<0.000000e+00> : vector<16x16xf32>
    %296 = tpu.matmul %293, %294, %cst_117 {dimension_numbers = #tpu.dot_dimension_numbers<[1], [1], [0], [0], [0, 0, 1, 0], [], []>} : vector<16x8xf32>, vector<16x8xf32>, vector<16x16xf32> -> vector<16x16xf32>
    %297 = arith.addf %296, %30 : vector<16x16xf32>
    %cst_118 = arith.constant dense<0xFF800000> : vector<16xf32>
    %298 = vector.multi_reduction <maximumf>, %297, %cst_118 [1] : vector<16x16xf32> to vector<16xf32>
    %299 = vector.shape_cast %298 : vector<16xf32> to vector<16x1xf32>
    %300 = vector.broadcast %299 : vector<16x1xf32> to vector<16x16xf32>
    %301 = arith.subf %297, %300 : vector<16x16xf32>
    %302 = math.exp %301 : vector<16x16xf32>
    %cst_119 = arith.constant dense<0.000000e+00> : vector<16xf32>
    %303 = vector.multi_reduction <add>, %302, %cst_119 [1] : vector<16x16xf32> to vector<16xf32>
    %304 = vector.shape_cast %303 : vector<16xf32> to vector<16x1xf32>
    %305 = vector.broadcast %304 : vector<16x1xf32> to vector<16x16xf32>
    %306 = arith.divf %302, %305 : vector<16x16xf32>
    %cst_120 = arith.constant dense<0.000000e+00> : vector<16x8xf32>
    %307 = tpu.matmul %306, %295, %cst_120 {dimension_numbers = #tpu.dot_dimension_numbers<[1], [0], [0], [1], [0, 0, 1, 1], [], []>} : vector<16x16xf32>, vector<16x8xf32>, vector<16x8xf32> -> vector<16x8xf32>
    %308 = vector.extract_strided_slice %257 {offsets = [0, 16], sizes = [16, 8], strides = [1, 1]} : vector<16x32xf32> to vector<16x8xf32>
    %309 = vector.extract_strided_slice %258 {offsets = [0, 16], sizes = [16, 8], strides = [1, 1]} : vector<16x32xf32> to vector<16x8xf32>
    %310 = vector.extract_strided_slice %259 {offsets = [0, 16], sizes = [16, 8], strides = [1, 1]} : vector<16x32xf32> to vector<16x8xf32>
    %cst_121 = arith.constant dense<0.000000e+00> : vector<16x16xf32>
    %311 = tpu.matmul %308, %309, %cst_121 {dimension_numbers = #tpu.dot_dimension_numbers<[1], [1], [0], [0], [0, 0, 1, 0], [], []>} : vector<16x8xf32>, vector<16x8xf32>, vector<16x16xf32> -> vector<16x16xf32>
    %312 = arith.addf %311, %30 : vector<16x16xf32>
    %cst_122 = arith.constant dense<0xFF800000> : vector<16xf32>
    %313 = vector.multi_reduction <maximumf>, %312, %cst_122 [1] : vector<16x16xf32> to vector<16xf32>
    %314 = vector.shape_cast %313 : vector<16xf32> to vector<16x1xf32>
    %315 = vector.broadcast %314 : vector<16x1xf32> to vector<16x16xf32>
    %316 = arith.subf %312, %315 : vector<16x16xf32>
    %317 = math.exp %316 : vector<16x16xf32>
    %cst_123 = arith.constant dense<0.000000e+00> : vector<16xf32>
    %318 = vector.multi_reduction <add>, %317, %cst_123 [1] : vector<16x16xf32> to vector<16xf32>
    %319 = vector.shape_cast %318 : vector<16xf32> to vector<16x1xf32>
    %320 = vector.broadcast %319 : vector<16x1xf32> to vector<16x16xf32>
    %321 = arith.divf %317, %320 : vector<16x16xf32>
    %cst_124 = arith.constant dense<0.000000e+00> : vector<16x8xf32>
    %322 = tpu.matmul %321, %310, %cst_124 {dimension_numbers = #tpu.dot_dimension_numbers<[1], [0], [0], [1], [0, 0, 1, 1], [], []>} : vector<16x16xf32>, vector<16x8xf32>, vector<16x8xf32> -> vector<16x8xf32>
    %323 = vector.extract_strided_slice %257 {offsets = [0, 24], sizes = [16, 8], strides = [1, 1]} : vector<16x32xf32> to vector<16x8xf32>
    %324 = vector.extract_strided_slice %258 {offsets = [0, 24], sizes = [16, 8], strides = [1, 1]} : vector<16x32xf32> to vector<16x8xf32>
    %325 = vector.extract_strided_slice %259 {offsets = [0, 24], sizes = [16, 8], strides = [1, 1]} : vector<16x32xf32> to vector<16x8xf32>
    %cst_125 = arith.constant dense<0.000000e+00> : vector<16x16xf32>
    %326 = tpu.matmul %323, %324, %cst_125 {dimension_numbers = #tpu.dot_dimension_numbers<[1], [1], [0], [0], [0, 0, 1, 0], [], []>} : vector<16x8xf32>, vector<16x8xf32>, vector<16x16xf32> -> vector<16x16xf32>
    %327 = arith.addf %326, %30 : vector<16x16xf32>
    %cst_126 = arith.constant dense<0xFF800000> : vector<16xf32>
    %328 = vector.multi_reduction <maximumf>, %327, %cst_126 [1] : vector<16x16xf32> to vector<16xf32>
    %329 = vector.shape_cast %328 : vector<16xf32> to vector<16x1xf32>
    %330 = vector.broadcast %329 : vector<16x1xf32> to vector<16x16xf32>
    %331 = arith.subf %327, %330 : vector<16x16xf32>
    %332 = math.exp %331 : vector<16x16xf32>
    %cst_127 = arith.constant dense<0.000000e+00> : vector<16xf32>
    %333 = vector.multi_reduction <add>, %332, %cst_127 [1] : vector<16x16xf32> to vector<16xf32>
    %334 = vector.shape_cast %333 : vector<16xf32> to vector<16x1xf32>
    %335 = vector.broadcast %334 : vector<16x1xf32> to vector<16x16xf32>
    %336 = arith.divf %332, %335 : vector<16x16xf32>
    %cst_128 = arith.constant dense<0.000000e+00> : vector<16x8xf32>
    %337 = tpu.matmul %336, %325, %cst_128 {dimension_numbers = #tpu.dot_dimension_numbers<[1], [0], [0], [1], [0, 0, 1, 1], [], []>} : vector<16x16xf32>, vector<16x8xf32>, vector<16x8xf32> -> vector<16x8xf32>
    %338 = tpu.concatenate %292, %307, %322, %337 in 1 : vector<16x8xf32>, vector<16x8xf32>, vector<16x8xf32>, vector<16x8xf32> -> vector<16x32xf32>
    %c1_129 = arith.constant 1 : index
    %c0_130 = arith.constant 0 : index
    %c0_131 = arith.constant 0 : index
    %339 = vector.load %arg6[%c1_129, %c0_130, %c0_131] : memref<2x32x32xf32, #tpu.memory_space<vmem>>, vector<1x32x32xf32>
    %340 = vector.shape_cast %339 : vector<1x32x32xf32> to vector<32x32xf32>
    %cst_132 = arith.constant dense<0.000000e+00> : vector<16x32xf32>
    %341 = tpu.matmul %338, %340, %cst_132 {dimension_numbers = #tpu.dot_dimension_numbers<[1], [0], [0], [1], [0, 0, 1, 1], [], []>} : vector<16x32xf32>, vector<32x32xf32>, vector<16x32xf32> -> vector<16x32xf32>
    %c1_133 = arith.constant 1 : index
    %c0_134 = arith.constant 0 : index
    %c0_135 = arith.constant 0 : index
    %342 = vector.load %arg7[%c1_133, %c0_134, %c0_135] : memref<2x1x32xf32, #tpu.memory_space<vmem>>, vector<1x1x32xf32>
    %343 = vector.shape_cast %342 : vector<1x1x32xf32> to vector<1x32xf32>
    %344 = vector.broadcast %343 : vector<1x32xf32> to vector<16x32xf32>
    %345 = arith.addf %341, %344 : vector<16x32xf32>
    %346 = arith.mulf %271, %345 : vector<16x32xf32>
    %347 = math.tanh %346 : vector<16x32xf32>
    %cst_136 = arith.constant 1.000000e+00 : f32
    %348 = vector.broadcast %cst_136 : f32 to vector<16x32xf32>
    %349 = arith.subf %348, %265 : vector<16x32xf32>
    %350 = arith.mulf %349, %219 : vector<16x32xf32>
    %351 = arith.mulf %265, %347 : vector<16x32xf32>
    %352 = arith.addf %350, %351 : vector<16x32xf32>
    %c1_137 = arith.constant 1 : index
    %c0_138 = arith.constant 0 : index
    %c0_139 = arith.constant 0 : index
    %353 = vector.load %arg8[%c1_137, %c0_138, %c0_139] : memref<2x1x32xf32, #tpu.memory_space<vmem>>, vector<1x1x32xf32>
    %354 = vector.shape_cast %353 : vector<1x1x32xf32> to vector<1x32xf32>
    %c1_140 = arith.constant 1 : index
    %c0_141 = arith.constant 0 : index
    %c0_142 = arith.constant 0 : index
    %355 = vector.load %arg9[%c1_140, %c0_141, %c0_142] : memref<2x1x32xf32, #tpu.memory_space<vmem>>, vector<1x1x32xf32>
    %356 = vector.shape_cast %355 : vector<1x1x32xf32> to vector<1x32xf32>
    %cst_143 = arith.constant dense<0.000000e+00> : vector<16xf32>
    %357 = vector.multi_reduction <add>, %352, %cst_143 [1] : vector<16x32xf32> to vector<16xf32>
    %358 = vector.shape_cast %357 : vector<16xf32> to vector<16x1xf32>
    %cst_144 = arith.constant 3.200000e+01 : f32
    %359 = vector.broadcast %cst_144 : f32 to vector<16x1xf32>
    %360 = arith.divf %358, %359 : vector<16x1xf32>
    %361 = vector.broadcast %360 : vector<16x1xf32> to vector<16x32xf32>
    %362 = arith.subf %352, %361 : vector<16x32xf32>
    %363 = vector.broadcast %360 : vector<16x1xf32> to vector<16x32xf32>
    %364 = arith.subf %352, %363 : vector<16x32xf32>
    %365 = arith.mulf %362, %364 : vector<16x32xf32>
    %cst_145 = arith.constant dense<0.000000e+00> : vector<16xf32>
    %366 = vector.multi_reduction <add>, %365, %cst_145 [1] : vector<16x32xf32> to vector<16xf32>
    %367 = vector.shape_cast %366 : vector<16xf32> to vector<16x1xf32>
    %cst_146 = arith.constant 3.200000e+01 : f32
    %368 = vector.broadcast %cst_146 : f32 to vector<16x1xf32>
    %369 = arith.divf %367, %368 : vector<16x1xf32>
    %370 = vector.broadcast %360 : vector<16x1xf32> to vector<16x32xf32>
    %371 = arith.subf %352, %370 : vector<16x32xf32>
    %cst_147 = arith.constant 9.99999974E-6 : f32
    %372 = vector.broadcast %cst_147 : f32 to vector<16x1xf32>
    %373 = arith.addf %369, %372 : vector<16x1xf32>
    %374 = math.rsqrt %373 : vector<16x1xf32>
    %375 = vector.broadcast %374 : vector<16x1xf32> to vector<16x32xf32>
    %376 = arith.mulf %371, %375 : vector<16x32xf32>
    %377 = vector.broadcast %354 : vector<1x32xf32> to vector<16x32xf32>
    %378 = arith.mulf %376, %377 : vector<16x32xf32>
    %379 = vector.broadcast %356 : vector<1x32xf32> to vector<16x32xf32>
    %380 = arith.addf %378, %379 : vector<16x32xf32>
    %c1_148 = arith.constant 1 : index
    %c0_149 = arith.constant 0 : index
    %c0_150 = arith.constant 0 : index
    %381 = vector.load %arg10[%c1_148, %c0_149, %c0_150] : memref<2x32x128xf32, #tpu.memory_space<vmem>>, vector<1x32x128xf32>
    %382 = vector.shape_cast %381 : vector<1x32x128xf32> to vector<32x128xf32>
    %cst_151 = arith.constant dense<0.000000e+00> : vector<16x128xf32>
    %383 = tpu.matmul %380, %382, %cst_151 {dimension_numbers = #tpu.dot_dimension_numbers<[1], [0], [0], [1], [0, 0, 1, 1], [], []>} : vector<16x32xf32>, vector<32x128xf32>, vector<16x128xf32> -> vector<16x128xf32>
    %c1_152 = arith.constant 1 : index
    %c0_153 = arith.constant 0 : index
    %c0_154 = arith.constant 0 : index
    %384 = vector.load %arg11[%c1_152, %c0_153, %c0_154] : memref<2x1x128xf32, #tpu.memory_space<vmem>>, vector<1x1x128xf32>
    %385 = vector.shape_cast %384 : vector<1x1x128xf32> to vector<1x128xf32>
    %386 = vector.broadcast %385 : vector<1x128xf32> to vector<16x128xf32>
    %387 = arith.addf %383, %386 : vector<16x128xf32>
    %cst_155 = arith.constant 5.000000e-01 : f32
    %388 = vector.broadcast %cst_155 : f32 to vector<16x128xf32>
    %389 = arith.mulf %388, %387 : vector<16x128xf32>
    %cst_156 = arith.constant 0.707106769 : f32
    %390 = vector.broadcast %cst_156 : f32 to vector<16x128xf32>
    %391 = arith.mulf %387, %390 : vector<16x128xf32>
    %392 = math.erf %391 : vector<16x128xf32>
    %cst_157 = arith.constant 1.000000e+00 : f32
    %393 = vector.broadcast %cst_157 : f32 to vector<16x128xf32>
    %394 = arith.addf %393, %392 : vector<16x128xf32>
    %395 = arith.mulf %389, %394 : vector<16x128xf32>
    %c1_158 = arith.constant 1 : index
    %c0_159 = arith.constant 0 : index
    %c0_160 = arith.constant 0 : index
    %396 = vector.load %arg12[%c1_158, %c0_159, %c0_160] : memref<2x128x32xf32, #tpu.memory_space<vmem>>, vector<1x128x32xf32>
    %397 = vector.shape_cast %396 : vector<1x128x32xf32> to vector<128x32xf32>
    %cst_161 = arith.constant dense<0.000000e+00> : vector<16x32xf32>
    %398 = tpu.matmul %395, %397, %cst_161 {dimension_numbers = #tpu.dot_dimension_numbers<[1], [0], [0], [1], [0, 0, 1, 1], [], []>} : vector<16x128xf32>, vector<128x32xf32>, vector<16x32xf32> -> vector<16x32xf32>
    %c1_162 = arith.constant 1 : index
    %c0_163 = arith.constant 0 : index
    %c0_164 = arith.constant 0 : index
    %399 = vector.load %arg13[%c1_162, %c0_163, %c0_164] : memref<2x1x32xf32, #tpu.memory_space<vmem>>, vector<1x1x32xf32>
    %400 = vector.shape_cast %399 : vector<1x1x32xf32> to vector<1x32xf32>
    %401 = vector.broadcast %400 : vector<1x32xf32> to vector<16x32xf32>
    %402 = arith.addf %398, %401 : vector<16x32xf32>
    %cst_165 = arith.constant 1.000000e+00 : f32
    %403 = vector.broadcast %cst_165 : f32 to vector<16x32xf32>
    %404 = arith.subf %403, %265 : vector<16x32xf32>
    %405 = arith.mulf %404, %352 : vector<16x32xf32>
    %406 = arith.mulf %265, %402 : vector<16x32xf32>
    %407 = arith.addf %405, %406 : vector<16x32xf32>
    %408 = arith.addf %407, %0 : vector<16x32xf32>
    %c0_166 = arith.constant 0 : index
    %c0_167 = arith.constant 0 : index
    %409 = vector.load %arg14[%c0_166, %c0_167] : memref<1x32xf32, #tpu.memory_space<vmem>>, vector<1x32xf32>
    %c0_168 = arith.constant 0 : index
    %c0_169 = arith.constant 0 : index
    %410 = vector.load %arg15[%c0_168, %c0_169] : memref<1x32xf32, #tpu.memory_space<vmem>>, vector<1x32xf32>
    %cst_170 = arith.constant dense<0.000000e+00> : vector<16xf32>
    %411 = vector.multi_reduction <add>, %408, %cst_170 [1] : vector<16x32xf32> to vector<16xf32>
    %412 = vector.shape_cast %411 : vector<16xf32> to vector<16x1xf32>
    %cst_171 = arith.constant 3.200000e+01 : f32
    %413 = vector.broadcast %cst_171 : f32 to vector<16x1xf32>
    %414 = arith.divf %412, %413 : vector<16x1xf32>
    %415 = vector.broadcast %414 : vector<16x1xf32> to vector<16x32xf32>
    %416 = arith.subf %408, %415 : vector<16x32xf32>
    %417 = vector.broadcast %414 : vector<16x1xf32> to vector<16x32xf32>
    %418 = arith.subf %408, %417 : vector<16x32xf32>
    %419 = arith.mulf %416, %418 : vector<16x32xf32>
    %cst_172 = arith.constant dense<0.000000e+00> : vector<16xf32>
    %420 = vector.multi_reduction <add>, %419, %cst_172 [1] : vector<16x32xf32> to vector<16xf32>
    %421 = vector.shape_cast %420 : vector<16xf32> to vector<16x1xf32>
    %cst_173 = arith.constant 3.200000e+01 : f32
    %422 = vector.broadcast %cst_173 : f32 to vector<16x1xf32>
    %423 = arith.divf %421, %422 : vector<16x1xf32>
    %424 = vector.broadcast %414 : vector<16x1xf32> to vector<16x32xf32>
    %425 = arith.subf %408, %424 : vector<16x32xf32>
    %cst_174 = arith.constant 9.99999974E-6 : f32
    %426 = vector.broadcast %cst_174 : f32 to vector<16x1xf32>
    %427 = arith.addf %423, %426 : vector<16x1xf32>
    %428 = math.rsqrt %427 : vector<16x1xf32>
    %429 = vector.broadcast %428 : vector<16x1xf32> to vector<16x32xf32>
    %430 = arith.mulf %425, %429 : vector<16x32xf32>
    %431 = vector.broadcast %409 : vector<1x32xf32> to vector<16x32xf32>
    %432 = arith.mulf %430, %431 : vector<16x32xf32>
    %433 = vector.broadcast %410 : vector<1x32xf32> to vector<16x32xf32>
    %434 = arith.addf %432, %433 : vector<16x32xf32>
    %c0_175 = arith.constant 0 : index
    %c0_176 = arith.constant 0 : index
    %435 = vector.load %arg16[%c0_175, %c0_176] : memref<16x32xf32, #tpu.memory_space<vmem>>, vector<16x32xf32>
    tpu.vector_store %arg16[%c0_175, %c0_176], %434 {strides = array<i32>} : memref<16x32xf32, #tpu.memory_space<vmem>>, vector<16x32xf32>,
    return
  }
  func.func @transform_0(%arg0: i32) -> (i32, i32) {
    %c0_i32 = arith.constant 0 : i32
    %c0_i32_0 = arith.constant 0 : i32
    %c0_i32_1 = arith.constant 0 : i32
    return %c0_i32, %c0_i32_0 : i32, i32
  }
  func.func @transform_1(%arg0: i32) -> (i32, i32, i32) {
    %c0_i32 = arith.constant 0 : i32
    %c0_i32_0 = arith.constant 0 : i32
    %c0_i32_1 = arith.constant 0 : i32
    %c0_i32_2 = arith.constant 0 : i32
    return %c0_i32, %c0_i32_0, %c0_i32_1 : i32, i32, i32
  }
  func.func @transform_2(%arg0: i32) -> (i32, i32, i32) {
    %c0_i32 = arith.constant 0 : i32
    %c0_i32_0 = arith.constant 0 : i32
    %c0_i32_1 = arith.constant 0 : i32
    %c0_i32_2 = arith.constant 0 : i32
    return %c0_i32, %c0_i32_0, %c0_i32_1 : i32, i32, i32
  }
  func.func @transform_3(%arg0: i32) -> (i32, i32, i32) {
    %c0_i32 = arith.constant 0 : i32
    %c0_i32_0 = arith.constant 0 : i32
    %c0_i32_1 = arith.constant 0 : i32
    %c0_i32_2 = arith.constant 0 : i32
    return %c0_i32, %c0_i32_0, %c0_i32_1 : i32, i32, i32
  }
  func.func @transform_4(%arg0: i32) -> (i32, i32, i32) {
    %c0_i32 = arith.constant 0 : i32
    %c0_i32_0 = arith.constant 0 : i32
    %c0_i32_1 = arith.constant 0 : i32
    %c0_i32_2 = arith.constant 0 : i32
    return %c0_i32, %c0_i32_0, %c0_i32_1 : i32, i32, i32
  }
  func.func @transform_5(%arg0: i32) -> (i32, i32, i32) {
    %c0_i32 = arith.constant 0 : i32
    %c0_i32_0 = arith.constant 0 : i32
    %c0_i32_1 = arith.constant 0 : i32
    %c0_i32_2 = arith.constant 0 : i32
    return %c0_i32, %c0_i32_0, %c0_i32_1 : i32, i32, i32
  }
  func.func @transform_6(%arg0: i32) -> (i32, i32, i32) {
    %c0_i32 = arith.constant 0 : i32
    %c0_i32_0 = arith.constant 0 : i32
    %c0_i32_1 = arith.constant 0 : i32
    %c0_i32_2 = arith.constant 0 : i32
    return %c0_i32, %c0_i32_0, %c0_i32_1 : i32, i32, i32
  }
  func.func @transform_7(%arg0: i32) -> (i32, i32, i32) {
    %c0_i32 = arith.constant 0 : i32
    %c0_i32_0 = arith.constant 0 : i32
    %c0_i32_1 = arith.constant 0 : i32
    %c0_i32_2 = arith.constant 0 : i32
    return %c0_i32, %c0_i32_0, %c0_i32_1 : i32, i32, i32
  }
  func.func @transform_8(%arg0: i32) -> (i32, i32, i32) {
    %c0_i32 = arith.constant 0 : i32
    %c0_i32_0 = arith.constant 0 : i32
    %c0_i32_1 = arith.constant 0 : i32
    %c0_i32_2 = arith.constant 0 : i32
    return %c0_i32, %c0_i32_0, %c0_i32_1 : i32, i32, i32
  }
  func.func @transform_9(%arg0: i32) -> (i32, i32, i32) {
    %c0_i32 = arith.constant 0 : i32
    %c0_i32_0 = arith.constant 0 : i32
    %c0_i32_1 = arith.constant 0 : i32
    %c0_i32_2 = arith.constant 0 : i32
    return %c0_i32, %c0_i32_0, %c0_i32_1 : i32, i32, i32
  }
  func.func @transform_10(%arg0: i32) -> (i32, i32, i32) {
    %c0_i32 = arith.constant 0 : i32
    %c0_i32_0 = arith.constant 0 : i32
    %c0_i32_1 = arith.constant 0 : i32
    %c0_i32_2 = arith.constant 0 : i32
    return %c0_i32, %c0_i32_0, %c0_i32_1 : i32, i32, i32
  }
  func.func @transform_11(%arg0: i32) -> (i32, i32, i32) {
    %c0_i32 = arith.constant 0 : i32
    %c0_i32_0 = arith.constant 0 : i32
    %c0_i32_1 = arith.constant 0 : i32
    %c0_i32_2 = arith.constant 0 : i32
    return %c0_i32, %c0_i32_0, %c0_i32_1 : i32, i32, i32
  }
  func.func @transform_12(%arg0: i32) -> (i32, i32, i32) {
    %c0_i32 = arith.constant 0 : i32
    %c0_i32_0 = arith.constant 0 : i32
    %c0_i32_1 = arith.constant 0 : i32
    %c0_i32_2 = arith.constant 0 : i32
    return %c0_i32, %c0_i32_0, %c0_i32_1 : i32, i32, i32
  }
  func.func @transform_13(%arg0: i32) -> (i32, i32) {
    %c0_i32 = arith.constant 0 : i32
    %c0_i32_0 = arith.constant 0 : i32
    %c0_i32_1 = arith.constant 0 : i32
    return %c0_i32, %c0_i32_0 : i32, i32
  }
  func.func @transform_14(%arg0: i32) -> (i32, i32) {
    %c0_i32 = arith.constant 0 : i32
    %c0_i32_0 = arith.constant 0 : i32
    %c0_i32_1 = arith.constant 0 : i32
    return %c0_i32, %c0_i32_0 : i32, i32
  }
  func.func @transform_15(%arg0: i32) -> (i32, i32) {
    %c0_i32 = arith.constant 0 : i32
    %c0_i32_0 = arith.constant 0 : i32
    %c0_i32_1 = arith.constant 0 : i32
    return %c0_i32, %c0_i32_0 : i32, i32
  }
  func.func @transform_16(%arg0: i32) -> (i32, i32, i32) {
    %c0_i32 = arith.constant 0 : i32
    %c0_i32_0 = arith.constant 0 : i32
    %c0_i32_1 = arith.constant 0 : i32
    %c0_i32_2 = arith.constant 0 : i32
    return %c0_i32, %c0_i32_0, %c0_i32_1 : i32, i32, i32
  }
  func.func @transform_17(%arg0: i32) -> (i32, i32, i32) {
    %c0_i32 = arith.constant 0 : i32
    %c0_i32_0 = arith.constant 0 : i32
    %c0_i32_1 = arith.constant 0 : i32
    %c0_i32_2 = arith.constant 0 : i32
    return %c0_i32, %c0_i32_0, %c0_i32_1 : i32, i32, i32
  }
}

</mosaic_0001>

<llo_original>
// kernel: tpu_custom_call.1
$region0: #{tpu_custom_call.1}
  #allocation0 [shape = 'u32[]', space=smem, size = 0x4, offset = 0x4, fixed_abs, tag = 'smem constant byte address 0x4 - core index']
  #allocation1 [shape = 'u32[144,128]{1,0:T(1,128)}', space=vmem, size = 0x12000, scoped, tag = 'internal scratch']
  %s0 = inlined_call_operand.vmem [shape: f32[16,32], index: 0, kind: input, shape index: {}]
  %s1 = inlined_call_operand.vmem [shape: f32[2,1,32], index: 1, kind: input, shape index: {}]
  %s2 = inlined_call_operand.vmem [shape: f32[2,1,32], index: 2, kind: input, shape index: {}]
  %s3 = inlined_call_operand.vmem [shape: f32[2,32,160], index: 3, kind: input, shape index: {}]
  %s4 = inlined_call_operand.vmem [shape: f32[2,1,160], index: 4, kind: input, shape index: {}]
  %s5 = inlined_call_operand.vmem [shape: f32[2,32,32], index: 5, kind: input, shape index: {}]
  %s6 = inlined_call_operand.vmem [shape: f32[2,1,32], index: 6, kind: input, shape index: {}]
  %s7 = inlined_call_operand.vmem [shape: f32[2,1,32], index: 7, kind: input, shape index: {}]
  %s8 = inlined_call_operand.vmem [shape: f32[2,1,32], index: 8, kind: input, shape index: {}]
  %s9 = inlined_call_operand.vmem [shape: f32[2,32,128], index: 9, kind: input, shape index: {}]
  %s10 = inlined_call_operand.vmem [shape: f32[2,1,128], index: 10, kind: input, shape index: {}]
  %s11 = inlined_call_operand.vmem [shape: f32[2,128,32], index: 11, kind: input, shape index: {}]
  %s12 = inlined_call_operand.vmem [shape: f32[2,1,32], index: 12, kind: input, shape index: {}]
  %s13 = inlined_call_operand.vmem [shape: f32[1,32], index: 13, kind: input, shape index: {}]
  %s14 = inlined_call_operand.vmem [shape: f32[1,32], index: 14, kind: input, shape index: {}]
  %s15 = inlined_call_operand.hbm [shape: f32[16,32], index: 15, kind: output, shape index: {0}]
  %s16 = inlined_call_operand.hbm [shape: f32[2,16,32], index: 16, kind: output, shape index: {1}]
  %s17 = inlined_call_operand.hbm [shape: f32[2,16,32], index: 17, kind: output, shape index: {2}]
  %18 = xla_tuple %s15, %s16, %s17
  %s19 = sld [smem:[#allocation0]]
  $region86: #{tpu_custom_call.1} parent=0
    _
  %s21 = ssub.s32 1, %s19
  %s22 = scalar_select 0, %s21, %s19
  $region1: #{tpu_custom_call.1} parent=0
    #allocation2 [shape = 'u8[8192]{0}', space=vmem, size = 0x2000, scoped, tag = 'output window, operand 0, single buffered']
    #allocation3 [shape = 's32[1]{0}', space=sflag, size = 0x4, scoped, tag = 'scoped memory for tpu_custom_call.1']
    #allocation4 [shape = 'u8[16384]{0}', space=vmem, size = 0x4000, scoped, tag = 'output window, operand 1, single buffered']
    #allocation5 [shape = 's32[1]{0}', space=sflag, size = 0x4, scoped, tag = 'scoped memory for tpu_custom_call.1']
    #allocation6 [shape = 'u8[16384]{0}', space=vmem, size = 0x4000, scoped, tag = 'output window, operand 2, single buffered']
    %23 = vsyncpa [#allocation3], 0
    %24 = vsyncpa [#allocation5], 0
    // Predicated region
    $region2: #{tpu_custom_call.1} parent=1 // pred_check
      _
    $region3: #{tpu_custom_call.1} parent=1 // pred_check_branch
      %26 = sbr.rel (0) target = $region5
    $region4: #{tpu_custom_call.1} parent=1 // pred_region
      _
    $region5: #{tpu_custom_call.1} parent=1 // pred_fallthru
      _
    // Predicated region
    $region6: #{tpu_custom_call.1} parent=1 // pred_check
      _
    $region7: #{tpu_custom_call.1} parent=1 // pred_check_branch
      %28 = sbr.rel (0) target = $region9
    $region8: #{tpu_custom_call.1} parent=1 // pred_region
      _
    $region9: #{tpu_custom_call.1} parent=1 // pred_fallthru
      _
    // Predicated region
    $region10: #{tpu_custom_call.1} parent=1 // pred_check
      _
    $region11: #{tpu_custom_call.1} parent=1 // pred_check_branch
      %30 = sbr.rel (0) target = $region13
    $region12: #{tpu_custom_call.1} parent=1 // pred_region
      _
    $region13: #{tpu_custom_call.1} parent=1 // pred_fallthru
      _
    // Predicated region
    $region14: #{tpu_custom_call.1} parent=1 // pred_check
      _
    $region15: #{tpu_custom_call.1} parent=1 // pred_check_branch
      %32 = sbr.rel (0) target = $region17
    $region16: #{tpu_custom_call.1} parent=1 // pred_region
      _
    $region17: #{tpu_custom_call.1} parent=1 // pred_fallthru
      _
    // Predicated region
    $region18: #{tpu_custom_call.1} parent=1 // pred_check
      _
    $region19: #{tpu_custom_call.1} parent=1 // pred_check_branch
      %34 = sbr.rel (0) target = $region21
    $region20: #{tpu_custom_call.1} parent=1 // pred_region
      _
    $region21: #{tpu_custom_call.1} parent=1 // pred_fallthru
      _
    // Predicated region
    $region22: #{tpu_custom_call.1} parent=1 // pred_check
      _
    $region23: #{tpu_custom_call.1} parent=1 // pred_check_branch
      %36 = sbr.rel (0) target = $region25
    $region24: #{tpu_custom_call.1} parent=1 // pred_region
      _
    $region25: #{tpu_custom_call.1} parent=1 // pred_fallthru
      _
    // Predicated region
    $region26: #{tpu_custom_call.1} parent=1 // pred_check
      _
    $region27: #{tpu_custom_call.1} parent=1 // pred_check_branch
      %38 = sbr.rel (0) target = $region29
    $region28: #{tpu_custom_call.1} parent=1 // pred_region
      _
    $region29: #{tpu_custom_call.1} parent=1 // pred_fallthru
      _
    // Predicated region
    $region30: #{tpu_custom_call.1} parent=1 // pred_check
      _
    $region31: #{tpu_custom_call.1} parent=1 // pred_check_branch
      %40 = sbr.rel (0) target = $region33
    $region32: #{tpu_custom_call.1} parent=1 // pred_region
      _
    $region33: #{tpu_custom_call.1} parent=1 // pred_fallthru
      _
    // Predicated region
    $region34: #{tpu_custom_call.1} parent=1 // pred_check
      _
    $region35: #{tpu_custom_call.1} parent=1 // pred_check_branch
      %42 = sbr.rel (0) target = $region37
    $region36: #{tpu_custom_call.1} parent=1 // pred_region
      _
    $region37: #{tpu_custom_call.1} parent=1 // pred_fallthru
      _
    // Predicated region
    $region38: #{tpu_custom_call.1} parent=1 // pred_check
      _
    $region39: #{tpu_custom_call.1} parent=1 // pred_check_branch
      %44 = sbr.rel (0) target = $region41
    $region40: #{tpu_custom_call.1} parent=1 // pred_region
      _
    $region41: #{tpu_custom_call.1} parent=1 // pred_fallthru
      _
    // Predicated region
    $region42: #{tpu_custom_call.1} parent=1 // pred_check
      _
    $region43: #{tpu_custom_call.1} parent=1 // pred_check_branch
      %46 = sbr.rel (0) target = $region45
    $region44: #{tpu_custom_call.1} parent=1 // pred_region
      _
    $region45: #{tpu_custom_call.1} parent=1 // pred_fallthru
      _
    // Predicated region
    $region46: #{tpu_custom_call.1} parent=1 // pred_check
      _
    $region47: #{tpu_custom_call.1} parent=1 // pred_check_branch
      %48 = sbr.rel (0) target = $region49
    $region48: #{tpu_custom_call.1} parent=1 // pred_region
      _
    $region49: #{tpu_custom_call.1} parent=1 // pred_fallthru
      _
    // Predicated region
    $region50: #{tpu_custom_call.1} parent=1 // pred_check
      _
    $region51: #{tpu_custom_call.1} parent=1 // pred_check_branch
      %50 = sbr.rel (0) target = $region53
    $region52: #{tpu_custom_call.1} parent=1 // pred_region
      _
    $region53: #{tpu_custom_call.1} parent=1 // pred_fallthru
      _
    // Predicated region
    $region54: #{tpu_custom_call.1} parent=1 // pred_check
      _
    $region55: #{tpu_custom_call.1} parent=1 // pred_check_branch
      %52 = sbr.rel (0) target = $region57
    $region56: #{tpu_custom_call.1} parent=1 // pred_region
      _
    $region57: #{tpu_custom_call.1} parent=1 // pred_fallthru
      _
    // Predicated region
    $region58: #{tpu_custom_call.1} parent=1 // pred_check
      _
    $region59: #{tpu_custom_call.1} parent=1 // pred_check_branch
      %54 = sbr.rel (0) target = $region61
    $region60: #{tpu_custom_call.1} parent=1 // pred_region
      _
    $region61: #{tpu_custom_call.1} parent=1 // pred_fallthru
      _
    %v55 = vld [vmem:[%s0] sm:$0xff]
    %v56 = vld [vmem:[%s0 + $0x8] sm:$0xff]
    %v57 = vlaneseq
    %v58 = vshrl.u32 %v57, 7
    %v59 = vadd.s32 %v58, 8
    %v60 = vlaneseq
    %v61 = vand.u32 %v60, 127
    %vm62 = vcmp.ge.s32.totalorder %v58, 0
    %vm63 = vcmp.ge.s32.totalorder %v59, 0
    %vm64 = vcmp.lt.s32.totalorder %v58, 8
    %vm65 = vcmp.lt.s32.totalorder %v59, 8
    %vm66 = vmand %vm62, %vm64
    %vm67 = vmand %vm63, %vm65
    %vm68 = vcmp.ge.s32.totalorder %v61, 0
    %vm69 = vmand %vm66, %vm68
    %vm70 = vmand %vm67, %vm68
    %vm71 = vcmp.lt.s32.totalorder %v61, 8
    %vm72 = vmand %vm69, %vm71
    %vm73 = vmand %vm70, %vm71
    %vm74 = vcmp.ge.s32.totalorder %v58, 8
    %vm75 = vcmp.ge.s32.totalorder %v59, 8
    %vm76 = vcmp.lt.s32.totalorder %v58, 16
    %vm77 = vcmp.lt.s32.totalorder %v59, 16
    %vm78 = vmand %vm74, %vm76
    %vm79 = vmand %vm75, %vm77
    %vm80 = vcmp.ge.s32.totalorder %v61, 8
    %vm81 = vmand %vm78, %vm80
    %vm82 = vmand %vm79, %vm80
    %vm83 = vcmp.lt.s32.totalorder %v61, 16
    %vm84 = vmand %vm81, %vm83
    %vm85 = vmand %vm82, %vm83
    %vm86 = vmor %vm72, %vm84
    %vm87 = vmor %vm73, %vm85
    %vm88 = vcmp.le.s32.totalorder %v61, %v58
    %vm89 = vcmp.le.s32.totalorder %v61, %v59
    %vm90 = vmand %vm86, %vm88
    %vm91 = vmand %vm87, %vm89
    %v92 = vsel %vm90, 0.0, -1e+09
    %v93 = vsel %vm91, 0.0, -1e+09
    %v94 = vld [vmem:[%s1] sm:$0x1]
    %v95 = vld [vmem:[%s2] sm:$0x1]
    %vm96 = vcmask 261120
    %v97 = vsel %vm96, %v55, 0.0
    %98 = vadd.xlane.f32.xlu0 %v97
    %v99 = vpop.xlane.xlu0 %98
    %v100 = vsel %vm96, %v56, 0.0
    %101 = vadd.xlane.f32.xlu0 %v100
    %v102 = vpop.xlane.xlu0 %101
    %v103 = vrcp.pop 32.0
    %v104 = vmul.f32 %v99, %v103
    %v105 = vmul.f32 %v102, %v103
    %v106 = vsub.f32 %v55, %v104
    %v107 = vsub.f32 %v56, %v105
    %v108 = vmul.f32 %v106, %v106
    %v109 = vmul.f32 %v107, %v107
    %v110 = vsel %vm96, %v108, 0.0
    %111 = vadd.xlane.f32.xlu0 %v110
    %v112 = vpop.xlane.xlu0 %111
    %v113 = vsel %vm96, %v109, 0.0
    %114 = vadd.xlane.f32.xlu0 %v113
    %v115 = vpop.xlane.xlu0 %114
    %v116 = vmul.f32 %v112, %v103
    %v117 = vmul.f32 %v115, %v103
    %v118 = vadd.f32 %v116, 1e-05
    %v119 = vadd.f32 %v117, 1e-05
    %v120 = vrsqrt.pop %v118
    %v121 = vrsqrt.pop %v119
    %v122 = vmul.f32 %v106, %v120
    %v123 = vmul.f32 %v107, %v121
    %v125 = vlaneseq
    %v126 = vshrl.u32 %v125, 7
    %v127 = vsub.s32 0, %v126
    %v128 = vrot.slane %v94, %v127
    %v130 = vmul.f32 %v122, %v128
    %v131 = vmul.f32 %v123, %v128
    %v133 = vlaneseq
    %v134 = vshrl.u32 %v133, 7
    %v135 = vsub.s32 0, %v134
    %v136 = vrot.slane %v95, %v135
    %v138 = vadd.f32 %v130, %v136
    %v139 = vadd.f32 %v131, %v136
    %v140 = vld [vmem:[%s3] sm:$0xff]
    %v141 = vld [vmem:[%s3 + $0x8] sm:$0xff]
    %v142 = vld [vmem:[%s3 + $0x10] sm:$0xff]
    %v143 = vld [vmem:[%s3 + $0x18] sm:$0xff]
    %v144 = vld [vmem:[%s3 + $0x20] sm:$0xff]
    %v145 = vld [vmem:[%s3 + $0x28] sm:$0xff]
    %v146 = vld [vmem:[%s3 + $0x30] sm:$0xff]
    %v147 = vld [vmem:[%s3 + $0x38] sm:$0xff]
    %v148 = vld [vmem:[%s4] sm:$0x3]
    %v150 = vlaneseq
    %v151 = vshrl.u32 %v150, 7
    %v152 = vsub.s32 0, %v151
    %v153 = vrot.slane %v148, %v152
    %v154 = vlaneseq
    %v155 = vshrl.u32 %v154, 7
    %v156 = vsub.s32 1, %v155
    %v157 = vrot.slane %v148, %v156
    %v161 = vsel %vm96, %v138, 0
    %v164 = vsel %vm96, %v139, 0
    %166 = vmatprep.subr.mxu0 %v141
    %167 = vmatpush1.msra.mxu0 %v140
    %168 = vmatprep.subr.mxu0 %v143
    %169 = vmatpush1.msra.mxu0 %v142
    %170 = vmatprep.subr.mxu0 %v145
    %171 = vmatpush1.msra.mxu0 %v144
    %172 = vmatprep.subr.mxu0 %v147
    %173 = vmatpush1.msra.mxu0 %v146
    %174 = vmatprep.subr.mxu0 0.0
    %175 = vmatpush1.msra.mxu0 0.0
    %176 = vmatprep.subr.mxu0 0.0
    %177 = vmatpush1.msra.mxu0 0.0
    %178 = vmatprep.subr.mxu0 0.0
    %179 = vmatpush1.msra.mxu0 0.0
    %180 = vmatprep.subr.mxu0 0.0
    %181 = vmatpush1.msra.mxu0 0.0
    %182 = vmatprep.subr.mxu0 0.0
    %183 = vmatpush1.msra.mxu0 0.0
    %184 = vmatprep.subr.mxu0 0.0
    %185 = vmatpush1.msra.mxu0 0.0
    %186 = vmatprep.subr.mxu0 0.0
    %187 = vmatpush1.msra.mxu0 0.0
    %188 = vmatprep.subr.mxu0 0.0
    %189 = vmatpush1.msra.mxu0 0.0
    %190 = vmatprep.subr.mxu0 0.0
    %191 = vmatpush1.msra.mxu0 0.0
    %192 = vmatprep.subr.mxu0 0.0
    %193 = vmatpush1.msra.mxu0 0.0
    %194 = vmatprep.subr.mxu0 0.0
    %195 = vmatpush1.msra.mxu0 0.0
    %196 = vmatprep.subr.mxu0 0.0
    %197 = vmatpush1.msra.mxu0 0.0
    %198 = vmatprep.subr.mxu0 0.0
    %199 = vmatpush1.msra.mxu0 0.0
    %200 = vmatprep.subr.mxu0 0.0
    %201 = vmatpush1.msra.mxu0 0.0
    %202 = vmatprep.subr.mxu0 0.0
    %203 = vmatpush1.msra.mxu0 0.0
    %204 = vmatprep.subr.mxu0 0.0
    %205 = vmatpush1.msra.mxu0 0.0
    %206 = vmatprep.subr.mxu0 0.0
    %207 = vmatpush1.msra.mxu0 0.0
    %208 = vmatprep.subr.mxu0 0.0
    %209 = vmatpush1.msra.mxu0 0.0
    %210 = vmatprep.subr.mxu0 0.0
    %211 = vmatpush1.msra.mxu0 0.0
    %212 = vmatprep.subr.mxu0 0.0
    %213 = vmatpush1.msra.mxu0 0.0
    %214 = vmatprep.subr.mxu0 0.0
    %215 = vmatpush1.msra.mxu0 0.0
    %216 = vmatprep.subr.mxu0 0.0
    %217 = vmatpush1.msra.mxu0 0.0
    %218 = vmatprep.subr.mxu0 0.0
    %219 = vmatpush1.msra.mxu0 0.0
    %220 = vmatprep.subr.mxu0 0.0
    %221 = vmatpush1.msra.mxu0 0.0
    %222 = vmatprep.subr.mxu0 0.0
    %223 = vmatpush1.msra.mxu0 0.0
    %224 = vmatprep.subr.mxu0 0.0
    %225 = vmatpush1.msra.mxu0 0.0
    %226 = vmatprep.subr.mxu0 0.0
    %227 = vmatpush1.msra.mxu0 0.0
    %228 = vmatprep.subr.mxu0 0.0
    %229 = vmatpush1.msra.mxu0 0.0
    %230 = vmatprep.mubr.f32.mxu0 0.0
    %231 = vmatmul.mubr.f32.gmra.mrb[0].mxu0 %v161
    %v232 = vpop.f32.mrb[0].mxu0
    %v233 = vadd.f32 %v153, %v232
    %v234 = vpop.f32.mrb[0].mxu0
    %v235 = vadd.f32 %v157, %v234
    %236 = vmatprep.mubr.f32.mxu0 0.0
    %237 = vmatmul.mubr.f32.gmra.mrb[0].mxu0 %v164
    %v238 = vpop.f32.mrb[0].mxu0
    %v239 = vadd.f32 %v153, %v238
    %v240 = vpop.f32.mrb[0].mxu0
    %v241 = vadd.f32 %v157, %v240
    %242 = vdwg.mxu0
    %v243 = vmul.f32 %v233, 0.35355338
    %v244 = vmul.f32 %v239, 0.35355338
    %v245 = vxor.u32 %v233, 2147483648
    %v246 = vxor.u32 %v239, 2147483648
    %v247 = vmul.f32 %v245, 1.442695
    %v248 = vpow.pop %v247
    %v249 = vmul.f32 %v246, 1.442695
    %v250 = vpow.pop %v249
    %v251 = vadd.f32 %v248, 1.0
    %v252 = vadd.f32 %v250, 1.0
    %v253 = vrcp.pop %v251
    %v254 = vmul.f32 1.0, %v253
    %v255 = vrcp.pop %v252
    %v256 = vmul.f32 1.0, %v255
    %v257 = vxor.u32 %v235, 2147483648
    %v258 = vxor.u32 %v241, 2147483648
    %v259 = vmul.f32 %v257, 1.442695
    %v260 = vpow.pop %v259
    %v261 = vmul.f32 %v258, 1.442695
    %v262 = vpow.pop %v261
    %v263 = vadd.f32 %v260, 1.0
    %v264 = vadd.f32 %v262, 1.0
    %v265 = vrcp.pop %v263
    %v266 = vmul.f32 1.0, %v265
    %v267 = vrcp.pop %v264
    %v268 = vmul.f32 1.0, %v267
    %271 = vrot.lane.b32.xlu0 %v233, 96
    %v272 = vpop.permute.xlu0 %271
    %273 = vrot.lane.b32.xlu0 %v239, 96
    %v274 = vpop.permute.xlu0 %273
    %277 = vst.msk [vmem:[#allocation4] sm:$0xff] %vm96, %v272
    %278 = vst.msk [vmem:[#allocation4 + $0x8] sm:$0xff] %vm96, %v274
    %279 = vrot.lane.b32.xlu0 %v233, 64
    %v280 = vpop.permute.xlu0 %279
    %281 = vrot.lane.b32.xlu0 %v239, 64
    %v282 = vpop.permute.xlu0 %281
    %285 = vst.msk [vmem:[#allocation6] sm:$0xff] %vm96, %v280
    %286 = vst.msk [vmem:[#allocation6 + $0x8] sm:$0xff] %vm96, %v282
    %vm287 = vcmask 64512
    %v289 = vsel %vm287, %v243, 0
    %v292 = vsel %vm287, %v244, 0
    %v294 = vsel %vm287, %v272, 0
    %v296 = vsel %vm287, %v274, 0
    %298 = vmatprep.subr.mxu0 0.0
    %299 = vmatpush1.xpose.msra.mxu0 %v294
    %300 = vmatprep.subr.mxu0 0.0
    %301 = vmatpush1.xpose.msra.mxu0 %v296
    %302 = vmatprep.subr.mxu0 0.0
    %303 = vmatpush1.xpose.msra.mxu0 0.0
    %304 = vmatprep.subr.mxu0 0.0
    %305 = vmatpush1.xpose.msra.mxu0 0.0
    %306 = vmatprep.subr.mxu0 0.0
    %307 = vmatpush1.xpose.msra.mxu0 0.0
    %308 = vmatprep.subr.mxu0 0.0
    %309 = vmatpush1.xpose.msra.mxu0 0.0
    %310 = vmatprep.subr.mxu0 0.0
    %311 = vmatpush1.xpose.msra.mxu0 0.0
    %312 = vmatprep.subr.mxu0 0.0
    %313 = vmatpush1.xpose.msra.mxu0 0.0
    %314 = vmatprep.subr.mxu0 0.0
    %315 = vmatpush1.xpose.msra.mxu0 0.0
    %316 = vmatprep.subr.mxu0 0.0
    %317 = vmatpush1.xpose.msra.mxu0 0.0
    %318 = vmatprep.subr.mxu0 0.0
    %319 = vmatpush1.xpose.msra.mxu0 0.0
    %320 = vmatprep.subr.mxu0 0.0
    %321 = vmatpush1.xpose.msra.mxu0 0.0
    %322 = vmatprep.subr.mxu0 0.0
    %323 = vmatpush1.xpose.msra.mxu0 0.0
    %324 = vmatprep.subr.mxu0 0.0
    %325 = vmatpush1.xpose.msra.mxu0 0.0
    %326 = vmatprep.subr.mxu0 0.0
    %327 = vmatpush1.xpose.msra.mxu0 0.0
    %328 = vmatprep.subr.mxu0 0.0
    %329 = vmatpush1.xpose.msra.mxu0 0.0
    %330 = vmatprep.subr.mxu0 0.0
    %331 = vmatpush1.xpose.msra.mxu0 0.0
    %332 = vmatprep.subr.mxu0 0.0
    %333 = vmatpush1.xpose.msra.mxu0 0.0
    %334 = vmatprep.subr.mxu0 0.0
    %335 = vmatpush1.xpose.msra.mxu0 0.0
    %336 = vmatprep.subr.mxu0 0.0
    %337 = vmatpush1.xpose.msra.mxu0 0.0
    %338 = vmatprep.subr.mxu0 0.0
    %339 = vmatpush1.xpose.msra.mxu0 0.0
    %340 = vmatprep.subr.mxu0 0.0
    %341 = vmatpush1.xpose.msra.mxu0 0.0
    %342 = vmatprep.subr.mxu0 0.0
    %343 = vmatpush1.xpose.msra.mxu0 0.0
    %344 = vmatprep.subr.mxu0 0.0
    %345 = vmatpush1.xpose.msra.mxu0 0.0
    %346 = vmatprep.subr.mxu0 0.0
    %347 = vmatpush1.xpose.msra.mxu0 0.0
    %348 = vmatprep.subr.mxu0 0.0
    %349 = vmatpush1.xpose.msra.mxu0 0.0
    %350 = vmatprep.subr.mxu0 0.0
    %351 = vmatpush1.xpose.msra.mxu0 0.0
    %352 = vmatprep.subr.mxu0 0.0
    %353 = vmatpush1.xpose.msra.mxu0 0.0
    %354 = vmatprep.subr.mxu0 0.0
    %355 = vmatpush1.xpose.msra.mxu0 0.0
    %356 = vmatprep.subr.mxu0 0.0
    %357 = vmatpush1.xpose.msra.mxu0 0.0
    %358 = vmatprep.subr.mxu0 0.0
    %359 = vmatpush1.xpose.msra.mxu0 0.0
    %360 = vmatprep.subr.mxu0 0.0
    %361 = vmatpush1.xpose.msra.mxu0 0.0
    %362 = vmatprep.mubr.f32.mxu0 0.0
    %363 = vmatmul.mubr.f32.gmra.mrb[0].mxu0 %v289
    %v364 = vpop.f32.mrb[0].mxu0
    %v365 = vadd.f32 %v92, %v364
    %v366 = vpop.f32.mrb[0].mxu0
    %367 = vmatprep.mubr.f32.mxu0 0.0
    %368 = vmatmul.mubr.f32.gmra.mrb[0].mxu0 %v292
    %v369 = vpop.f32.mrb[0].mxu0
    %v370 = vadd.f32 %v93, %v369
    %v371 = vpop.f32.mrb[0].mxu0
    %372 = vdwg.mxu0
    %vm373 = vcmask 130048
    %v374 = vsel %vm373, %v365, -inf
    %375 = vmax.xlane.f32.xlu0 %v374
    %v376 = vpop.xlane.xlu0 %375
    %v377 = vsel %vm373, %v370, -inf
    %378 = vmax.xlane.f32.xlu0 %v377
    %v379 = vpop.xlane.xlu0 %378
    %v380 = vsub.f32 %v365, %v376
    %v381 = vsub.f32 %v370, %v379
    %v382 = vmul.f32 %v380, 1.442695
    %v383 = vpow.pop %v382
    %v384 = vmul.f32 %v381, 1.442695
    %v385 = vpow.pop %v384
    %v386 = vsel %vm373, %v383, 0.0
    %387 = vadd.xlane.f32.xlu0 %v386
    %v388 = vpop.xlane.xlu0 %387
    %v389 = vsel %vm373, %v385, 0.0
    %390 = vadd.xlane.f32.xlu0 %v389
    %v391 = vpop.xlane.xlu0 %390
    %v392 = vrcp.pop %v388
    %v393 = vmul.f32 %v383, %v392
    %v394 = vrcp.pop %v391
    %v395 = vmul.f32 %v385, %v394
    %v397 = vsel %vm373, %v393, 0
    %v400 = vsel %vm373, %v395, 0
    %402 = vmatprep.subr.mxu0 0.0
    %403 = vmatpush1.msra.mxu0 %v280
    %404 = vmatprep.subr.mxu0 0.0
    %405 = vmatpush1.msra.mxu0 %v282
    %406 = vmatprep.subr.mxu0 0.0
    %407 = vmatpush1.msra.mxu0 0.0
    %408 = vmatprep.subr.mxu0 0.0
    %409 = vmatpush1.msra.mxu0 0.0
    %410 = vmatprep.subr.mxu0 0.0
    %411 = vmatpush1.msra.mxu0 0.0
    %412 = vmatprep.subr.mxu0 0.0
    %413 = vmatpush1.msra.mxu0 0.0
    %414 = vmatprep.subr.mxu0 0.0
    %415 = vmatpush1.msra.mxu0 0.0
    %416 = vmatprep.subr.mxu0 0.0
    %417 = vmatpush1.msra.mxu0 0.0
    %418 = vmatprep.subr.mxu0 0.0
    %419 = vmatpush1.msra.mxu0 0.0
    %420 = vmatprep.subr.mxu0 0.0
    %421 = vmatpush1.msra.mxu0 0.0
    %422 = vmatprep.subr.mxu0 0.0
    %423 = vmatpush1.msra.mxu0 0.0
    %424 = vmatprep.subr.mxu0 0.0
    %425 = vmatpush1.msra.mxu0 0.0
    %426 = vmatprep.subr.mxu0 0.0
    %427 = vmatpush1.msra.mxu0 0.0
    %428 = vmatprep.subr.mxu0 0.0
    %429 = vmatpush1.msra.mxu0 0.0
    %430 = vmatprep.subr.mxu0 0.0
    %431 = vmatpush1.msra.mxu0 0.0
    %432 = vmatprep.subr.mxu0 0.0
    %433 = vmatpush1.msra.mxu0 0.0
    %434 = vmatprep.subr.mxu0 0.0
    %435 = vmatpush1.msra.mxu0 0.0
    %436 = vmatprep.subr.mxu0 0.0
    %437 = vmatpush1.msra.mxu0 0.0
    %438 = vmatprep.subr.mxu0 0.0
    %439 = vmatpush1.msra.mxu0 0.0
    %440 = vmatprep.subr.mxu0 0.0
    %441 = vmatpush1.msra.mxu0 0.0
    %442 = vmatprep.subr.mxu0 0.0
    %443 = vmatpush1.msra.mxu0 0.0
    %444 = vmatprep.subr.mxu0 0.0
    %445 = vmatpush1.msra.mxu0 0.0
    %446 = vmatprep.subr.mxu0 0.0
    %447 = vmatpush1.msra.mxu0 0.0
    %448 = vmatprep.subr.mxu0 0.0
    %449 = vmatpush1.msra.mxu0 0.0
    %450 = vmatprep.subr.mxu0 0.0
    %451 = vmatpush1.msra.mxu0 0.0
    %452 = vmatprep.subr.mxu0 0.0
    %453 = vmatpush1.msra.mxu0 0.0
    %454 = vmatprep.subr.mxu0 0.0
    %455 = vmatpush1.msra.mxu0 0.0
    %456 = vmatprep.subr.mxu0 0.0
    %457 = vmatpush1.msra.mxu0 0.0
    %458 = vmatprep.subr.mxu0 0.0
    %459 = vmatpush1.msra.mxu0 0.0
    %460 = vmatprep.subr.mxu0 0.0
    %461 = vmatpush1.msra.mxu0 0.0
    %462 = vmatprep.subr.mxu0 0.0
    %463 = vmatpush1.msra.mxu0 0.0
    %464 = vmatprep.subr.mxu0 0.0
    %465 = vmatpush1.msra.mxu0 0.0
    %466 = vmatprep.mubr.f32.mxu0 0.0
    %467 = vmatmul.mubr.f32.gmra.mrb[0].mxu0 %v397
    %v468 = vpop.f32.mrb[0].mxu0
    %v469 = vadd.f32 0.0, %v468
    %v470 = vpop.f32.mrb[0].mxu0
    %471 = vmatprep.mubr.f32.mxu0 0.0
    %472 = vmatmul.mubr.f32.gmra.mrb[0].mxu0 %v400
    %v473 = vpop.f32.mrb[0].mxu0
    %v474 = vadd.f32 0.0, %v473
    %v475 = vpop.f32.mrb[0].mxu0
    %476 = vdwg.mxu0
    %477 = vrot.lane.b32.xlu0 %v243, 120
    %v478 = vpop.permute.xlu0 %477
    %479 = vrot.lane.b32.xlu0 %v244, 120
    %v480 = vpop.permute.xlu0 %479
    %481 = vrot.lane.b32.xlu0 %v233, 88
    %v482 = vpop.permute.xlu0 %481
    %483 = vrot.lane.b32.xlu0 %v239, 88
    %v484 = vpop.permute.xlu0 %483
    %v485 = vsel %vm287, %v478, 0
    %v487 = vsel %vm287, %v480, 0
    %v489 = vsel %vm287, %v482, 0
    %v491 = vsel %vm287, %v484, 0
    %493 = vmatprep.subr.mxu0 0.0
    %494 = vmatpush1.xpose.msra.mxu0 %v489
    %495 = vmatprep.subr.mxu0 0.0
    %496 = vmatpush1.xpose.msra.mxu0 %v491
    %497 = vmatprep.subr.mxu0 0.0
    %498 = vmatpush1.xpose.msra.mxu0 0.0
    %499 = vmatprep.subr.mxu0 0.0
    %500 = vmatpush1.xpose.msra.mxu0 0.0
    %501 = vmatprep.subr.mxu0 0.0
    %502 = vmatpush1.xpose.msra.mxu0 0.0
    %503 = vmatprep.subr.mxu0 0.0
    %504 = vmatpush1.xpose.msra.mxu0 0.0
    %505 = vmatprep.subr.mxu0 0.0
    %506 = vmatpush1.xpose.msra.mxu0 0.0
    %507 = vmatprep.subr.mxu0 0.0
    %508 = vmatpush1.xpose.msra.mxu0 0.0
    %509 = vmatprep.subr.mxu0 0.0
    %510 = vmatpush1.xpose.msra.mxu0 0.0
    %511 = vmatprep.subr.mxu0 0.0
    %512 = vmatpush1.xpose.msra.mxu0 0.0
    %513 = vmatprep.subr.mxu0 0.0
    %514 = vmatpush1.xpose.msra.mxu0 0.0
    %515 = vmatprep.subr.mxu0 0.0
    %516 = vmatpush1.xpose.msra.mxu0 0.0
    %517 = vmatprep.subr.mxu0 0.0
    %518 = vmatpush1.xpose.msra.mxu0 0.0
    %519 = vmatprep.subr.mxu0 0.0
    %520 = vmatpush1.xpose.msra.mxu0 0.0
    %521 = vmatprep.subr.mxu0 0.0
    %522 = vmatpush1.xpose.msra.mxu0 0.0
    %523 = vmatprep.subr.mxu0 0.0
    %524 = vmatpush1.xpose.msra.mxu0 0.0
    %525 = vmatprep.subr.mxu0 0.0
    %526 = vmatpush1.xpose.msra.mxu0 0.0
    %527 = vmatprep.subr.mxu0 0.0
    %528 = vmatpush1.xpose.msra.mxu0 0.0
    %529 = vmatprep.subr.mxu0 0.0
    %530 = vmatpush1.xpose.msra.mxu0 0.0
    %531 = vmatprep.subr.mxu0 0.0
    %532 = vmatpush1.xpose.msra.mxu0 0.0
    %533 = vmatprep.subr.mxu0 0.0
    %534 = vmatpush1.xpose.msra.mxu0 0.0
    %535 = vmatprep.subr.mxu0 0.0
    %536 = vmatpush1.xpose.msra.mxu0 0.0
    %537 = vmatprep.subr.mxu0 0.0
    %538 = vmatpush1.xpose.msra.mxu0 0.0
    %539 = vmatprep.subr.mxu0 0.0
    %540 = vmatpush1.xpose.msra.mxu0 0.0
    %541 = vmatprep.subr.mxu0 0.0
    %542 = vmatpush1.xpose.msra.mxu0 0.0
    %543 = vmatprep.subr.mxu0 0.0
    %544 = vmatpush1.xpose.msra.mxu0 0.0
    %545 = vmatprep.subr.mxu0 0.0
    %546 = vmatpush1.xpose.msra.mxu0 0.0
    %547 = vmatprep.subr.mxu0 0.0
    %548 = vmatpush1.xpose.msra.mxu0 0.0
    %549 = vmatprep.subr.mxu0 0.0
    %550 = vmatpush1.xpose.msra.mxu0 0.0
    %551 = vmatprep.subr.mxu0 0.0
    %552 = vmatpush1.xpose.msra.mxu0 0.0
    %553 = vmatprep.subr.mxu0 0.0
    %554 = vmatpush1.xpose.msra.mxu0 0.0
    %555 = vmatprep.subr.mxu0 0.0
    %556 = vmatpush1.xpose.msra.mxu0 0.0
    %557 = vmatprep.mubr.f32.mxu0 0.0
    %558 = vmatmul.mubr.f32.gmra.mrb[0].mxu0 %v485
    %v559 = vpop.f32.mrb[0].mxu0
    %v560 = vadd.f32 %v92, %v559
    %v561 = vpop.f32.mrb[0].mxu0
    %562 = vmatprep.mubr.f32.mxu0 0.0
    %563 = vmatmul.mubr.f32.gmra.mrb[0].mxu0 %v487
    %v564 = vpop.f32.mrb[0].mxu0
    %v565 = vadd.f32 %v93, %v564
    %v566 = vpop.f32.mrb[0].mxu0
    %567 = vdwg.mxu0
    %v568 = vsel %vm373, %v560, -inf
    %569 = vmax.xlane.f32.xlu0 %v568
    %v570 = vpop.xlane.xlu0 %569
    %v571 = vsel %vm373, %v565, -inf
    %572 = vmax.xlane.f32.xlu0 %v571
    %v573 = vpop.xlane.xlu0 %572
    %v574 = vsub.f32 %v560, %v570
    %v575 = vsub.f32 %v565, %v573
    %v576 = vmul.f32 %v574, 1.442695
    %v577 = vpow.pop %v576
    %v578 = vmul.f32 %v575, 1.442695
    %v579 = vpow.pop %v578
    %v580 = vsel %vm373, %v577, 0.0
    %581 = vadd.xlane.f32.xlu0 %v580
    %v582 = vpop.xlane.xlu0 %581
    %v583 = vsel %vm373, %v579, 0.0
    %584 = vadd.xlane.f32.xlu0 %v583
    %v585 = vpop.xlane.xlu0 %584
    %v586 = vrcp.pop %v582
    %v587 = vmul.f32 %v577, %v586
    %v588 = vrcp.pop %v585
    %v589 = vmul.f32 %v579, %v588
    %590 = vrot.lane.b32.xlu0 %v233, 56
    %v591 = vpop.permute.xlu0 %590
    %592 = vrot.lane.b32.xlu0 %v239, 56
    %v593 = vpop.permute.xlu0 %592
    %v597 = vsel %vm373, %v587, 0
    %v600 = vsel %vm373, %v589, 0
    %602 = vmatprep.subr.mxu0 0.0
    %603 = vmatpush1.msra.mxu0 %v591
    %604 = vmatprep.subr.mxu0 0.0
    %605 = vmatpush1.msra.mxu0 %v593
    %606 = vmatprep.subr.mxu0 0.0
    %607 = vmatpush1.msra.mxu0 0.0
    %608 = vmatprep.subr.mxu0 0.0
    %609 = vmatpush1.msra.mxu0 0.0
    %610 = vmatprep.subr.mxu0 0.0
    %611 = vmatpush1.msra.mxu0 0.0
    %612 = vmatprep.subr.mxu0 0.0
    %613 = vmatpush1.msra.mxu0 0.0
    %614 = vmatprep.subr.mxu0 0.0
    %615 = vmatpush1.msra.mxu0 0.0
    %616 = vmatprep.subr.mxu0 0.0
    %617 = vmatpush1.msra.mxu0 0.0
    %618 = vmatprep.subr.mxu0 0.0
    %619 = vmatpush1.msra.mxu0 0.0
    %620 = vmatprep.subr.mxu0 0.0
    %621 = vmatpush1.msra.mxu0 0.0
    %622 = vmatprep.subr.mxu0 0.0
    %623 = vmatpush1.msra.mxu0 0.0
    %624 = vmatprep.subr.mxu0 0.0
    %625 = vmatpush1.msra.mxu0 0.0
    %626 = vmatprep.subr.mxu0 0.0
    %627 = vmatpush1.msra.mxu0 0.0
    %628 = vmatprep.subr.mxu0 0.0
    %629 = vmatpush1.msra.mxu0 0.0
    %630 = vmatprep.subr.mxu0 0.0
    %631 = vmatpush1.msra.mxu0 0.0
    %632 = vmatprep.subr.mxu0 0.0
    %633 = vmatpush1.msra.mxu0 0.0
    %634 = vmatprep.subr.mxu0 0.0
    %635 = vmatpush1.msra.mxu0 0.0
    %636 = vmatprep.subr.mxu0 0.0
    %637 = vmatpush1.msra.mxu0 0.0
    %638 = vmatprep.subr.mxu0 0.0
    %639 = vmatpush1.msra.mxu0 0.0
    %640 = vmatprep.subr.mxu0 0.0
    %641 = vmatpush1.msra.mxu0 0.0
    %642 = vmatprep.subr.mxu0 0.0
    %643 = vmatpush1.msra.mxu0 0.0
    %644 = vmatprep.subr.mxu0 0.0
    %645 = vmatpush1.msra.mxu0 0.0
    %646 = vmatprep.subr.mxu0 0.0
    %647 = vmatpush1.msra.mxu0 0.0
    %648 = vmatprep.subr.mxu0 0.0
    %649 = vmatpush1.msra.mxu0 0.0
    %650 = vmatprep.subr.mxu0 0.0
    %651 = vmatpush1.msra.mxu0 0.0
    %652 = vmatprep.subr.mxu0 0.0
    %653 = vmatpush1.msra.mxu0 0.0
    %654 = vmatprep.subr.mxu0 0.0
    %655 = vmatpush1.msra.mxu0 0.0
    %656 = vmatprep.subr.mxu0 0.0
    %657 = vmatpush1.msra.mxu0 0.0
    %658 = vmatprep.subr.mxu0 0.0
    %659 = vmatpush1.msra.mxu0 0.0
    %660 = vmatprep.subr.mxu0 0.0
    %661 = vmatpush1.msra.mxu0 0.0
    %662 = vmatprep.subr.mxu0 0.0
    %663 = vmatpush1.msra.mxu0 0.0
    %664 = vmatprep.subr.mxu0 0.0
    %665 = vmatpush1.msra.mxu0 0.0
    %666 = vmatprep.mubr.f32.mxu0 0.0
    %667 = vmatmul.mubr.f32.gmra.mrb[0].mxu0 %v597
    %v668 = vpop.f32.mrb[0].mxu0
    %v669 = vadd.f32 0.0, %v668
    %v670 = vpop.f32.mrb[0].mxu0
    %671 = vmatprep.mubr.f32.mxu0 0.0
    %672 = vmatmul.mubr.f32.gmra.mrb[0].mxu0 %v600
    %v673 = vpop.f32.mrb[0].mxu0
    %v674 = vadd.f32 0.0, %v673
    %v675 = vpop.f32.mrb[0].mxu0
    %676 = vdwg.mxu0
    %677 = vrot.lane.b32.xlu0 %v243, 112
    %v678 = vpop.permute.xlu0 %677
    %679 = vrot.lane.b32.xlu0 %v244, 112
    %v680 = vpop.permute.xlu0 %679
    %681 = vrot.lane.b32.xlu0 %v233, 80
    %v682 = vpop.permute.xlu0 %681
    %683 = vrot.lane.b32.xlu0 %v239, 80
    %v684 = vpop.permute.xlu0 %683
    %v685 = vsel %vm287, %v678, 0
    %v687 = vsel %vm287, %v680, 0
    %v689 = vsel %vm287, %v682, 0
    %v691 = vsel %vm287, %v684, 0
    %693 = vmatprep.subr.mxu0 0.0
    %694 = vmatpush1.xpose.msra.mxu0 %v689
    %695 = vmatprep.subr.mxu0 0.0
    %696 = vmatpush1.xpose.msra.mxu0 %v691
    %697 = vmatprep.subr.mxu0 0.0
    %698 = vmatpush1.xpose.msra.mxu0 0.0
    %699 = vmatprep.subr.mxu0 0.0
    %700 = vmatpush1.xpose.msra.mxu0 0.0
    %701 = vmatprep.subr.mxu0 0.0
    %702 = vmatpush1.xpose.msra.mxu0 0.0
    %703 = vmatprep.subr.mxu0 0.0
    %704 = vmatpush1.xpose.msra.mxu0 0.0
    %705 = vmatprep.subr.mxu0 0.0
    %706 = vmatpush1.xpose.msra.mxu0 0.0
    %707 = vmatprep.subr.mxu0 0.0
    %708 = vmatpush1.xpose.msra.mxu0 0.0
    %709 = vmatprep.subr.mxu0 0.0
    %710 = vmatpush1.xpose.msra.mxu0 0.0
    %711 = vmatprep.subr.mxu0 0.0
    %712 = vmatpush1.xpose.msra.mxu0 0.0
    %713 = vmatprep.subr.mxu0 0.0
    %714 = vmatpush1.xpose.msra.mxu0 0.0
    %715 = vmatprep.subr.mxu0 0.0
    %716 = vmatpush1.xpose.msra.mxu0 0.0
    %717 = vmatprep.subr.mxu0 0.0
    %718 = vmatpush1.xpose.msra.mxu0 0.0
    %719 = vmatprep.subr.mxu0 0.0
    %720 = vmatpush1.xpose.msra.mxu0 0.0
    %721 = vmatprep.subr.mxu0 0.0
    %722 = vmatpush1.xpose.msra.mxu0 0.0
    %723 = vmatprep.subr.mxu0 0.0
    %724 = vmatpush1.xpose.msra.mxu0 0.0
    %725 = vmatprep.subr.mxu0 0.0
    %726 = vmatpush1.xpose.msra.mxu0 0.0
    %727 = vmatprep.subr.mxu0 0.0
    %728 = vmatpush1.xpose.msra.mxu0 0.0
    %729 = vmatprep.subr.mxu0 0.0
    %730 = vmatpush1.xpose.msra.mxu0 0.0
    %731 = vmatprep.subr.mxu0 0.0
    %732 = vmatpush1.xpose.msra.mxu0 0.0
    %733 = vmatprep.subr.mxu0 0.0
    %734 = vmatpush1.xpose.msra.mxu0 0.0
    %735 = vmatprep.subr.mxu0 0.0
    %736 = vmatpush1.xpose.msra.mxu0 0.0
    %737 = vmatprep.subr.mxu0 0.0
    %738 = vmatpush1.xpose.msra.mxu0 0.0
    %739 = vmatprep.subr.mxu0 0.0
    %740 = vmatpush1.xpose.msra.mxu0 0.0
    %741 = vmatprep.subr.mxu0 0.0
    %742 = vmatpush1.xpose.msra.mxu0 0.0
    %743 = vmatprep.subr.mxu0 0.0
    %744 = vmatpush1.xpose.msra.mxu0 0.0
    %745 = vmatprep.subr.mxu0 0.0
    %746 = vmatpush1.xpose.msra.mxu0 0.0
    %747 = vmatprep.subr.mxu0 0.0
    %748 = vmatpush1.xpose.msra.mxu0 0.0
    %749 = vmatprep.subr.mxu0 0.0
    %750 = vmatpush1.xpose.msra.mxu0 0.0
    %751 = vmatprep.subr.mxu0 0.0
    %752 = vmatpush1.xpose.msra.mxu0 0.0
    %753 = vmatprep.subr.mxu0 0.0
    %754 = vmatpush1.xpose.msra.mxu0 0.0
    %755 = vmatprep.subr.mxu0 0.0
    %756 = vmatpush1.xpose.msra.mxu0 0.0
    %757 = vmatprep.mubr.f32.mxu0 0.0
    %758 = vmatmul.mubr.f32.gmra.mrb[0].mxu0 %v685
    %v759 = vpop.f32.mrb[0].mxu0
    %v760 = vadd.f32 %v92, %v759
    %v761 = vpop.f32.mrb[0].mxu0
    %762 = vmatprep.mubr.f32.mxu0 0.0
    %763 = vmatmul.mubr.f32.gmra.mrb[0].mxu0 %v687
    %v764 = vpop.f32.mrb[0].mxu0
    %v765 = vadd.f32 %v93, %v764
    %v766 = vpop.f32.mrb[0].mxu0
    %767 = vdwg.mxu0
    %v768 = vsel %vm373, %v760, -inf
    %769 = vmax.xlane.f32.xlu0 %v768
    %v770 = vpop.xlane.xlu0 %769
    %v771 = vsel %vm373, %v765, -inf
    %772 = vmax.xlane.f32.xlu0 %v771
    %v773 = vpop.xlane.xlu0 %772
    %v774 = vsub.f32 %v760, %v770
    %v775 = vsub.f32 %v765, %v773
    %v776 = vmul.f32 %v774, 1.442695
    %v777 = vpow.pop %v776
    %v778 = vmul.f32 %v775, 1.442695
    %v779 = vpow.pop %v778
    %v780 = vsel %vm373, %v777, 0.0
    %781 = vadd.xlane.f32.xlu0 %v780
    %v782 = vpop.xlane.xlu0 %781
    %v783 = vsel %vm373, %v779, 0.0
    %784 = vadd.xlane.f32.xlu0 %v783
    %v785 = vpop.xlane.xlu0 %784
    %v786 = vrcp.pop %v782
    %v787 = vmul.f32 %v777, %v786
    %v788 = vrcp.pop %v785
    %v789 = vmul.f32 %v779, %v788
    %790 = vrot.lane.b32.xlu0 %v233, 48
    %v791 = vpop.permute.xlu0 %790
    %792 = vrot.lane.b32.xlu0 %v239, 48
    %v793 = vpop.permute.xlu0 %792
    %v797 = vsel %vm373, %v787, 0
    %v800 = vsel %vm373, %v789, 0
    %802 = vmatprep.subr.mxu0 0.0
    %803 = vmatpush1.msra.mxu0 %v791
    %804 = vmatprep.subr.mxu0 0.0
    %805 = vmatpush1.msra.mxu0 %v793
    %806 = vmatprep.subr.mxu0 0.0
    %807 = vmatpush1.msra.mxu0 0.0
    %808 = vmatprep.subr.mxu0 0.0
    %809 = vmatpush1.msra.mxu0 0.0
    %810 = vmatprep.subr.mxu0 0.0
    %811 = vmatpush1.msra.mxu0 0.0
    %812 = vmatprep.subr.mxu0 0.0
    %813 = vmatpush1.msra.mxu0 0.0
    %814 = vmatprep.subr.mxu0 0.0
    %815 = vmatpush1.msra.mxu0 0.0
    %816 = vmatprep.subr.mxu0 0.0
    %817 = vmatpush1.msra.mxu0 0.0
    %818 = vmatprep.subr.mxu0 0.0
    %819 = vmatpush1.msra.mxu0 0.0
    %820 = vmatprep.subr.mxu0 0.0
    %821 = vmatpush1.msra.mxu0 0.0
    %822 = vmatprep.subr.mxu0 0.0
    %823 = vmatpush1.msra.mxu0 0.0
    %824 = vmatprep.subr.mxu0 0.0
    %825 = vmatpush1.msra.mxu0 0.0
    %826 = vmatprep.subr.mxu0 0.0
    %827 = vmatpush1.msra.mxu0 0.0
    %828 = vmatprep.subr.mxu0 0.0
    %829 = vmatpush1.msra.mxu0 0.0
    %830 = vmatprep.subr.mxu0 0.0
    %831 = vmatpush1.msra.mxu0 0.0
    %832 = vmatprep.subr.mxu0 0.0
    %833 = vmatpush1.msra.mxu0 0.0
    %834 = vmatprep.subr.mxu0 0.0
    %835 = vmatpush1.msra.mxu0 0.0
    %836 = vmatprep.subr.mxu0 0.0
    %837 = vmatpush1.msra.mxu0 0.0
    %838 = vmatprep.subr.mxu0 0.0
    %839 = vmatpush1.msra.mxu0 0.0
    %840 = vmatprep.subr.mxu0 0.0
    %841 = vmatpush1.msra.mxu0 0.0
    %842 = vmatprep.subr.mxu0 0.0
    %843 = vmatpush1.msra.mxu0 0.0
    %844 = vmatprep.subr.mxu0 0.0
    %845 = vmatpush1.msra.mxu0 0.0
    %846 = vmatprep.subr.mxu0 0.0
    %847 = vmatpush1.msra.mxu0 0.0
    %848 = vmatprep.subr.mxu0 0.0
    %849 = vmatpush1.msra.mxu0 0.0
    %850 = vmatprep.subr.mxu0 0.0
    %851 = vmatpush1.msra.mxu0 0.0
    %852 = vmatprep.subr.mxu0 0.0
    %853 = vmatpush1.msra.mxu0 0.0
    %854 = vmatprep.subr.mxu0 0.0
    %855 = vmatpush1.msra.mxu0 0.0
    %856 = vmatprep.subr.mxu0 0.0
    %857 = vmatpush1.msra.mxu0 0.0
    %858 = vmatprep.subr.mxu0 0.0
    %859 = vmatpush1.msra.mxu0 0.0
    %860 = vmatprep.subr.mxu0 0.0
    %861 = vmatpush1.msra.mxu0 0.0
    %862 = vmatprep.subr.mxu0 0.0
    %863 = vmatpush1.msra.mxu0 0.0
    %864 = vmatprep.subr.mxu0 0.0
    %865 = vmatpush1.msra.mxu0 0.0
    %866 = vmatprep.mubr.f32.mxu0 0.0
    %867 = vmatmul.mubr.f32.gmra.mrb[0].mxu0 %v797
    %v868 = vpop.f32.mrb[0].mxu0
    %v869 = vadd.f32 0.0, %v868
    %v870 = vpop.f32.mrb[0].mxu0
    %871 = vmatprep.mubr.f32.mxu0 0.0
    %872 = vmatmul.mubr.f32.gmra.mrb[0].mxu0 %v800
    %v873 = vpop.f32.mrb[0].mxu0
    %v874 = vadd.f32 0.0, %v873
    %v875 = vpop.f32.mrb[0].mxu0
    %876 = vdwg.mxu0
    %877 = vrot.lane.b32.xlu0 %v243, 104
    %v878 = vpop.permute.xlu0 %877
    %879 = vrot.lane.b32.xlu0 %v244, 104
    %v880 = vpop.permute.xlu0 %879
    %881 = vrot.lane.b32.xlu0 %v233, 72
    %v882 = vpop.permute.xlu0 %881
    %883 = vrot.lane.b32.xlu0 %v239, 72
    %v884 = vpop.permute.xlu0 %883
    %v885 = vsel %vm287, %v878, 0
    %v887 = vsel %vm287, %v880, 0
    %v889 = vsel %vm287, %v882, 0
    %v891 = vsel %vm287, %v884, 0
    %893 = vmatprep.subr.mxu0 0.0
    %894 = vmatpush1.xpose.msra.mxu0 %v889
    %895 = vmatprep.subr.mxu0 0.0
    %896 = vmatpush1.xpose.msra.mxu0 %v891
    %897 = vmatprep.subr.mxu0 0.0
    %898 = vmatpush1.xpose.msra.mxu0 0.0
    %899 = vmatprep.subr.mxu0 0.0
    %900 = vmatpush1.xpose.msra.mxu0 0.0
    %901 = vmatprep.subr.mxu0 0.0
    %902 = vmatpush1.xpose.msra.mxu0 0.0
    %903 = vmatprep.subr.mxu0 0.0
    %904 = vmatpush1.xpose.msra.mxu0 0.0
    %905 = vmatprep.subr.mxu0 0.0
    %906 = vmatpush1.xpose.msra.mxu0 0.0
    %907 = vmatprep.subr.mxu0 0.0
    %908 = vmatpush1.xpose.msra.mxu0 0.0
    %909 = vmatprep.subr.mxu0 0.0
    %910 = vmatpush1.xpose.msra.mxu0 0.0
    %911 = vmatprep.subr.mxu0 0.0
    %912 = vmatpush1.xpose.msra.mxu0 0.0
    %913 = vmatprep.subr.mxu0 0.0
    %914 = vmatpush1.xpose.msra.mxu0 0.0
    %915 = vmatprep.subr.mxu0 0.0
    %916 = vmatpush1.xpose.msra.mxu0 0.0
    %917 = vmatprep.subr.mxu0 0.0
    %918 = vmatpush1.xpose.msra.mxu0 0.0
    %919 = vmatprep.subr.mxu0 0.0
    %920 = vmatpush1.xpose.msra.mxu0 0.0
    %921 = vmatprep.subr.mxu0 0.0
    %922 = vmatpush1.xpose.msra.mxu0 0.0
    %923 = vmatprep.subr.mxu0 0.0
    %924 = vmatpush1.xpose.msra.mxu0 0.0
    %925 = vmatprep.subr.mxu0 0.0
    %926 = vmatpush1.xpose.msra.mxu0 0.0
    %927 = vmatprep.subr.mxu0 0.0
    %928 = vmatpush1.xpose.msra.mxu0 0.0
    %929 = vmatprep.subr.mxu0 0.0
    %930 = vmatpush1.xpose.msra.mxu0 0.0
    %931 = vmatprep.subr.mxu0 0.0
    %932 = vmatpush1.xpose.msra.mxu0 0.0
    %933 = vmatprep.subr.mxu0 0.0
    %934 = vmatpush1.xpose.msra.mxu0 0.0
    %935 = vmatprep.subr.mxu0 0.0
    %936 = vmatpush1.xpose.msra.mxu0 0.0
    %937 = vmatprep.subr.mxu0 0.0
    %938 = vmatpush1.xpose.msra.mxu0 0.0
    %939 = vmatprep.subr.mxu0 0.0
    %940 = vmatpush1.xpose.msra.mxu0 0.0
    %941 = vmatprep.subr.mxu0 0.0
    %942 = vmatpush1.xpose.msra.mxu0 0.0
    %943 = vmatprep.subr.mxu0 0.0
    %944 = vmatpush1.xpose.msra.mxu0 0.0
    %945 = vmatprep.subr.mxu0 0.0
    %946 = vmatpush1.xpose.msra.mxu0 0.0
    %947 = vmatprep.subr.mxu0 0.0
    %948 = vmatpush1.xpose.msra.mxu0 0.0
    %949 = vmatprep.subr.mxu0 0.0
    %950 = vmatpush1.xpose.msra.mxu0 0.0
    %951 = vmatprep.subr.mxu0 0.0
    %952 = vmatpush1.xpose.msra.mxu0 0.0
    %953 = vmatprep.subr.mxu0 0.0
    %954 = vmatpush1.xpose.msra.mxu0 0.0
    %955 = vmatprep.subr.mxu0 0.0
    %956 = vmatpush1.xpose.msra.mxu0 0.0
    %957 = vmatprep.mubr.f32.mxu0 0.0
    %958 = vmatmul.mubr.f32.gmra.mrb[0].mxu0 %v885
    %v959 = vpop.f32.mrb[0].mxu0
    %v960 = vadd.f32 %v92, %v959
    %v961 = vpop.f32.mrb[0].mxu0
    %962 = vmatprep.mubr.f32.mxu0 0.0
    %963 = vmatmul.mubr.f32.gmra.mrb[0].mxu0 %v887
    %v964 = vpop.f32.mrb[0].mxu0
    %v965 = vadd.f32 %v93, %v964
    %v966 = vpop.f32.mrb[0].mxu0
    %967 = vdwg.mxu0
    %v968 = vsel %vm373, %v960, -inf
    %969 = vmax.xlane.f32.xlu0 %v968
    %v970 = vpop.xlane.xlu0 %969
    %v971 = vsel %vm373, %v965, -inf
    %972 = vmax.xlane.f32.xlu0 %v971
    %v973 = vpop.xlane.xlu0 %972
    %v974 = vsub.f32 %v960, %v970
    %v975 = vsub.f32 %v965, %v973
    %v976 = vmul.f32 %v974, 1.442695
    %v977 = vpow.pop %v976
    %v978 = vmul.f32 %v975, 1.442695
    %v979 = vpow.pop %v978
    %v980 = vsel %vm373, %v977, 0.0
    %981 = vadd.xlane.f32.xlu0 %v980
    %v982 = vpop.xlane.xlu0 %981
    %v983 = vsel %vm373, %v979, 0.0
    %984 = vadd.xlane.f32.xlu0 %v983
    %v985 = vpop.xlane.xlu0 %984
    %v986 = vrcp.pop %v982
    %v987 = vmul.f32 %v977, %v986
    %v988 = vrcp.pop %v985
    %v989 = vmul.f32 %v979, %v988
    %990 = vrot.lane.b32.xlu0 %v233, 40
    %v991 = vpop.permute.xlu0 %990
    %992 = vrot.lane.b32.xlu0 %v239, 40
    %v993 = vpop.permute.xlu0 %992
    %v997 = vsel %vm373, %v987, 0
    %v1000 = vsel %vm373, %v989, 0
    %1002 = vmatprep.subr.mxu0 0.0
    %1003 = vmatpush1.msra.mxu0 %v991
    %1004 = vmatprep.subr.mxu0 0.0
    %1005 = vmatpush1.msra.mxu0 %v993
    %1006 = vmatprep.subr.mxu0 0.0
    %1007 = vmatpush1.msra.mxu0 0.0
    %1008 = vmatprep.subr.mxu0 0.0
    %1009 = vmatpush1.msra.mxu0 0.0
    %1010 = vmatprep.subr.mxu0 0.0
    %1011 = vmatpush1.msra.mxu0 0.0
    %1012 = vmatprep.subr.mxu0 0.0
    %1013 = vmatpush1.msra.mxu0 0.0
    %1014 = vmatprep.subr.mxu0 0.0
    %1015 = vmatpush1.msra.mxu0 0.0
    %1016 = vmatprep.subr.mxu0 0.0
    %1017 = vmatpush1.msra.mxu0 0.0
    %1018 = vmatprep.subr.mxu0 0.0
    %1019 = vmatpush1.msra.mxu0 0.0
    %1020 = vmatprep.subr.mxu0 0.0
    %1021 = vmatpush1.msra.mxu0 0.0
    %1022 = vmatprep.subr.mxu0 0.0
    %1023 = vmatpush1.msra.mxu0 0.0
    %1024 = vmatprep.subr.mxu0 0.0
    %1025 = vmatpush1.msra.mxu0 0.0
    %1026 = vmatprep.subr.mxu0 0.0
    %1027 = vmatpush1.msra.mxu0 0.0
    %1028 = vmatprep.subr.mxu0 0.0
    %1029 = vmatpush1.msra.mxu0 0.0
    %1030 = vmatprep.subr.mxu0 0.0
    %1031 = vmatpush1.msra.mxu0 0.0
    %1032 = vmatprep.subr.mxu0 0.0
    %1033 = vmatpush1.msra.mxu0 0.0
    %1034 = vmatprep.subr.mxu0 0.0
    %1035 = vmatpush1.msra.mxu0 0.0
    %1036 = vmatprep.subr.mxu0 0.0
    %1037 = vmatpush1.msra.mxu0 0.0
    %1038 = vmatprep.subr.mxu0 0.0
    %1039 = vmatpush1.msra.mxu0 0.0
    %1040 = vmatprep.subr.mxu0 0.0
    %1041 = vmatpush1.msra.mxu0 0.0
    %1042 = vmatprep.subr.mxu0 0.0
    %1043 = vmatpush1.msra.mxu0 0.0
    %1044 = vmatprep.subr.mxu0 0.0
    %1045 = vmatpush1.msra.mxu0 0.0
    %1046 = vmatprep.subr.mxu0 0.0
    %1047 = vmatpush1.msra.mxu0 0.0
    %1048 = vmatprep.subr.mxu0 0.0
    %1049 = vmatpush1.msra.mxu0 0.0
    %1050 = vmatprep.subr.mxu0 0.0
    %1051 = vmatpush1.msra.mxu0 0.0
    %1052 = vmatprep.subr.mxu0 0.0
    %1053 = vmatpush1.msra.mxu0 0.0
    %1054 = vmatprep.subr.mxu0 0.0
    %1055 = vmatpush1.msra.mxu0 0.0
    %1056 = vmatprep.subr.mxu0 0.0
    %1057 = vmatpush1.msra.mxu0 0.0
    %1058 = vmatprep.subr.mxu0 0.0
    %1059 = vmatpush1.msra.mxu0 0.0
    %1060 = vmatprep.subr.mxu0 0.0
    %1061 = vmatpush1.msra.mxu0 0.0
    %1062 = vmatprep.subr.mxu0 0.0
    %1063 = vmatpush1.msra.mxu0 0.0
    %1064 = vmatprep.subr.mxu0 0.0
    %1065 = vmatpush1.msra.mxu0 0.0
    %1066 = vmatprep.mubr.f32.mxu0 0.0
    %1067 = vmatmul.mubr.f32.gmra.mrb[0].mxu0 %v997
    %v1068 = vpop.f32.mrb[0].mxu0
    %v1069 = vadd.f32 0.0, %v1068
    %v1070 = vpop.f32.mrb[0].mxu0
    %1071 = vmatprep.mubr.f32.mxu0 0.0
    %1072 = vmatmul.mubr.f32.gmra.mrb[0].mxu0 %v1000
    %v1073 = vpop.f32.mrb[0].mxu0
    %v1074 = vadd.f32 0.0, %v1073
    %v1075 = vpop.f32.mrb[0].mxu0
    %1076 = vdwg.mxu0
    %1079 = vrot.lane.b32.xlu0 %v669, 8
    %v1080 = vpop.permute.xlu0 %1079
    %1081 = vrot.lane.b32.xlu0 %v674, 8
    %v1082 = vpop.permute.xlu0 %1081
    %1087 = vrot.lane.b32.xlu0 %v869, 16
    %v1088 = vpop.permute.xlu0 %1087
    %1089 = vrot.lane.b32.xlu0 %v874, 16
    %v1090 = vpop.permute.xlu0 %1089
    %1095 = vrot.lane.b32.xlu0 %v1069, 24
    %v1096 = vpop.permute.xlu0 %1095
    %1097 = vrot.lane.b32.xlu0 %v1074, 24
    %v1098 = vpop.permute.xlu0 %1097
    %v1101 = vsel %vm287, %v469, %v1080
    %v1102 = vsel %vm287, %v474, %v1082
    %v1103 = vsel %vm373, %v1101, %v1088
    %v1104 = vsel %vm373, %v1102, %v1090
    %vm1105 = vcmask 195584
    %v1106 = vsel %vm1105, %v1103, %v1096
    %v1107 = vsel %vm1105, %v1104, %v1098
    %v1108 = vld [vmem:[%s5] sm:$0xff]
    %v1109 = vld [vmem:[%s5 + $0x8] sm:$0xff]
    %v1110 = vld [vmem:[%s5 + $0x10] sm:$0xff]
    %v1111 = vld [vmem:[%s5 + $0x18] sm:$0xff]
    %v1112 = vld [vmem:[%s6] sm:$0x1]
    %v1114 = vlaneseq
    %v1115 = vshrl.u32 %v1114, 7
    %v1116 = vsub.s32 0, %v1115
    %v1117 = vrot.slane %v1112, %v1116
    %v1120 = vsel %vm96, %v1106, 0
    %v1123 = vsel %vm96, %v1107, 0
    %1125 = vmatprep.subr.mxu0 0.0
    %1126 = vmatpush1.msra.mxu0 %v1108
    %1127 = vmatprep.subr.mxu0 0.0
    %1128 = vmatpush1.msra.mxu0 %v1109
    %1129 = vmatprep.subr.mxu0 0.0
    %1130 = vmatpush1.msra.mxu0 %v1110
    %1131 = vmatprep.subr.mxu0 0.0
    %1132 = vmatpush1.msra.mxu0 %v1111
    %1133 = vmatprep.subr.mxu0 0.0
    %1134 = vmatpush1.msra.mxu0 0.0
    %1135 = vmatprep.subr.mxu0 0.0
    %1136 = vmatpush1.msra.mxu0 0.0
    %1137 = vmatprep.subr.mxu0 0.0
    %1138 = vmatpush1.msra.mxu0 0.0
    %1139 = vmatprep.subr.mxu0 0.0
    %1140 = vmatpush1.msra.mxu0 0.0
    %1141 = vmatprep.subr.mxu0 0.0
    %1142 = vmatpush1.msra.mxu0 0.0
    %1143 = vmatprep.subr.mxu0 0.0
    %1144 = vmatpush1.msra.mxu0 0.0
    %1145 = vmatprep.subr.mxu0 0.0
    %1146 = vmatpush1.msra.mxu0 0.0
    %1147 = vmatprep.subr.mxu0 0.0
    %1148 = vmatpush1.msra.mxu0 0.0
    %1149 = vmatprep.subr.mxu0 0.0
    %1150 = vmatpush1.msra.mxu0 0.0
    %1151 = vmatprep.subr.mxu0 0.0
    %1152 = vmatpush1.msra.mxu0 0.0
    %1153 = vmatprep.subr.mxu0 0.0
    %1154 = vmatpush1.msra.mxu0 0.0
    %1155 = vmatprep.subr.mxu0 0.0
    %1156 = vmatpush1.msra.mxu0 0.0
    %1157 = vmatprep.subr.mxu0 0.0
    %1158 = vmatpush1.msra.mxu0 0.0
    %1159 = vmatprep.subr.mxu0 0.0
    %1160 = vmatpush1.msra.mxu0 0.0
    %1161 = vmatprep.subr.mxu0 0.0
    %1162 = vmatpush1.msra.mxu0 0.0
    %1163 = vmatprep.subr.mxu0 0.0
    %1164 = vmatpush1.msra.mxu0 0.0
    %1165 = vmatprep.subr.mxu0 0.0
    %1166 = vmatpush1.msra.mxu0 0.0
    %1167 = vmatprep.subr.mxu0 0.0
    %1168 = vmatpush1.msra.mxu0 0.0
    %1169 = vmatprep.subr.mxu0 0.0
    %1170 = vmatpush1.msra.mxu0 0.0
    %1171 = vmatprep.subr.mxu0 0.0
    %1172 = vmatpush1.msra.mxu0 0.0
    %1173 = vmatprep.subr.mxu0 0.0
    %1174 = vmatpush1.msra.mxu0 0.0
    %1175 = vmatprep.subr.mxu0 0.0
    %1176 = vmatpush1.msra.mxu0 0.0
    %1177 = vmatprep.subr.mxu0 0.0
    %1178 = vmatpush1.msra.mxu0 0.0
    %1179 = vmatprep.subr.mxu0 0.0
    %1180 = vmatpush1.msra.mxu0 0.0
    %1181 = vmatprep.subr.mxu0 0.0
    %1182 = vmatpush1.msra.mxu0 0.0
    %1183 = vmatprep.subr.mxu0 0.0
    %1184 = vmatpush1.msra.mxu0 0.0
    %1185 = vmatprep.subr.mxu0 0.0
    %1186 = vmatpush1.msra.mxu0 0.0
    %1187 = vmatprep.subr.mxu0 0.0
    %1188 = vmatpush1.msra.mxu0 0.0
    %1189 = vmatprep.mubr.f32.mxu0 0.0
    %1190 = vmatmul.mubr.f32.gmra.mrb[0].mxu0 %v1120
    %v1191 = vpop.f32.mrb[0].mxu0
    %v1192 = vadd.f32 %v1117, %v1191
    %v1193 = vpop.f32.mrb[0].mxu0
    %1194 = vmatprep.mubr.f32.mxu0 0.0
    %1195 = vmatmul.mubr.f32.gmra.mrb[0].mxu0 %v1123
    %v1196 = vpop.f32.mrb[0].mxu0
    %v1197 = vadd.f32 %v1117, %v1196
    %v1198 = vpop.f32.mrb[0].mxu0
    %1199 = vdwg.mxu0
    %v1200 = vmul.f32 %v266, %v1192
    %v1201 = vmul.f32 %v268, %v1197
    %v1202 = vtanh.pop %v1200
    %v1203 = vtanh.pop %v1201
    %v1204 = vsub.f32 1.0, %v254
    %v1205 = vsub.f32 1.0, %v256
    %1208 = vrot.lane.b32.xlu0 %v55, 96
    %v1209 = vpop.permute.xlu0 %1208
    %1210 = vrot.lane.b32.xlu0 %v56, 96
    %v1211 = vpop.permute.xlu0 %1210
    %v1214 = vmul.f32 %v1204, %v1209
    %v1215 = vmul.f32 %v1205, %v1211
    %1218 = vrot.lane.b32.xlu0 %v1202, 96
    %v1219 = vpop.permute.xlu0 %1218
    %1220 = vrot.lane.b32.xlu0 %v1203, 96
    %v1221 = vpop.permute.xlu0 %1220
    %v1224 = vmul.f32 %v254, %v1219
    %v1225 = vmul.f32 %v256, %v1221
    %v1226 = vadd.f32 %v1214, %v1224
    %v1227 = vadd.f32 %v1215, %v1225
    %v1228 = vld [vmem:[%s7] sm:$0x1]
    %v1229 = vld [vmem:[%s8] sm:$0x1]
    %1232 = vrot.lane.b32.xlu0 %v1226, 32
    %v1233 = vpop.permute.xlu0 %1232
    %1234 = vrot.lane.b32.xlu0 %v1227, 32
    %v1235 = vpop.permute.xlu0 %1234
    %v1238 = vsel %vm96, %v1233, 0.0
    %1239 = vadd.xlane.f32.xlu0 %v1238
    %v1240 = vpop.xlane.xlu0 %1239
    %v1241 = vsel %vm96, %v1235, 0.0
    %1242 = vadd.xlane.f32.xlu0 %v1241
    %v1243 = vpop.xlane.xlu0 %1242
    %v1244 = vmul.f32 %v1240, %v103
    %v1245 = vmul.f32 %v1243, %v103
    %v1246 = vsub.f32 %v1226, %v1244
    %v1247 = vsub.f32 %v1227, %v1245
    %v1248 = vmul.f32 %v1246, %v1246
    %v1249 = vmul.f32 %v1247, %v1247
    %1252 = vrot.lane.b32.xlu0 %v1248, 32
    %v1253 = vpop.permute.xlu0 %1252
    %1254 = vrot.lane.b32.xlu0 %v1249, 32
    %v1255 = vpop.permute.xlu0 %1254
    %v1258 = vsel %vm96, %v1253, 0.0
    %1259 = vadd.xlane.f32.xlu0 %v1258
    %v1260 = vpop.xlane.xlu0 %1259
    %v1261 = vsel %vm96, %v1255, 0.0
    %1262 = vadd.xlane.f32.xlu0 %v1261
    %v1263 = vpop.xlane.xlu0 %1262
    %v1264 = vmul.f32 %v1260, %v103
    %v1265 = vmul.f32 %v1263, %v103
    %v1266 = vadd.f32 %v1264, 1e-05
    %v1267 = vadd.f32 %v1265, 1e-05
    %v1268 = vrsqrt.pop %v1266
    %v1269 = vrsqrt.pop %v1267
    %v1270 = vmul.f32 %v1246, %v1268
    %v1271 = vmul.f32 %v1247, %v1269
    %v1273 = vlaneseq
    %v1274 = vshrl.u32 %v1273, 7
    %v1275 = vsub.s32 0, %v1274
    %v1276 = vrot.slane %v1228, %v1275
    %1277 = vrot.lane.b32.xlu0 %v1276, 96
    %v1278 = vpop.permute.xlu0 %1277
    %v1280 = vmul.f32 %v1270, %v1278
    %v1281 = vmul.f32 %v1271, %v1278
    %v1283 = vlaneseq
    %v1284 = vshrl.u32 %v1283, 7
    %v1285 = vsub.s32 0, %v1284
    %v1286 = vrot.slane %v1229, %v1285
    %1287 = vrot.lane.b32.xlu0 %v1286, 96
    %v1288 = vpop.permute.xlu0 %1287
    %v1290 = vadd.f32 %v1280, %v1288
    %v1291 = vadd.f32 %v1281, %v1288
    %v1292 = vld [vmem:[%s9] sm:$0xff]
    %v1293 = vld [vmem:[%s9 + $0x8] sm:$0xff]
    %v1294 = vld [vmem:[%s9 + $0x10] sm:$0xff]
    %v1295 = vld [vmem:[%s9 + $0x18] sm:$0xff]
    %v1296 = vld [vmem:[%s10] sm:$0x1]
    %v1298 = vlaneseq
    %v1299 = vshrl.u32 %v1298, 7
    %v1300 = vsub.s32 0, %v1299
    %v1301 = vrot.slane %v1296, %v1300
    %1305 = vrot.lane.b32.xlu0 %v1290, 32
    %v1306 = vpop.permute.xlu0 %1305
    %1307 = vrot.lane.b32.xlu0 %v1291, 32
    %v1308 = vpop.permute.xlu0 %1307
    %v1309 = vsel %vm96, %v1306, 0
    %v1311 = vsel %vm96, %v1308, 0
    %1313 = vmatprep.subr.mxu0 0.0
    %1314 = vmatpush1.msra.mxu0 %v1292
    %1315 = vmatprep.subr.mxu0 0.0
    %1316 = vmatpush1.msra.mxu0 %v1293
    %1317 = vmatprep.subr.mxu0 0.0
    %1318 = vmatpush1.msra.mxu0 %v1294
    %1319 = vmatprep.subr.mxu0 0.0
    %1320 = vmatpush1.msra.mxu0 %v1295
    %1321 = vmatprep.subr.mxu0 0.0
    %1322 = vmatpush1.msra.mxu0 0.0
    %1323 = vmatprep.subr.mxu0 0.0
    %1324 = vmatpush1.msra.mxu0 0.0
    %1325 = vmatprep.subr.mxu0 0.0
    %1326 = vmatpush1.msra.mxu0 0.0
    %1327 = vmatprep.subr.mxu0 0.0
    %1328 = vmatpush1.msra.mxu0 0.0
    %1329 = vmatprep.subr.mxu0 0.0
    %1330 = vmatpush1.msra.mxu0 0.0
    %1331 = vmatprep.subr.mxu0 0.0
    %1332 = vmatpush1.msra.mxu0 0.0
    %1333 = vmatprep.subr.mxu0 0.0
    %1334 = vmatpush1.msra.mxu0 0.0
    %1335 = vmatprep.subr.mxu0 0.0
    %1336 = vmatpush1.msra.mxu0 0.0
    %1337 = vmatprep.subr.mxu0 0.0
    %1338 = vmatpush1.msra.mxu0 0.0
    %1339 = vmatprep.subr.mxu0 0.0
    %1340 = vmatpush1.msra.mxu0 0.0
    %1341 = vmatprep.subr.mxu0 0.0
    %1342 = vmatpush1.msra.mxu0 0.0
    %1343 = vmatprep.subr.mxu0 0.0
    %1344 = vmatpush1.msra.mxu0 0.0
    %1345 = vmatprep.subr.mxu0 0.0
    %1346 = vmatpush1.msra.mxu0 0.0
    %1347 = vmatprep.subr.mxu0 0.0
    %1348 = vmatpush1.msra.mxu0 0.0
    %1349 = vmatprep.subr.mxu0 0.0
    %1350 = vmatpush1.msra.mxu0 0.0
    %1351 = vmatprep.subr.mxu0 0.0
    %1352 = vmatpush1.msra.mxu0 0.0
    %1353 = vmatprep.subr.mxu0 0.0
    %1354 = vmatpush1.msra.mxu0 0.0
    %1355 = vmatprep.subr.mxu0 0.0
    %1356 = vmatpush1.msra.mxu0 0.0
    %1357 = vmatprep.subr.mxu0 0.0
    %1358 = vmatpush1.msra.mxu0 0.0
    %1359 = vmatprep.subr.mxu0 0.0
    %1360 = vmatpush1.msra.mxu0 0.0
    %1361 = vmatprep.subr.mxu0 0.0
    %1362 = vmatpush1.msra.mxu0 0.0
    %1363 = vmatprep.subr.mxu0 0.0
    %1364 = vmatpush1.msra.mxu0 0.0
    %1365 = vmatprep.subr.mxu0 0.0
    %1366 = vmatpush1.msra.mxu0 0.0
    %1367 = vmatprep.subr.mxu0 0.0
    %1368 = vmatpush1.msra.mxu0 0.0
    %1369 = vmatprep.subr.mxu0 0.0
    %1370 = vmatpush1.msra.mxu0 0.0
    %1371 = vmatprep.subr.mxu0 0.0
    %1372 = vmatpush1.msra.mxu0 0.0
    %1373 = vmatprep.subr.mxu0 0.0
    %1374 = vmatpush1.msra.mxu0 0.0
    %1375 = vmatprep.subr.mxu0 0.0
    %1376 = vmatpush1.msra.mxu0 0.0
    %1377 = vmatprep.mubr.f32.mxu0 0.0
    %1378 = vmatmul.mubr.f32.gmra.mrb[0].mxu0 %v1309
    %v1379 = vpop.f32.mrb[0].mxu0
    %v1380 = vadd.f32 %v1301, %v1379
    %v1381 = vpop.f32.mrb[0].mxu0
    %1382 = vmatprep.mubr.f32.mxu0 0.0
    %1383 = vmatmul.mubr.f32.gmra.mrb[0].mxu0 %v1311
    %v1384 = vpop.f32.mrb[0].mxu0
    %v1385 = vadd.f32 %v1301, %v1384
    %v1386 = vpop.f32.mrb[0].mxu0
    %1387 = vdwg.mxu0
    %v1388 = vmul.f32 %v1380, 0.5
    %v1389 = vmul.f32 %v1385, 0.5
    %v1390 = vmul.f32 %v1380, 0.70710677
    %v1391 = vmul.f32 %v1385, 0.70710677
    %v1392 = verf.f32.pop %v1390
    %v1393 = verf.f32.pop %v1391
    %v1394 = vadd.f32 %v1392, 1.0
    %v1395 = vadd.f32 %v1393, 1.0
    %v1396 = vmul.f32 %v1388, %v1394
    %v1397 = vmul.f32 %v1389, %v1395
    %v1398 = vld [vmem:[%s11] sm:$0xff]
    %v1399 = vld [vmem:[%s11 + $0x8] sm:$0xff]
    %v1400 = vld [vmem:[%s11 + $0x10] sm:$0xff]
    %v1401 = vld [vmem:[%s11 + $0x18] sm:$0xff]
    %v1402 = vld [vmem:[%s11 + $0x20] sm:$0xff]
    %v1403 = vld [vmem:[%s11 + $0x28] sm:$0xff]
    %v1404 = vld [vmem:[%s11 + $0x30] sm:$0xff]
    %v1405 = vld [vmem:[%s11 + $0x38] sm:$0xff]
    %v1406 = vld [vmem:[%s11 + $0x40] sm:$0xff]
    %v1407 = vld [vmem:[%s11 + $0x48] sm:$0xff]
    %v1408 = vld [vmem:[%s11 + $0x50] sm:$0xff]
    %v1409 = vld [vmem:[%s11 + $0x58] sm:$0xff]
    %v1410 = vld [vmem:[%s11 + $0x60] sm:$0xff]
    %v1411 = vld [vmem:[%s11 + $0x68] sm:$0xff]
    %v1412 = vld [vmem:[%s11 + $0x70] sm:$0xff]
    %v1413 = vld [vmem:[%s11 + $0x78] sm:$0xff]
    %v1414 = vld [vmem:[%s12] sm:$0x1]
    %v1416 = vlaneseq
    %v1417 = vshrl.u32 %v1416, 7
    %v1418 = vsub.s32 0, %v1417
    %v1419 = vrot.slane %v1414, %v1418
    %1421 = vmatprep.subr.mxu0 0.0
    %1422 = vmatpush1.msra.mxu0 %v1398
    %1423 = vmatprep.subr.mxu0 0.0
    %1424 = vmatpush1.msra.mxu0 %v1399
    %1425 = vmatprep.subr.mxu0 0.0
    %1426 = vmatpush1.msra.mxu0 %v1400
    %1427 = vmatprep.subr.mxu0 0.0
    %1428 = vmatpush1.msra.mxu0 %v1401
    %1429 = vmatprep.subr.mxu0 0.0
    %1430 = vmatpush1.msra.mxu0 %v1402
    %1431 = vmatprep.subr.mxu0 0.0
    %1432 = vmatpush1.msra.mxu0 %v1403
    %1433 = vmatprep.subr.mxu0 0.0
    %1434 = vmatpush1.msra.mxu0 %v1404
    %1435 = vmatprep.subr.mxu0 0.0
    %1436 = vmatpush1.msra.mxu0 %v1405
    %1437 = vmatprep.subr.mxu0 0.0
    %1438 = vmatpush1.msra.mxu0 %v1406
    %1439 = vmatprep.subr.mxu0 0.0
    %1440 = vmatpush1.msra.mxu0 %v1407
    %1441 = vmatprep.subr.mxu0 0.0
    %1442 = vmatpush1.msra.mxu0 %v1408
    %1443 = vmatprep.subr.mxu0 0.0
    %1444 = vmatpush1.msra.mxu0 %v1409
    %1445 = vmatprep.subr.mxu0 0.0
    %1446 = vmatpush1.msra.mxu0 %v1410
    %1447 = vmatprep.subr.mxu0 0.0
    %1448 = vmatpush1.msra.mxu0 %v1411
    %1449 = vmatprep.subr.mxu0 0.0
    %1450 = vmatpush1.msra.mxu0 %v1412
    %1451 = vmatprep.subr.mxu0 0.0
    %1452 = vmatpush1.msra.mxu0 %v1413
    %1453 = vmatprep.subr.mxu0 0.0
    %1454 = vmatpush1.msra.mxu0 0.0
    %1455 = vmatprep.subr.mxu0 0.0
    %1456 = vmatpush1.msra.mxu0 0.0
    %1457 = vmatprep.subr.mxu0 0.0
    %1458 = vmatpush1.msra.mxu0 0.0
    %1459 = vmatprep.subr.mxu0 0.0
    %1460 = vmatpush1.msra.mxu0 0.0
    %1461 = vmatprep.subr.mxu0 0.0
    %1462 = vmatpush1.msra.mxu0 0.0
    %1463 = vmatprep.subr.mxu0 0.0
    %1464 = vmatpush1.msra.mxu0 0.0
    %1465 = vmatprep.subr.mxu0 0.0
    %1466 = vmatpush1.msra.mxu0 0.0
    %1467 = vmatprep.subr.mxu0 0.0
    %1468 = vmatpush1.msra.mxu0 0.0
    %1469 = vmatprep.subr.mxu0 0.0
    %1470 = vmatpush1.msra.mxu0 0.0
    %1471 = vmatprep.subr.mxu0 0.0
    %1472 = vmatpush1.msra.mxu0 0.0
    %1473 = vmatprep.subr.mxu0 0.0
    %1474 = vmatpush1.msra.mxu0 0.0
    %1475 = vmatprep.subr.mxu0 0.0
    %1476 = vmatpush1.msra.mxu0 0.0
    %1477 = vmatprep.subr.mxu0 0.0
    %1478 = vmatpush1.msra.mxu0 0.0
    %1479 = vmatprep.subr.mxu0 0.0
    %1480 = vmatpush1.msra.mxu0 0.0
    %1481 = vmatprep.subr.mxu0 0.0
    %1482 = vmatpush1.msra.mxu0 0.0
    %1483 = vmatprep.subr.mxu0 0.0
    %1484 = vmatpush1.msra.mxu0 0.0
    %1485 = vmatprep.mubr.f32.mxu0 0.0
    %1486 = vmatmul.mubr.f32.gmra.mrb[0].mxu0 %v1396
    %v1487 = vpop.f32.mrb[0].mxu0
    %v1488 = vadd.f32 %v1419, %v1487
    %v1489 = vpop.f32.mrb[0].mxu0
    %1490 = vmatprep.mubr.f32.mxu0 0.0
    %1491 = vmatmul.mubr.f32.gmra.mrb[0].mxu0 %v1397
    %v1492 = vpop.f32.mrb[0].mxu0
    %v1493 = vadd.f32 %v1419, %v1492
    %v1494 = vpop.f32.mrb[0].mxu0
    %1495 = vdwg.mxu0
    %v1496 = vmul.f32 %v1204, %v1226
    %v1497 = vmul.f32 %v1205, %v1227
    %1500 = vrot.lane.b32.xlu0 %v1488, 96
    %v1501 = vpop.permute.xlu0 %1500
    %1502 = vrot.lane.b32.xlu0 %v1493, 96
    %v1503 = vpop.permute.xlu0 %1502
    %v1506 = vmul.f32 %v254, %v1501
    %v1507 = vmul.f32 %v256, %v1503
    %v1508 = vadd.f32 %v1496, %v1506
    %v1509 = vadd.f32 %v1497, %v1507
    %v1510 = vadd.f32 %v1508, %v1209
    %v1511 = vadd.f32 %v1509, %v1211
    %s1512 = scalar_lea.vmem %s1, 1
    %v1513 = vld [vmem:[%s1512] sm:$0x1]
    %s1514 = scalar_lea.vmem %s2, 1
    %v1515 = vld [vmem:[%s1514] sm:$0x1]
    %1518 = vrot.lane.b32.xlu0 %v1510, 32
    %v1519 = vpop.permute.xlu0 %1518
    %1520 = vrot.lane.b32.xlu0 %v1511, 32
    %v1521 = vpop.permute.xlu0 %1520
    %v1524 = vsel %vm96, %v1519, 0.0
    %1525 = vadd.xlane.f32.xlu0 %v1524
    %v1526 = vpop.xlane.xlu0 %1525
    %v1527 = vsel %vm96, %v1521, 0.0
    %1528 = vadd.xlane.f32.xlu0 %v1527
    %v1529 = vpop.xlane.xlu0 %1528
    %v1530 = vmul.f32 %v1526, %v103
    %v1531 = vmul.f32 %v1529, %v103
    %v1532 = vsub.f32 %v1510, %v1530
    %v1533 = vsub.f32 %v1511, %v1531
    %v1534 = vmul.f32 %v1532, %v1532
    %v1535 = vmul.f32 %v1533, %v1533
    %1538 = vrot.lane.b32.xlu0 %v1534, 32
    %v1539 = vpop.permute.xlu0 %1538
    %1540 = vrot.lane.b32.xlu0 %v1535, 32
    %v1541 = vpop.permute.xlu0 %1540
    %v1544 = vsel %vm96, %v1539, 0.0
    %1545 = vadd.xlane.f32.xlu0 %v1544
    %v1546 = vpop.xlane.xlu0 %1545
    %v1547 = vsel %vm96, %v1541, 0.0
    %1548 = vadd.xlane.f32.xlu0 %v1547
    %v1549 = vpop.xlane.xlu0 %1548
    %v1550 = vmul.f32 %v1546, %v103
    %v1551 = vmul.f32 %v1549, %v103
    %v1552 = vadd.f32 %v1550, 1e-05
    %v1553 = vadd.f32 %v1551, 1e-05
    %v1554 = vrsqrt.pop %v1552
    %v1555 = vrsqrt.pop %v1553
    %v1556 = vmul.f32 %v1532, %v1554
    %v1557 = vmul.f32 %v1533, %v1555
    %v1559 = vlaneseq
    %v1560 = vshrl.u32 %v1559, 7
    %v1561 = vsub.s32 0, %v1560
    %v1562 = vrot.slane %v1513, %v1561
    %1563 = vrot.lane.b32.xlu0 %v1562, 96
    %v1564 = vpop.permute.xlu0 %1563
    %v1566 = vmul.f32 %v1556, %v1564
    %v1567 = vmul.f32 %v1557, %v1564
    %v1569 = vlaneseq
    %v1570 = vshrl.u32 %v1569, 7
    %v1571 = vsub.s32 0, %v1570
    %v1572 = vrot.slane %v1515, %v1571
    %1573 = vrot.lane.b32.xlu0 %v1572, 96
    %v1574 = vpop.permute.xlu0 %1573
    %v1576 = vadd.f32 %v1566, %v1574
    %v1577 = vadd.f32 %v1567, %v1574
    %s1578 = scalar_lea.vmem %s3, 64
    %v1579 = vld [vmem:[%s1578] sm:$0xff]
    %v1580 = vld [vmem:[%s1578 + $0x8] sm:$0xff]
    %v1581 = vld [vmem:[%s1578 + $0x10] sm:$0xff]
    %v1582 = vld [vmem:[%s1578 + $0x18] sm:$0xff]
    %v1583 = vld [vmem:[%s1578 + $0x20] sm:$0xff]
    %v1584 = vld [vmem:[%s1578 + $0x28] sm:$0xff]
    %v1585 = vld [vmem:[%s1578 + $0x30] sm:$0xff]
    %v1586 = vld [vmem:[%s1578 + $0x38] sm:$0xff]
    %s1587 = scalar_lea.vmem %s4, 2
    %v1588 = vld [vmem:[%s1587] sm:$0x3]
    %v1590 = vlaneseq
    %v1591 = vshrl.u32 %v1590, 7
    %v1592 = vsub.s32 0, %v1591
    %v1593 = vrot.slane %v1588, %v1592
    %v1594 = vlaneseq
    %v1595 = vshrl.u32 %v1594, 7
    %v1596 = vsub.s32 1, %v1595
    %v1597 = vrot.slane %v1588, %v1596
    %1602 = vrot.lane.b32.xlu0 %v1576, 32
    %v1603 = vpop.permute.xlu0 %1602
    %1604 = vrot.lane.b32.xlu0 %v1577, 32
    %v1605 = vpop.permute.xlu0 %1604
    %v1606 = vsel %vm96, %v1603, 0
    %v1608 = vsel %vm96, %v1605, 0
    %1610 = vmatprep.subr.mxu0 %v1580
    %1611 = vmatpush1.msra.mxu0 %v1579
    %1612 = vmatprep.subr.mxu0 %v1582
    %1613 = vmatpush1.msra.mxu0 %v1581
    %1614 = vmatprep.subr.mxu0 %v1584
    %1615 = vmatpush1.msra.mxu0 %v1583
    %1616 = vmatprep.subr.mxu0 %v1586
    %1617 = vmatpush1.msra.mxu0 %v1585
    %1618 = vmatprep.subr.mxu0 0.0
    %1619 = vmatpush1.msra.mxu0 0.0
    %1620 = vmatprep.subr.mxu0 0.0
    %1621 = vmatpush1.msra.mxu0 0.0
    %1622 = vmatprep.subr.mxu0 0.0
    %1623 = vmatpush1.msra.mxu0 0.0
    %1624 = vmatprep.subr.mxu0 0.0
    %1625 = vmatpush1.msra.mxu0 0.0
    %1626 = vmatprep.subr.mxu0 0.0
    %1627 = vmatpush1.msra.mxu0 0.0
    %1628 = vmatprep.subr.mxu0 0.0
    %1629 = vmatpush1.msra.mxu0 0.0
    %1630 = vmatprep.subr.mxu0 0.0
    %1631 = vmatpush1.msra.mxu0 0.0
    %1632 = vmatprep.subr.mxu0 0.0
    %1633 = vmatpush1.msra.mxu0 0.0
    %1634 = vmatprep.subr.mxu0 0.0
    %1635 = vmatpush1.msra.mxu0 0.0
    %1636 = vmatprep.subr.mxu0 0.0
    %1637 = vmatpush1.msra.mxu0 0.0
    %1638 = vmatprep.subr.mxu0 0.0
    %1639 = vmatpush1.msra.mxu0 0.0
    %1640 = vmatprep.subr.mxu0 0.0
    %1641 = vmatpush1.msra.mxu0 0.0
    %1642 = vmatprep.subr.mxu0 0.0
    %1643 = vmatpush1.msra.mxu0 0.0
    %1644 = vmatprep.subr.mxu0 0.0
    %1645 = vmatpush1.msra.mxu0 0.0
    %1646 = vmatprep.subr.mxu0 0.0
    %1647 = vmatpush1.msra.mxu0 0.0
    %1648 = vmatprep.subr.mxu0 0.0
    %1649 = vmatpush1.msra.mxu0 0.0
    %1650 = vmatprep.subr.mxu0 0.0
    %1651 = vmatpush1.msra.mxu0 0.0
    %1652 = vmatprep.subr.mxu0 0.0
    %1653 = vmatpush1.msra.mxu0 0.0
    %1654 = vmatprep.subr.mxu0 0.0
    %1655 = vmatpush1.msra.mxu0 0.0
    %1656 = vmatprep.subr.mxu0 0.0
    %1657 = vmatpush1.msra.mxu0 0.0
    %1658 = vmatprep.subr.mxu0 0.0
    %1659 = vmatpush1.msra.mxu0 0.0
    %1660 = vmatprep.subr.mxu0 0.0
    %1661 = vmatpush1.msra.mxu0 0.0
    %1662 = vmatprep.subr.mxu0 0.0
    %1663 = vmatpush1.msra.mxu0 0.0
    %1664 = vmatprep.subr.mxu0 0.0
    %1665 = vmatpush1.msra.mxu0 0.0
    %1666 = vmatprep.subr.mxu0 0.0
    %1667 = vmatpush1.msra.mxu0 0.0
    %1668 = vmatprep.subr.mxu0 0.0
    %1669 = vmatpush1.msra.mxu0 0.0
    %1670 = vmatprep.subr.mxu0 0.0
    %1671 = vmatpush1.msra.mxu0 0.0
    %1672 = vmatprep.subr.mxu0 0.0
    %1673 = vmatpush1.msra.mxu0 0.0
    %1674 = vmatprep.mubr.f32.mxu0 0.0
    %1675 = vmatmul.mubr.f32.gmra.mrb[0].mxu0 %v1606
    %v1676 = vpop.f32.mrb[0].mxu0
    %v1677 = vadd.f32 %v1593, %v1676
    %v1678 = vpop.f32.mrb[0].mxu0
    %v1679 = vadd.f32 %v1597, %v1678
    %1680 = vmatprep.mubr.f32.mxu0 0.0
    %1681 = vmatmul.mubr.f32.gmra.mrb[0].mxu0 %v1608
    %v1682 = vpop.f32.mrb[0].mxu0
    %v1683 = vadd.f32 %v1593, %v1682
    %v1684 = vpop.f32.mrb[0].mxu0
    %v1685 = vadd.f32 %v1597, %v1684
    %1686 = vdwg.mxu0
    %v1687 = vmul.f32 %v1677, 0.35355338
    %v1688 = vmul.f32 %v1683, 0.35355338
    %v1689 = vxor.u32 %v1677, 2147483648
    %v1690 = vxor.u32 %v1683, 2147483648
    %v1691 = vmul.f32 %v1689, 1.442695
    %v1692 = vpow.pop %v1691
    %v1693 = vmul.f32 %v1690, 1.442695
    %v1694 = vpow.pop %v1693
    %v1695 = vadd.f32 %v1692, 1.0
    %v1696 = vadd.f32 %v1694, 1.0
    %v1697 = vrcp.pop %v1695
    %v1698 = vmul.f32 1.0, %v1697
    %v1699 = vrcp.pop %v1696
    %v1700 = vmul.f32 1.0, %v1699
    %v1701 = vxor.u32 %v1679, 2147483648
    %v1702 = vxor.u32 %v1685, 2147483648
    %v1703 = vmul.f32 %v1701, 1.442695
    %v1704 = vpow.pop %v1703
    %v1705 = vmul.f32 %v1702, 1.442695
    %v1706 = vpow.pop %v1705
    %v1707 = vadd.f32 %v1704, 1.0
    %v1708 = vadd.f32 %v1706, 1.0
    %v1709 = vrcp.pop %v1707
    %v1710 = vmul.f32 1.0, %v1709
    %v1711 = vrcp.pop %v1708
    %v1712 = vmul.f32 1.0, %v1711
    %1715 = vrot.lane.b32.xlu0 %v1677, 96
    %v1716 = vpop.permute.xlu0 %1715
    %1717 = vrot.lane.b32.xlu0 %v1683, 96
    %v1718 = vpop.permute.xlu0 %1717
    %s1721 = scalar_lea.vmem [#allocation4], 16
    %1722 = vst.msk [vmem:[%s1721] sm:$0xff] %vm96, %v1716
    %1723 = vst.msk [vmem:[%s1721 + $0x8] sm:$0xff] %vm96, %v1718
    %1724 = vrot.lane.b32.xlu0 %v1677, 64
    %v1725 = vpop.permute.xlu0 %1724
    %1726 = vrot.lane.b32.xlu0 %v1683, 64
    %v1727 = vpop.permute.xlu0 %1726
    %s1730 = scalar_lea.vmem [#allocation6], 16
    %1731 = vst.msk [vmem:[%s1730] sm:$0xff] %vm96, %v1725
    %1732 = vst.msk [vmem:[%s1730 + $0x8] sm:$0xff] %vm96, %v1727
    %v1734 = vsel %vm287, %v1687, 0
    %v1737 = vsel %vm287, %v1688, 0
    %v1739 = vsel %vm287, %v1716, 0
    %v1741 = vsel %vm287, %v1718, 0
    %1743 = vmatprep.subr.mxu0 0.0
    %1744 = vmatpush1.xpose.msra.mxu0 %v1739
    %1745 = vmatprep.subr.mxu0 0.0
    %1746 = vmatpush1.xpose.msra.mxu0 %v1741
    %1747 = vmatprep.subr.mxu0 0.0
    %1748 = vmatpush1.xpose.msra.mxu0 0.0
    %1749 = vmatprep.subr.mxu0 0.0
    %1750 = vmatpush1.xpose.msra.mxu0 0.0
    %1751 = vmatprep.subr.mxu0 0.0
    %1752 = vmatpush1.xpose.msra.mxu0 0.0
    %1753 = vmatprep.subr.mxu0 0.0
    %1754 = vmatpush1.xpose.msra.mxu0 0.0
    %1755 = vmatprep.subr.mxu0 0.0
    %1756 = vmatpush1.xpose.msra.mxu0 0.0
    %1757 = vmatprep.subr.mxu0 0.0
    %1758 = vmatpush1.xpose.msra.mxu0 0.0
    %1759 = vmatprep.subr.mxu0 0.0
    %1760 = vmatpush1.xpose.msra.mxu0 0.0
    %1761 = vmatprep.subr.mxu0 0.0
    %1762 = vmatpush1.xpose.msra.mxu0 0.0
    %1763 = vmatprep.subr.mxu0 0.0
    %1764 = vmatpush1.xpose.msra.mxu0 0.0
    %1765 = vmatprep.subr.mxu0 0.0
    %1766 = vmatpush1.xpose.msra.mxu0 0.0
    %1767 = vmatprep.subr.mxu0 0.0
    %1768 = vmatpush1.xpose.msra.mxu0 0.0
    %1769 = vmatprep.subr.mxu0 0.0
    %1770 = vmatpush1.xpose.msra.mxu0 0.0
    %1771 = vmatprep.subr.mxu0 0.0
    %1772 = vmatpush1.xpose.msra.mxu0 0.0
    %1773 = vmatprep.subr.mxu0 0.0
    %1774 = vmatpush1.xpose.msra.mxu0 0.0
    %1775 = vmatprep.subr.mxu0 0.0
    %1776 = vmatpush1.xpose.msra.mxu0 0.0
    %1777 = vmatprep.subr.mxu0 0.0
    %1778 = vmatpush1.xpose.msra.mxu0 0.0
    %1779 = vmatprep.subr.mxu0 0.0
    %1780 = vmatpush1.xpose.msra.mxu0 0.0
    %1781 = vmatprep.subr.mxu0 0.0
    %1782 = vmatpush1.xpose.msra.mxu0 0.0
    %1783 = vmatprep.subr.mxu0 0.0
    %1784 = vmatpush1.xpose.msra.mxu0 0.0
    %1785 = vmatprep.subr.mxu0 0.0
    %1786 = vmatpush1.xpose.msra.mxu0 0.0
    %1787 = vmatprep.subr.mxu0 0.0
    %1788 = vmatpush1.xpose.msra.mxu0 0.0
    %1789 = vmatprep.subr.mxu0 0.0
    %1790 = vmatpush1.xpose.msra.mxu0 0.0
    %1791 = vmatprep.subr.mxu0 0.0
    %1792 = vmatpush1.xpose.msra.mxu0 0.0
    %1793 = vmatprep.subr.mxu0 0.0
    %1794 = vmatpush1.xpose.msra.mxu0 0.0
    %1795 = vmatprep.subr.mxu0 0.0
    %1796 = vmatpush1.xpose.msra.mxu0 0.0
    %1797 = vmatprep.subr.mxu0 0.0
    %1798 = vmatpush1.xpose.msra.mxu0 0.0
    %1799 = vmatprep.subr.mxu0 0.0
    %1800 = vmatpush1.xpose.msra.mxu0 0.0
    %1801 = vmatprep.subr.mxu0 0.0
    %1802 = vmatpush1.xpose.msra.mxu0 0.0
    %1803 = vmatprep.subr.mxu0 0.0
    %1804 = vmatpush1.xpose.msra.mxu0 0.0
    %1805 = vmatprep.subr.mxu0 0.0
    %1806 = vmatpush1.xpose.msra.mxu0 0.0
    %1807 = vmatprep.mubr.f32.mxu0 0.0
    %1808 = vmatmul.mubr.f32.gmra.mrb[0].mxu0 %v1734
    %v1809 = vpop.f32.mrb[0].mxu0
    %v1810 = vadd.f32 %v92, %v1809
    %v1811 = vpop.f32.mrb[0].mxu0
    %1812 = vmatprep.mubr.f32.mxu0 0.0
    %1813 = vmatmul.mubr.f32.gmra.mrb[0].mxu0 %v1737
    %v1814 = vpop.f32.mrb[0].mxu0
    %v1815 = vadd.f32 %v93, %v1814
    %v1816 = vpop.f32.mrb[0].mxu0
    %1817 = vdwg.mxu0
    %v1818 = vsel %vm373, %v1810, -inf
    %1819 = vmax.xlane.f32.xlu0 %v1818
    %v1820 = vpop.xlane.xlu0 %1819
    %v1821 = vsel %vm373, %v1815, -inf
    %1822 = vmax.xlane.f32.xlu0 %v1821
    %v1823 = vpop.xlane.xlu0 %1822
    %v1824 = vsub.f32 %v1810, %v1820
    %v1825 = vsub.f32 %v1815, %v1823
    %v1826 = vmul.f32 %v1824, 1.442695
    %v1827 = vpow.pop %v1826
    %v1828 = vmul.f32 %v1825, 1.442695
    %v1829 = vpow.pop %v1828
    %v1830 = vsel %vm373, %v1827, 0.0
    %1831 = vadd.xlane.f32.xlu0 %v1830
    %v1832 = vpop.xlane.xlu0 %1831
    %v1833 = vsel %vm373, %v1829, 0.0
    %1834 = vadd.xlane.f32.xlu0 %v1833
    %v1835 = vpop.xlane.xlu0 %1834
    %v1836 = vrcp.pop %v1832
    %v1837 = vmul.f32 %v1827, %v1836
    %v1838 = vrcp.pop %v1835
    %v1839 = vmul.f32 %v1829, %v1838
    %v1841 = vsel %vm373, %v1837, 0
    %v1844 = vsel %vm373, %v1839, 0
    %1846 = vmatprep.subr.mxu0 0.0
    %1847 = vmatpush1.msra.mxu0 %v1725
    %1848 = vmatprep.subr.mxu0 0.0
    %1849 = vmatpush1.msra.mxu0 %v1727
    %1850 = vmatprep.subr.mxu0 0.0
    %1851 = vmatpush1.msra.mxu0 0.0
    %1852 = vmatprep.subr.mxu0 0.0
    %1853 = vmatpush1.msra.mxu0 0.0
    %1854 = vmatprep.subr.mxu0 0.0
    %1855 = vmatpush1.msra.mxu0 0.0
    %1856 = vmatprep.subr.mxu0 0.0
    %1857 = vmatpush1.msra.mxu0 0.0
    %1858 = vmatprep.subr.mxu0 0.0
    %1859 = vmatpush1.msra.mxu0 0.0
    %1860 = vmatprep.subr.mxu0 0.0
    %1861 = vmatpush1.msra.mxu0 0.0
    %1862 = vmatprep.subr.mxu0 0.0
    %1863 = vmatpush1.msra.mxu0 0.0
    %1864 = vmatprep.subr.mxu0 0.0
    %1865 = vmatpush1.msra.mxu0 0.0
    %1866 = vmatprep.subr.mxu0 0.0
    %1867 = vmatpush1.msra.mxu0 0.0
    %1868 = vmatprep.subr.mxu0 0.0
    %1869 = vmatpush1.msra.mxu0 0.0
    %1870 = vmatprep.subr.mxu0 0.0
    %1871 = vmatpush1.msra.mxu0 0.0
    %1872 = vmatprep.subr.mxu0 0.0
    %1873 = vmatpush1.msra.mxu0 0.0
    %1874 = vmatprep.subr.mxu0 0.0
    %1875 = vmatpush1.msra.mxu0 0.0
    %1876 = vmatprep.subr.mxu0 0.0
    %1877 = vmatpush1.msra.mxu0 0.0
    %1878 = vmatprep.subr.mxu0 0.0
    %1879 = vmatpush1.msra.mxu0 0.0
    %1880 = vmatprep.subr.mxu0 0.0
    %1881 = vmatpush1.msra.mxu0 0.0
    %1882 = vmatprep.subr.mxu0 0.0
    %1883 = vmatpush1.msra.mxu0 0.0
    %1884 = vmatprep.subr.mxu0 0.0
    %1885 = vmatpush1.msra.mxu0 0.0
    %1886 = vmatprep.subr.mxu0 0.0
    %1887 = vmatpush1.msra.mxu0 0.0
    %1888 = vmatprep.subr.mxu0 0.0
    %1889 = vmatpush1.msra.mxu0 0.0
    %1890 = vmatprep.subr.mxu0 0.0
    %1891 = vmatpush1.msra.mxu0 0.0
    %1892 = vmatprep.subr.mxu0 0.0
    %1893 = vmatpush1.msra.mxu0 0.0
    %1894 = vmatprep.subr.mxu0 0.0
    %1895 = vmatpush1.msra.mxu0 0.0
    %1896 = vmatprep.subr.mxu0 0.0
    %1897 = vmatpush1.msra.mxu0 0.0
    %1898 = vmatprep.subr.mxu0 0.0
    %1899 = vmatpush1.msra.mxu0 0.0
    %1900 = vmatprep.subr.mxu0 0.0
    %1901 = vmatpush1.msra.mxu0 0.0
    %1902 = vmatprep.subr.mxu0 0.0
    %1903 = vmatpush1.msra.mxu0 0.0
    %1904 = vmatprep.subr.mxu0 0.0
    %1905 = vmatpush1.msra.mxu0 0.0
    %1906 = vmatprep.subr.mxu0 0.0
    %1907 = vmatpush1.msra.mxu0 0.0
    %1908 = vmatprep.subr.mxu0 0.0
    %1909 = vmatpush1.msra.mxu0 0.0
    %1910 = vmatprep.mubr.f32.mxu0 0.0
    %1911 = vmatmul.mubr.f32.gmra.mrb[0].mxu0 %v1841
    %v1912 = vpop.f32.mrb[0].mxu0
    %v1913 = vadd.f32 0.0, %v1912
    %v1914 = vpop.f32.mrb[0].mxu0
    %1915 = vmatprep.mubr.f32.mxu0 0.0
    %1916 = vmatmul.mubr.f32.gmra.mrb[0].mxu0 %v1844
    %v1917 = vpop.f32.mrb[0].mxu0
    %v1918 = vadd.f32 0.0, %v1917
    %v1919 = vpop.f32.mrb[0].mxu0
    %1920 = vdwg.mxu0
    %1921 = vrot.lane.b32.xlu0 %v1687, 120
    %v1922 = vpop.permute.xlu0 %1921
    %1923 = vrot.lane.b32.xlu0 %v1688, 120
    %v1924 = vpop.permute.xlu0 %1923
    %1925 = vrot.lane.b32.xlu0 %v1677, 88
    %v1926 = vpop.permute.xlu0 %1925
    %1927 = vrot.lane.b32.xlu0 %v1683, 88
    %v1928 = vpop.permute.xlu0 %1927
    %v1929 = vsel %vm287, %v1922, 0
    %v1931 = vsel %vm287, %v1924, 0
    %v1933 = vsel %vm287, %v1926, 0
    %v1935 = vsel %vm287, %v1928, 0
    %1937 = vmatprep.subr.mxu0 0.0
    %1938 = vmatpush1.xpose.msra.mxu0 %v1933
    %1939 = vmatprep.subr.mxu0 0.0
    %1940 = vmatpush1.xpose.msra.mxu0 %v1935
    %1941 = vmatprep.subr.mxu0 0.0
    %1942 = vmatpush1.xpose.msra.mxu0 0.0
    %1943 = vmatprep.subr.mxu0 0.0
    %1944 = vmatpush1.xpose.msra.mxu0 0.0
    %1945 = vmatprep.subr.mxu0 0.0
    %1946 = vmatpush1.xpose.msra.mxu0 0.0
    %1947 = vmatprep.subr.mxu0 0.0
    %1948 = vmatpush1.xpose.msra.mxu0 0.0
    %1949 = vmatprep.subr.mxu0 0.0
    %1950 = vmatpush1.xpose.msra.mxu0 0.0
    %1951 = vmatprep.subr.mxu0 0.0
    %1952 = vmatpush1.xpose.msra.mxu0 0.0
    %1953 = vmatprep.subr.mxu0 0.0
    %1954 = vmatpush1.xpose.msra.mxu0 0.0
    %1955 = vmatprep.subr.mxu0 0.0
    %1956 = vmatpush1.xpose.msra.mxu0 0.0
    %1957 = vmatprep.subr.mxu0 0.0
    %1958 = vmatpush1.xpose.msra.mxu0 0.0
    %1959 = vmatprep.subr.mxu0 0.0
    %1960 = vmatpush1.xpose.msra.mxu0 0.0
    %1961 = vmatprep.subr.mxu0 0.0
    %1962 = vmatpush1.xpose.msra.mxu0 0.0
    %1963 = vmatprep.subr.mxu0 0.0
    %1964 = vmatpush1.xpose.msra.mxu0 0.0
    %1965 = vmatprep.subr.mxu0 0.0
    %1966 = vmatpush1.xpose.msra.mxu0 0.0
    %1967 = vmatprep.subr.mxu0 0.0
    %1968 = vmatpush1.xpose.msra.mxu0 0.0
    %1969 = vmatprep.subr.mxu0 0.0
    %1970 = vmatpush1.xpose.msra.mxu0 0.0
    %1971 = vmatprep.subr.mxu0 0.0
    %1972 = vmatpush1.xpose.msra.mxu0 0.0
    %1973 = vmatprep.subr.mxu0 0.0
    %1974 = vmatpush1.xpose.msra.mxu0 0.0
    %1975 = vmatprep.subr.mxu0 0.0
    %1976 = vmatpush1.xpose.msra.mxu0 0.0
    %1977 = vmatprep.subr.mxu0 0.0
    %1978 = vmatpush1.xpose.msra.mxu0 0.0
    %1979 = vmatprep.subr.mxu0 0.0
    %1980 = vmatpush1.xpose.msra.mxu0 0.0
    %1981 = vmatprep.subr.mxu0 0.0
    %1982 = vmatpush1.xpose.msra.mxu0 0.0
    %1983 = vmatprep.subr.mxu0 0.0
    %1984 = vmatpush1.xpose.msra.mxu0 0.0
    %1985 = vmatprep.subr.mxu0 0.0
    %1986 = vmatpush1.xpose.msra.mxu0 0.0
    %1987 = vmatprep.subr.mxu0 0.0
    %1988 = vmatpush1.xpose.msra.mxu0 0.0
    %1989 = vmatprep.subr.mxu0 0.0
    %1990 = vmatpush1.xpose.msra.mxu0 0.0
    %1991 = vmatprep.subr.mxu0 0.0
    %1992 = vmatpush1.xpose.msra.mxu0 0.0
    %1993 = vmatprep.subr.mxu0 0.0
    %1994 = vmatpush1.xpose.msra.mxu0 0.0
    %1995 = vmatprep.subr.mxu0 0.0
    %1996 = vmatpush1.xpose.msra.mxu0 0.0
    %1997 = vmatprep.subr.mxu0 0.0
    %1998 = vmatpush1.xpose.msra.mxu0 0.0
    %1999 = vmatprep.subr.mxu0 0.0
    %2000 = vmatpush1.xpose.msra.mxu0 0.0
    %2001 = vmatprep.mubr.f32.mxu0 0.0
    %2002 = vmatmul.mubr.f32.gmra.mrb[0].mxu0 %v1929
    %v2003 = vpop.f32.mrb[0].mxu0
    %v2004 = vadd.f32 %v92, %v2003
    %v2005 = vpop.f32.mrb[0].mxu0
    %2006 = vmatprep.mubr.f32.mxu0 0.0
    %2007 = vmatmul.mubr.f32.gmra.mrb[0].mxu0 %v1931
    %v2008 = vpop.f32.mrb[0].mxu0
    %v2009 = vadd.f32 %v93, %v2008
    %v2010 = vpop.f32.mrb[0].mxu0
    %2011 = vdwg.mxu0
    %v2012 = vsel %vm373, %v2004, -inf
    %2013 = vmax.xlane.f32.xlu0 %v2012
    %v2014 = vpop.xlane.xlu0 %2013
    %v2015 = vsel %vm373, %v2009, -inf
    %2016 = vmax.xlane.f32.xlu0 %v2015
    %v2017 = vpop.xlane.xlu0 %2016
    %v2018 = vsub.f32 %v2004, %v2014
    %v2019 = vsub.f32 %v2009, %v2017
    %v2020 = vmul.f32 %v2018, 1.442695
    %v2021 = vpow.pop %v2020
    %v2022 = vmul.f32 %v2019, 1.442695
    %v2023 = vpow.pop %v2022
    %v2024 = vsel %vm373, %v2021, 0.0
    %2025 = vadd.xlane.f32.xlu0 %v2024
    %v2026 = vpop.xlane.xlu0 %2025
    %v2027 = vsel %vm373, %v2023, 0.0
    %2028 = vadd.xlane.f32.xlu0 %v2027
    %v2029 = vpop.xlane.xlu0 %2028
    %v2030 = vrcp.pop %v2026
    %v2031 = vmul.f32 %v2021, %v2030
    %v2032 = vrcp.pop %v2029
    %v2033 = vmul.f32 %v2023, %v2032
    %2034 = vrot.lane.b32.xlu0 %v1677, 56
    %v2035 = vpop.permute.xlu0 %2034
    %2036 = vrot.lane.b32.xlu0 %v1683, 56
    %v2037 = vpop.permute.xlu0 %2036
    %v2041 = vsel %vm373, %v2031, 0
    %v2044 = vsel %vm373, %v2033, 0
    %2046 = vmatprep.subr.mxu0 0.0
    %2047 = vmatpush1.msra.mxu0 %v2035
    %2048 = vmatprep.subr.mxu0 0.0
    %2049 = vmatpush1.msra.mxu0 %v2037
    %2050 = vmatprep.subr.mxu0 0.0
    %2051 = vmatpush1.msra.mxu0 0.0
    %2052 = vmatprep.subr.mxu0 0.0
    %2053 = vmatpush1.msra.mxu0 0.0
    %2054 = vmatprep.subr.mxu0 0.0
    %2055 = vmatpush1.msra.mxu0 0.0
    %2056 = vmatprep.subr.mxu0 0.0
    %2057 = vmatpush1.msra.mxu0 0.0
    %2058 = vmatprep.subr.mxu0 0.0
    %2059 = vmatpush1.msra.mxu0 0.0
    %2060 = vmatprep.subr.mxu0 0.0
    %2061 = vmatpush1.msra.mxu0 0.0
    %2062 = vmatprep.subr.mxu0 0.0
    %2063 = vmatpush1.msra.mxu0 0.0
    %2064 = vmatprep.subr.mxu0 0.0
    %2065 = vmatpush1.msra.mxu0 0.0
    %2066 = vmatprep.subr.mxu0 0.0
    %2067 = vmatpush1.msra.mxu0 0.0
    %2068 = vmatprep.subr.mxu0 0.0
    %2069 = vmatpush1.msra.mxu0 0.0
    %2070 = vmatprep.subr.mxu0 0.0
    %2071 = vmatpush1.msra.mxu0 0.0
    %2072 = vmatprep.subr.mxu0 0.0
    %2073 = vmatpush1.msra.mxu0 0.0
    %2074 = vmatprep.subr.mxu0 0.0
    %2075 = vmatpush1.msra.mxu0 0.0
    %2076 = vmatprep.subr.mxu0 0.0
    %2077 = vmatpush1.msra.mxu0 0.0
    %2078 = vmatprep.subr.mxu0 0.0
    %2079 = vmatpush1.msra.mxu0 0.0
    %2080 = vmatprep.subr.mxu0 0.0
    %2081 = vmatpush1.msra.mxu0 0.0
    %2082 = vmatprep.subr.mxu0 0.0
    %2083 = vmatpush1.msra.mxu0 0.0
    %2084 = vmatprep.subr.mxu0 0.0
    %2085 = vmatpush1.msra.mxu0 0.0
    %2086 = vmatprep.subr.mxu0 0.0
    %2087 = vmatpush1.msra.mxu0 0.0
    %2088 = vmatprep.subr.mxu0 0.0
    %2089 = vmatpush1.msra.mxu0 0.0
    %2090 = vmatprep.subr.mxu0 0.0
    %2091 = vmatpush1.msra.mxu0 0.0
    %2092 = vmatprep.subr.mxu0 0.0
    %2093 = vmatpush1.msra.mxu0 0.0
    %2094 = vmatprep.subr.mxu0 0.0
    %2095 = vmatpush1.msra.mxu0 0.0
    %2096 = vmatprep.subr.mxu0 0.0
    %2097 = vmatpush1.msra.mxu0 0.0
    %2098 = vmatprep.subr.mxu0 0.0
    %2099 = vmatpush1.msra.mxu0 0.0
    %2100 = vmatprep.subr.mxu0 0.0
    %2101 = vmatpush1.msra.mxu0 0.0
    %2102 = vmatprep.subr.mxu0 0.0
    %2103 = vmatpush1.msra.mxu0 0.0
    %2104 = vmatprep.subr.mxu0 0.0
    %2105 = vmatpush1.msra.mxu0 0.0
    %2106 = vmatprep.subr.mxu0 0.0
    %2107 = vmatpush1.msra.mxu0 0.0
    %2108 = vmatprep.subr.mxu0 0.0
    %2109 = vmatpush1.msra.mxu0 0.0
    %2110 = vmatprep.mubr.f32.mxu0 0.0
    %2111 = vmatmul.mubr.f32.gmra.mrb[0].mxu0 %v2041
    %v2112 = vpop.f32.mrb[0].mxu0
    %v2113 = vadd.f32 0.0, %v2112
    %v2114 = vpop.f32.mrb[0].mxu0
    %2115 = vmatprep.mubr.f32.mxu0 0.0
    %2116 = vmatmul.mubr.f32.gmra.mrb[0].mxu0 %v2044
    %v2117 = vpop.f32.mrb[0].mxu0
    %v2118 = vadd.f32 0.0, %v2117
    %v2119 = vpop.f32.mrb[0].mxu0
    %2120 = vdwg.mxu0
    %2121 = vrot.lane.b32.xlu0 %v1687, 112
    %v2122 = vpop.permute.xlu0 %2121
    %2123 = vrot.lane.b32.xlu0 %v1688, 112
    %v2124 = vpop.permute.xlu0 %2123
    %2125 = vrot.lane.b32.xlu0 %v1677, 80
    %v2126 = vpop.permute.xlu0 %2125
    %2127 = vrot.lane.b32.xlu0 %v1683, 80
    %v2128 = vpop.permute.xlu0 %2127
    %v2129 = vsel %vm287, %v2122, 0
    %v2131 = vsel %vm287, %v2124, 0
    %v2133 = vsel %vm287, %v2126, 0
    %v2135 = vsel %vm287, %v2128, 0
    %2137 = vmatprep.subr.mxu0 0.0
    %2138 = vmatpush1.xpose.msra.mxu0 %v2133
    %2139 = vmatprep.subr.mxu0 0.0
    %2140 = vmatpush1.xpose.msra.mxu0 %v2135
    %2141 = vmatprep.subr.mxu0 0.0
    %2142 = vmatpush1.xpose.msra.mxu0 0.0
    %2143 = vmatprep.subr.mxu0 0.0
    %2144 = vmatpush1.xpose.msra.mxu0 0.0
    %2145 = vmatprep.subr.mxu0 0.0
    %2146 = vmatpush1.xpose.msra.mxu0 0.0
    %2147 = vmatprep.subr.mxu0 0.0
    %2148 = vmatpush1.xpose.msra.mxu0 0.0
    %2149 = vmatprep.subr.mxu0 0.0
    %2150 = vmatpush1.xpose.msra.mxu0 0.0
    %2151 = vmatprep.subr.mxu0 0.0
    %2152 = vmatpush1.xpose.msra.mxu0 0.0
    %2153 = vmatprep.subr.mxu0 0.0
    %2154 = vmatpush1.xpose.msra.mxu0 0.0
    %2155 = vmatprep.subr.mxu0 0.0
    %2156 = vmatpush1.xpose.msra.mxu0 0.0
    %2157 = vmatprep.subr.mxu0 0.0
    %2158 = vmatpush1.xpose.msra.mxu0 0.0
    %2159 = vmatprep.subr.mxu0 0.0
    %2160 = vmatpush1.xpose.msra.mxu0 0.0
    %2161 = vmatprep.subr.mxu0 0.0
    %2162 = vmatpush1.xpose.msra.mxu0 0.0
    %2163 = vmatprep.subr.mxu0 0.0
    %2164 = vmatpush1.xpose.msra.mxu0 0.0
    %2165 = vmatprep.subr.mxu0 0.0
    %2166 = vmatpush1.xpose.msra.mxu0 0.0
    %2167 = vmatprep.subr.mxu0 0.0
    %2168 = vmatpush1.xpose.msra.mxu0 0.0
    %2169 = vmatprep.subr.mxu0 0.0
    %2170 = vmatpush1.xpose.msra.mxu0 0.0
    %2171 = vmatprep.subr.mxu0 0.0
    %2172 = vmatpush1.xpose.msra.mxu0 0.0
    %2173 = vmatprep.subr.mxu0 0.0
    %2174 = vmatpush1.xpose.msra.mxu0 0.0
    %2175 = vmatprep.subr.mxu0 0.0
    %2176 = vmatpush1.xpose.msra.mxu0 0.0
    %2177 = vmatprep.subr.mxu0 0.0
    %2178 = vmatpush1.xpose.msra.mxu0 0.0
    %2179 = vmatprep.subr.mxu0 0.0
    %2180 = vmatpush1.xpose.msra.mxu0 0.0
    %2181 = vmatprep.subr.mxu0 0.0
    %2182 = vmatpush1.xpose.msra.mxu0 0.0
    %2183 = vmatprep.subr.mxu0 0.0
    %2184 = vmatpush1.xpose.msra.mxu0 0.0
    %2185 = vmatprep.subr.mxu0 0.0
    %2186 = vmatpush1.xpose.msra.mxu0 0.0
    %2187 = vmatprep.subr.mxu0 0.0
    %2188 = vmatpush1.xpose.msra.mxu0 0.0
    %2189 = vmatprep.subr.mxu0 0.0
    %2190 = vmatpush1.xpose.msra.mxu0 0.0
    %2191 = vmatprep.subr.mxu0 0.0
    %2192 = vmatpush1.xpose.msra.mxu0 0.0
    %2193 = vmatprep.subr.mxu0 0.0
    %2194 = vmatpush1.xpose.msra.mxu0 0.0
    %2195 = vmatprep.subr.mxu0 0.0
    %2196 = vmatpush1.xpose.msra.mxu0 0.0
    %2197 = vmatprep.subr.mxu0 0.0
    %2198 = vmatpush1.xpose.msra.mxu0 0.0
    %2199 = vmatprep.subr.mxu0 0.0
    %2200 = vmatpush1.xpose.msra.mxu0 0.0
    %2201 = vmatprep.mubr.f32.mxu0 0.0
    %2202 = vmatmul.mubr.f32.gmra.mrb[0].mxu0 %v2129
    %v2203 = vpop.f32.mrb[0].mxu0
    %v2204 = vadd.f32 %v92, %v2203
    %v2205 = vpop.f32.mrb[0].mxu0
    %2206 = vmatprep.mubr.f32.mxu0 0.0
    %2207 = vmatmul.mubr.f32.gmra.mrb[0].mxu0 %v2131
    %v2208 = vpop.f32.mrb[0].mxu0
    %v2209 = vadd.f32 %v93, %v2208
    %v2210 = vpop.f32.mrb[0].mxu0
    %2211 = vdwg.mxu0
    %v2212 = vsel %vm373, %v2204, -inf
    %2213 = vmax.xlane.f32.xlu0 %v2212
    %v2214 = vpop.xlane.xlu0 %2213
    %v2215 = vsel %vm373, %v2209, -inf
    %2216 = vmax.xlane.f32.xlu0 %v2215
    %v2217 = vpop.xlane.xlu0 %2216
    %v2218 = vsub.f32 %v2204, %v2214
    %v2219 = vsub.f32 %v2209, %v2217
    %v2220 = vmul.f32 %v2218, 1.442695
    %v2221 = vpow.pop %v2220
    %v2222 = vmul.f32 %v2219, 1.442695
    %v2223 = vpow.pop %v2222
    %v2224 = vsel %vm373, %v2221, 0.0
    %2225 = vadd.xlane.f32.xlu0 %v2224
    %v2226 = vpop.xlane.xlu0 %2225
    %v2227 = vsel %vm373, %v2223, 0.0
    %2228 = vadd.xlane.f32.xlu0 %v2227
    %v2229 = vpop.xlane.xlu0 %2228
    %v2230 = vrcp.pop %v2226
    %v2231 = vmul.f32 %v2221, %v2230
    %v2232 = vrcp.pop %v2229
    %v2233 = vmul.f32 %v2223, %v2232
    %2234 = vrot.lane.b32.xlu0 %v1677, 48
    %v2235 = vpop.permute.xlu0 %2234
    %2236 = vrot.lane.b32.xlu0 %v1683, 48
    %v2237 = vpop.permute.xlu0 %2236
    %v2241 = vsel %vm373, %v2231, 0
    %v2244 = vsel %vm373, %v2233, 0
    %2246 = vmatprep.subr.mxu0 0.0
    %2247 = vmatpush1.msra.mxu0 %v2235
    %2248 = vmatprep.subr.mxu0 0.0
    %2249 = vmatpush1.msra.mxu0 %v2237
    %2250 = vmatprep.subr.mxu0 0.0
    %2251 = vmatpush1.msra.mxu0 0.0
    %2252 = vmatprep.subr.mxu0 0.0
    %2253 = vmatpush1.msra.mxu0 0.0
    %2254 = vmatprep.subr.mxu0 0.0
    %2255 = vmatpush1.msra.mxu0 0.0
    %2256 = vmatprep.subr.mxu0 0.0
    %2257 = vmatpush1.msra.mxu0 0.0
    %2258 = vmatprep.subr.mxu0 0.0
    %2259 = vmatpush1.msra.mxu0 0.0
    %2260 = vmatprep.subr.mxu0 0.0
    %2261 = vmatpush1.msra.mxu0 0.0
    %2262 = vmatprep.subr.mxu0 0.0
    %2263 = vmatpush1.msra.mxu0 0.0
    %2264 = vmatprep.subr.mxu0 0.0
    %2265 = vmatpush1.msra.mxu0 0.0
    %2266 = vmatprep.subr.mxu0 0.0
    %2267 = vmatpush1.msra.mxu0 0.0
    %2268 = vmatprep.subr.mxu0 0.0
    %2269 = vmatpush1.msra.mxu0 0.0
    %2270 = vmatprep.subr.mxu0 0.0
    %2271 = vmatpush1.msra.mxu0 0.0
    %2272 = vmatprep.subr.mxu0 0.0
    %2273 = vmatpush1.msra.mxu0 0.0
    %2274 = vmatprep.subr.mxu0 0.0
    %2275 = vmatpush1.msra.mxu0 0.0
    %2276 = vmatprep.subr.mxu0 0.0
    %2277 = vmatpush1.msra.mxu0 0.0
    %2278 = vmatprep.subr.mxu0 0.0
    %2279 = vmatpush1.msra.mxu0 0.0
    %2280 = vmatprep.subr.mxu0 0.0
    %2281 = vmatpush1.msra.mxu0 0.0
    %2282 = vmatprep.subr.mxu0 0.0
    %2283 = vmatpush1.msra.mxu0 0.0
    %2284 = vmatprep.subr.mxu0 0.0
    %2285 = vmatpush1.msra.mxu0 0.0
    %2286 = vmatprep.subr.mxu0 0.0
    %2287 = vmatpush1.msra.mxu0 0.0
    %2288 = vmatprep.subr.mxu0 0.0
    %2289 = vmatpush1.msra.mxu0 0.0
    %2290 = vmatprep.subr.mxu0 0.0
    %2291 = vmatpush1.msra.mxu0 0.0
    %2292 = vmatprep.subr.mxu0 0.0
    %2293 = vmatpush1.msra.mxu0 0.0
    %2294 = vmatprep.subr.mxu0 0.0
    %2295 = vmatpush1.msra.mxu0 0.0
    %2296 = vmatprep.subr.mxu0 0.0
    %2297 = vmatpush1.msra.mxu0 0.0
    %2298 = vmatprep.subr.mxu0 0.0
    %2299 = vmatpush1.msra.mxu0 0.0
    %2300 = vmatprep.subr.mxu0 0.0
    %2301 = vmatpush1.msra.mxu0 0.0
    %2302 = vmatprep.subr.mxu0 0.0
    %2303 = vmatpush1.msra.mxu0 0.0
    %2304 = vmatprep.subr.mxu0 0.0
    %2305 = vmatpush1.msra.mxu0 0.0
    %2306 = vmatprep.subr.mxu0 0.0
    %2307 = vmatpush1.msra.mxu0 0.0
    %2308 = vmatprep.subr.mxu0 0.0
    %2309 = vmatpush1.msra.mxu0 0.0
    %2310 = vmatprep.mubr.f32.mxu0 0.0
    %2311 = vmatmul.mubr.f32.gmra.mrb[0].mxu0 %v2241
    %v2312 = vpop.f32.mrb[0].mxu0
    %v2313 = vadd.f32 0.0, %v2312
    %v2314 = vpop.f32.mrb[0].mxu0
    %2315 = vmatprep.mubr.f32.mxu0 0.0
    %2316 = vmatmul.mubr.f32.gmra.mrb[0].mxu0 %v2244
    %v2317 = vpop.f32.mrb[0].mxu0
    %v2318 = vadd.f32 0.0, %v2317
    %v2319 = vpop.f32.mrb[0].mxu0
    %2320 = vdwg.mxu0
    %2321 = vrot.lane.b32.xlu0 %v1687, 104
    %v2322 = vpop.permute.xlu0 %2321
    %2323 = vrot.lane.b32.xlu0 %v1688, 104
    %v2324 = vpop.permute.xlu0 %2323
    %2325 = vrot.lane.b32.xlu0 %v1677, 72
    %v2326 = vpop.permute.xlu0 %2325
    %2327 = vrot.lane.b32.xlu0 %v1683, 72
    %v2328 = vpop.permute.xlu0 %2327
    %v2329 = vsel %vm287, %v2322, 0
    %v2331 = vsel %vm287, %v2324, 0
    %v2333 = vsel %vm287, %v2326, 0
    %v2335 = vsel %vm287, %v2328, 0
    %2337 = vmatprep.subr.mxu0 0.0
    %2338 = vmatpush1.xpose.msra.mxu0 %v2333
    %2339 = vmatprep.subr.mxu0 0.0
    %2340 = vmatpush1.xpose.msra.mxu0 %v2335
    %2341 = vmatprep.subr.mxu0 0.0
    %2342 = vmatpush1.xpose.msra.mxu0 0.0
    %2343 = vmatprep.subr.mxu0 0.0
    %2344 = vmatpush1.xpose.msra.mxu0 0.0
    %2345 = vmatprep.subr.mxu0 0.0
    %2346 = vmatpush1.xpose.msra.mxu0 0.0
    %2347 = vmatprep.subr.mxu0 0.0
    %2348 = vmatpush1.xpose.msra.mxu0 0.0
    %2349 = vmatprep.subr.mxu0 0.0
    %2350 = vmatpush1.xpose.msra.mxu0 0.0
    %2351 = vmatprep.subr.mxu0 0.0
    %2352 = vmatpush1.xpose.msra.mxu0 0.0
    %2353 = vmatprep.subr.mxu0 0.0
    %2354 = vmatpush1.xpose.msra.mxu0 0.0
    %2355 = vmatprep.subr.mxu0 0.0
    %2356 = vmatpush1.xpose.msra.mxu0 0.0
    %2357 = vmatprep.subr.mxu0 0.0
    %2358 = vmatpush1.xpose.msra.mxu0 0.0
    %2359 = vmatprep.subr.mxu0 0.0
    %2360 = vmatpush1.xpose.msra.mxu0 0.0
    %2361 = vmatprep.subr.mxu0 0.0
    %2362 = vmatpush1.xpose.msra.mxu0 0.0
    %2363 = vmatprep.subr.mxu0 0.0
    %2364 = vmatpush1.xpose.msra.mxu0 0.0
    %2365 = vmatprep.subr.mxu0 0.0
    %2366 = vmatpush1.xpose.msra.mxu0 0.0
    %2367 = vmatprep.subr.mxu0 0.0
    %2368 = vmatpush1.xpose.msra.mxu0 0.0
    %2369 = vmatprep.subr.mxu0 0.0
    %2370 = vmatpush1.xpose.msra.mxu0 0.0
    %2371 = vmatprep.subr.mxu0 0.0
    %2372 = vmatpush1.xpose.msra.mxu0 0.0
    %2373 = vmatprep.subr.mxu0 0.0
    %2374 = vmatpush1.xpose.msra.mxu0 0.0
    %2375 = vmatprep.subr.mxu0 0.0
    %2376 = vmatpush1.xpose.msra.mxu0 0.0
    %2377 = vmatprep.subr.mxu0 0.0
    %2378 = vmatpush1.xpose.msra.mxu0 0.0
    %2379 = vmatprep.subr.mxu0 0.0
    %2380 = vmatpush1.xpose.msra.mxu0 0.0
    %2381 = vmatprep.subr.mxu0 0.0
    %2382 = vmatpush1.xpose.msra.mxu0 0.0
    %2383 = vmatprep.subr.mxu0 0.0
    %2384 = vmatpush1.xpose.msra.mxu0 0.0
    %2385 = vmatprep.subr.mxu0 0.0
    %2386 = vmatpush1.xpose.msra.mxu0 0.0
    %2387 = vmatprep.subr.mxu0 0.0
    %2388 = vmatpush1.xpose.msra.mxu0 0.0
    %2389 = vmatprep.subr.mxu0 0.0
    %2390 = vmatpush1.xpose.msra.mxu0 0.0
    %2391 = vmatprep.subr.mxu0 0.0
    %2392 = vmatpush1.xpose.msra.mxu0 0.0
    %2393 = vmatprep.subr.mxu0 0.0
    %2394 = vmatpush1.xpose.msra.mxu0 0.0
    %2395 = vmatprep.subr.mxu0 0.0
    %2396 = vmatpush1.xpose.msra.mxu0 0.0
    %2397 = vmatprep.subr.mxu0 0.0
    %2398 = vmatpush1.xpose.msra.mxu0 0.0
    %2399 = vmatprep.subr.mxu0 0.0
    %2400 = vmatpush1.xpose.msra.mxu0 0.0
    %2401 = vmatprep.mubr.f32.mxu0 0.0
    %2402 = vmatmul.mubr.f32.gmra.mrb[0].mxu0 %v2329
    %v2403 = vpop.f32.mrb[0].mxu0
    %v2404 = vadd.f32 %v92, %v2403
    %v2405 = vpop.f32.mrb[0].mxu0
    %2406 = vmatprep.mubr.f32.mxu0 0.0
    %2407 = vmatmul.mubr.f32.gmra.mrb[0].mxu0 %v2331
    %v2408 = vpop.f32.mrb[0].mxu0
    %v2409 = vadd.f32 %v93, %v2408
    %v2410 = vpop.f32.mrb[0].mxu0
    %2411 = vdwg.mxu0
    %v2412 = vsel %vm373, %v2404, -inf
    %2413 = vmax.xlane.f32.xlu0 %v2412
    %v2414 = vpop.xlane.xlu0 %2413
    %v2415 = vsel %vm373, %v2409, -inf
    %2416 = vmax.xlane.f32.xlu0 %v2415
    %v2417 = vpop.xlane.xlu0 %2416
    %v2418 = vsub.f32 %v2404, %v2414
    %v2419 = vsub.f32 %v2409, %v2417
    %v2420 = vmul.f32 %v2418, 1.442695
    %v2421 = vpow.pop %v2420
    %v2422 = vmul.f32 %v2419, 1.442695
    %v2423 = vpow.pop %v2422
    %v2424 = vsel %vm373, %v2421, 0.0
    %2425 = vadd.xlane.f32.xlu0 %v2424
    %v2426 = vpop.xlane.xlu0 %2425
    %v2427 = vsel %vm373, %v2423, 0.0
    %2428 = vadd.xlane.f32.xlu0 %v2427
    %v2429 = vpop.xlane.xlu0 %2428
    %v2430 = vrcp.pop %v2426
    %v2431 = vmul.f32 %v2421, %v2430
    %v2432 = vrcp.pop %v2429
    %v2433 = vmul.f32 %v2423, %v2432
    %2434 = vrot.lane.b32.xlu0 %v1677, 40
    %v2435 = vpop.permute.xlu0 %2434
    %2436 = vrot.lane.b32.xlu0 %v1683, 40
    %v2437 = vpop.permute.xlu0 %2436
    %v2441 = vsel %vm373, %v2431, 0
    %v2444 = vsel %vm373, %v2433, 0
    %2446 = vmatprep.subr.mxu0 0.0
    %2447 = vmatpush1.msra.mxu0 %v2435
    %2448 = vmatprep.subr.mxu0 0.0
    %2449 = vmatpush1.msra.mxu0 %v2437
    %2450 = vmatprep.subr.mxu0 0.0
    %2451 = vmatpush1.msra.mxu0 0.0
    %2452 = vmatprep.subr.mxu0 0.0
    %2453 = vmatpush1.msra.mxu0 0.0
    %2454 = vmatprep.subr.mxu0 0.0
    %2455 = vmatpush1.msra.mxu0 0.0
    %2456 = vmatprep.subr.mxu0 0.0
    %2457 = vmatpush1.msra.mxu0 0.0
    %2458 = vmatprep.subr.mxu0 0.0
    %2459 = vmatpush1.msra.mxu0 0.0
    %2460 = vmatprep.subr.mxu0 0.0
    %2461 = vmatpush1.msra.mxu0 0.0
    %2462 = vmatprep.subr.mxu0 0.0
    %2463 = vmatpush1.msra.mxu0 0.0
    %2464 = vmatprep.subr.mxu0 0.0
    %2465 = vmatpush1.msra.mxu0 0.0
    %2466 = vmatprep.subr.mxu0 0.0
    %2467 = vmatpush1.msra.mxu0 0.0
    %2468 = vmatprep.subr.mxu0 0.0
    %2469 = vmatpush1.msra.mxu0 0.0
    %2470 = vmatprep.subr.mxu0 0.0
    %2471 = vmatpush1.msra.mxu0 0.0
    %2472 = vmatprep.subr.mxu0 0.0
    %2473 = vmatpush1.msra.mxu0 0.0
    %2474 = vmatprep.subr.mxu0 0.0
    %2475 = vmatpush1.msra.mxu0 0.0
    %2476 = vmatprep.subr.mxu0 0.0
    %2477 = vmatpush1.msra.mxu0 0.0
    %2478 = vmatprep.subr.mxu0 0.0
    %2479 = vmatpush1.msra.mxu0 0.0
    %2480 = vmatprep.subr.mxu0 0.0
    %2481 = vmatpush1.msra.mxu0 0.0
    %2482 = vmatprep.subr.mxu0 0.0
    %2483 = vmatpush1.msra.mxu0 0.0
    %2484 = vmatprep.subr.mxu0 0.0
    %2485 = vmatpush1.msra.mxu0 0.0
    %2486 = vmatprep.subr.mxu0 0.0
    %2487 = vmatpush1.msra.mxu0 0.0
    %2488 = vmatprep.subr.mxu0 0.0
    %2489 = vmatpush1.msra.mxu0 0.0
    %2490 = vmatprep.subr.mxu0 0.0
    %2491 = vmatpush1.msra.mxu0 0.0
    %2492 = vmatprep.subr.mxu0 0.0
    %2493 = vmatpush1.msra.mxu0 0.0
    %2494 = vmatprep.subr.mxu0 0.0
    %2495 = vmatpush1.msra.mxu0 0.0
    %2496 = vmatprep.subr.mxu0 0.0
    %2497 = vmatpush1.msra.mxu0 0.0
    %2498 = vmatprep.subr.mxu0 0.0
    %2499 = vmatpush1.msra.mxu0 0.0
    %2500 = vmatprep.subr.mxu0 0.0
    %2501 = vmatpush1.msra.mxu0 0.0
    %2502 = vmatprep.subr.mxu0 0.0
    %2503 = vmatpush1.msra.mxu0 0.0
    %2504 = vmatprep.subr.mxu0 0.0
    %2505 = vmatpush1.msra.mxu0 0.0
    %2506 = vmatprep.subr.mxu0 0.0
    %2507 = vmatpush1.msra.mxu0 0.0
    %2508 = vmatprep.subr.mxu0 0.0
    %2509 = vmatpush1.msra.mxu0 0.0
    %2510 = vmatprep.mubr.f32.mxu0 0.0
    %2511 = vmatmul.mubr.f32.gmra.mrb[0].mxu0 %v2441
    %v2512 = vpop.f32.mrb[0].mxu0
    %v2513 = vadd.f32 0.0, %v2512
    %v2514 = vpop.f32.mrb[0].mxu0
    %2515 = vmatprep.mubr.f32.mxu0 0.0
    %2516 = vmatmul.mubr.f32.gmra.mrb[0].mxu0 %v2444
    %v2517 = vpop.f32.mrb[0].mxu0
    %v2518 = vadd.f32 0.0, %v2517
    %v2519 = vpop.f32.mrb[0].mxu0
    %2520 = vdwg.mxu0
    %2523 = vrot.lane.b32.xlu0 %v2113, 8
    %v2524 = vpop.permute.xlu0 %2523
    %2525 = vrot.lane.b32.xlu0 %v2118, 8
    %v2526 = vpop.permute.xlu0 %2525
    %2531 = vrot.lane.b32.xlu0 %v2313, 16
    %v2532 = vpop.permute.xlu0 %2531
    %2533 = vrot.lane.b32.xlu0 %v2318, 16
    %v2534 = vpop.permute.xlu0 %2533
    %2539 = vrot.lane.b32.xlu0 %v2513, 24
    %v2540 = vpop.permute.xlu0 %2539
    %2541 = vrot.lane.b32.xlu0 %v2518, 24
    %v2542 = vpop.permute.xlu0 %2541
    %v2545 = vsel %vm287, %v1913, %v2524
    %v2546 = vsel %vm287, %v1918, %v2526
    %v2547 = vsel %vm373, %v2545, %v2532
    %v2548 = vsel %vm373, %v2546, %v2534
    %v2549 = vsel %vm1105, %v2547, %v2540
    %v2550 = vsel %vm1105, %v2548, %v2542
    %s2551 = scalar_lea.vmem %s5, 32
    %v2552 = vld [vmem:[%s2551] sm:$0xff]
    %v2553 = vld [vmem:[%s2551 + $0x8] sm:$0xff]
    %v2554 = vld [vmem:[%s2551 + $0x10] sm:$0xff]
    %v2555 = vld [vmem:[%s2551 + $0x18] sm:$0xff]
    %s2556 = scalar_lea.vmem %s6, 1
    %v2557 = vld [vmem:[%s2556] sm:$0x1]
    %v2559 = vlaneseq
    %v2560 = vshrl.u32 %v2559, 7
    %v2561 = vsub.s32 0, %v2560
    %v2562 = vrot.slane %v2557, %v2561
    %v2565 = vsel %vm96, %v2549, 0
    %v2568 = vsel %vm96, %v2550, 0
    %2570 = vmatprep.subr.mxu0 0.0
    %2571 = vmatpush1.msra.mxu0 %v2552
    %2572 = vmatprep.subr.mxu0 0.0
    %2573 = vmatpush1.msra.mxu0 %v2553
    %2574 = vmatprep.subr.mxu0 0.0
    %2575 = vmatpush1.msra.mxu0 %v2554
    %2576 = vmatprep.subr.mxu0 0.0
    %2577 = vmatpush1.msra.mxu0 %v2555
    %2578 = vmatprep.subr.mxu0 0.0
    %2579 = vmatpush1.msra.mxu0 0.0
    %2580 = vmatprep.subr.mxu0 0.0
    %2581 = vmatpush1.msra.mxu0 0.0
    %2582 = vmatprep.subr.mxu0 0.0
    %2583 = vmatpush1.msra.mxu0 0.0
    %2584 = vmatprep.subr.mxu0 0.0
    %2585 = vmatpush1.msra.mxu0 0.0
    %2586 = vmatprep.subr.mxu0 0.0
    %2587 = vmatpush1.msra.mxu0 0.0
    %2588 = vmatprep.subr.mxu0 0.0
    %2589 = vmatpush1.msra.mxu0 0.0
    %2590 = vmatprep.subr.mxu0 0.0
    %2591 = vmatpush1.msra.mxu0 0.0
    %2592 = vmatprep.subr.mxu0 0.0
    %2593 = vmatpush1.msra.mxu0 0.0
    %2594 = vmatprep.subr.mxu0 0.0
    %2595 = vmatpush1.msra.mxu0 0.0
    %2596 = vmatprep.subr.mxu0 0.0
    %2597 = vmatpush1.msra.mxu0 0.0
    %2598 = vmatprep.subr.mxu0 0.0
    %2599 = vmatpush1.msra.mxu0 0.0
    %2600 = vmatprep.subr.mxu0 0.0
    %2601 = vmatpush1.msra.mxu0 0.0
    %2602 = vmatprep.subr.mxu0 0.0
    %2603 = vmatpush1.msra.mxu0 0.0
    %2604 = vmatprep.subr.mxu0 0.0
    %2605 = vmatpush1.msra.mxu0 0.0
    %2606 = vmatprep.subr.mxu0 0.0
    %2607 = vmatpush1.msra.mxu0 0.0
    %2608 = vmatprep.subr.mxu0 0.0
    %2609 = vmatpush1.msra.mxu0 0.0
    %2610 = vmatprep.subr.mxu0 0.0
    %2611 = vmatpush1.msra.mxu0 0.0
    %2612 = vmatprep.subr.mxu0 0.0
    %2613 = vmatpush1.msra.mxu0 0.0
    %2614 = vmatprep.subr.mxu0 0.0
    %2615 = vmatpush1.msra.mxu0 0.0
    %2616 = vmatprep.subr.mxu0 0.0
    %2617 = vmatpush1.msra.mxu0 0.0
    %2618 = vmatprep.subr.mxu0 0.0
    %2619 = vmatpush1.msra.mxu0 0.0
    %2620 = vmatprep.subr.mxu0 0.0
    %2621 = vmatpush1.msra.mxu0 0.0
    %2622 = vmatprep.subr.mxu0 0.0
    %2623 = vmatpush1.msra.mxu0 0.0
    %2624 = vmatprep.subr.mxu0 0.0
    %2625 = vmatpush1.msra.mxu0 0.0
    %2626 = vmatprep.subr.mxu0 0.0
    %2627 = vmatpush1.msra.mxu0 0.0
    %2628 = vmatprep.subr.mxu0 0.0
    %2629 = vmatpush1.msra.mxu0 0.0
    %2630 = vmatprep.subr.mxu0 0.0
    %2631 = vmatpush1.msra.mxu0 0.0
    %2632 = vmatprep.subr.mxu0 0.0
    %2633 = vmatpush1.msra.mxu0 0.0
    %2634 = vmatprep.mubr.f32.mxu0 0.0
    %2635 = vmatmul.mubr.f32.gmra.mrb[0].mxu0 %v2565
    %v2636 = vpop.f32.mrb[0].mxu0
    %v2637 = vadd.f32 %v2562, %v2636
    %v2638 = vpop.f32.mrb[0].mxu0
    %2639 = vmatprep.mubr.f32.mxu0 0.0
    %2640 = vmatmul.mubr.f32.gmra.mrb[0].mxu0 %v2568
    %v2641 = vpop.f32.mrb[0].mxu0
    %v2642 = vadd.f32 %v2562, %v2641
    %v2643 = vpop.f32.mrb[0].mxu0
    %2644 = vdwg.mxu0
    %v2645 = vmul.f32 %v1710, %v2637
    %v2646 = vmul.f32 %v1712, %v2642
    %v2647 = vtanh.pop %v2645
    %v2648 = vtanh.pop %v2646
    %v2649 = vsub.f32 1.0, %v1698
    %v2650 = vsub.f32 1.0, %v1700
    %v2651 = vmul.f32 %v2649, %v1510
    %v2652 = vmul.f32 %v2650, %v1511
    %2655 = vrot.lane.b32.xlu0 %v2647, 96
    %v2656 = vpop.permute.xlu0 %2655
    %2657 = vrot.lane.b32.xlu0 %v2648, 96
    %v2658 = vpop.permute.xlu0 %2657
    %v2661 = vmul.f32 %v1698, %v2656
    %v2662 = vmul.f32 %v1700, %v2658
    %v2663 = vadd.f32 %v2651, %v2661
    %v2664 = vadd.f32 %v2652, %v2662
    %s2665 = scalar_lea.vmem %s7, 1
    %v2666 = vld [vmem:[%s2665] sm:$0x1]
    %s2667 = scalar_lea.vmem %s8, 1
    %v2668 = vld [vmem:[%s2667] sm:$0x1]
    %2671 = vrot.lane.b32.xlu0 %v2663, 32
    %v2672 = vpop.permute.xlu0 %2671
    %2673 = vrot.lane.b32.xlu0 %v2664, 32
    %v2674 = vpop.permute.xlu0 %2673
    %v2677 = vsel %vm96, %v2672, 0.0
    %2678 = vadd.xlane.f32.xlu0 %v2677
    %v2679 = vpop.xlane.xlu0 %2678
    %v2680 = vsel %vm96, %v2674, 0.0
    %2681 = vadd.xlane.f32.xlu0 %v2680
    %v2682 = vpop.xlane.xlu0 %2681
    %v2683 = vmul.f32 %v2679, %v103
    %v2684 = vmul.f32 %v2682, %v103
    %v2685 = vsub.f32 %v2663, %v2683
    %v2686 = vsub.f32 %v2664, %v2684
    %v2687 = vmul.f32 %v2685, %v2685
    %v2688 = vmul.f32 %v2686, %v2686
    %2691 = vrot.lane.b32.xlu0 %v2687, 32
    %v2692 = vpop.permute.xlu0 %2691
    %2693 = vrot.lane.b32.xlu0 %v2688, 32
    %v2694 = vpop.permute.xlu0 %2693
    %v2697 = vsel %vm96, %v2692, 0.0
    %2698 = vadd.xlane.f32.xlu0 %v2697
    %v2699 = vpop.xlane.xlu0 %2698
    %v2700 = vsel %vm96, %v2694, 0.0
    %2701 = vadd.xlane.f32.xlu0 %v2700
    %v2702 = vpop.xlane.xlu0 %2701
    %v2703 = vmul.f32 %v2699, %v103
    %v2704 = vmul.f32 %v2702, %v103
    %v2705 = vadd.f32 %v2703, 1e-05
    %v2706 = vadd.f32 %v2704, 1e-05
    %v2707 = vrsqrt.pop %v2705
    %v2708 = vrsqrt.pop %v2706
    %v2709 = vmul.f32 %v2685, %v2707
    %v2710 = vmul.f32 %v2686, %v2708
    %v2712 = vlaneseq
    %v2713 = vshrl.u32 %v2712, 7
    %v2714 = vsub.s32 0, %v2713
    %v2715 = vrot.slane %v2666, %v2714
    %2716 = vrot.lane.b32.xlu0 %v2715, 96
    %v2717 = vpop.permute.xlu0 %2716
    %v2719 = vmul.f32 %v2709, %v2717
    %v2720 = vmul.f32 %v2710, %v2717
    %v2722 = vlaneseq
    %v2723 = vshrl.u32 %v2722, 7
    %v2724 = vsub.s32 0, %v2723
    %v2725 = vrot.slane %v2668, %v2724
    %2726 = vrot.lane.b32.xlu0 %v2725, 96
    %v2727 = vpop.permute.xlu0 %2726
    %v2729 = vadd.f32 %v2719, %v2727
    %v2730 = vadd.f32 %v2720, %v2727
    %s2731 = scalar_lea.vmem %s9, 32
    %v2732 = vld [vmem:[%s2731] sm:$0xff]
    %v2733 = vld [vmem:[%s2731 + $0x8] sm:$0xff]
    %v2734 = vld [vmem:[%s2731 + $0x10] sm:$0xff]
    %v2735 = vld [vmem:[%s2731 + $0x18] sm:$0xff]
    %s2736 = scalar_lea.vmem %s10, 1
    %v2737 = vld [vmem:[%s2736] sm:$0x1]
    %v2739 = vlaneseq
    %v2740 = vshrl.u32 %v2739, 7
    %v2741 = vsub.s32 0, %v2740
    %v2742 = vrot.slane %v2737, %v2741
    %2746 = vrot.lane.b32.xlu0 %v2729, 32
    %v2747 = vpop.permute.xlu0 %2746
    %2748 = vrot.lane.b32.xlu0 %v2730, 32
    %v2749 = vpop.permute.xlu0 %2748
    %v2750 = vsel %vm96, %v2747, 0
    %v2752 = vsel %vm96, %v2749, 0
    %2754 = vmatprep.subr.mxu0 0.0
    %2755 = vmatpush1.msra.mxu0 %v2732
    %2756 = vmatprep.subr.mxu0 0.0
    %2757 = vmatpush1.msra.mxu0 %v2733
    %2758 = vmatprep.subr.mxu0 0.0
    %2759 = vmatpush1.msra.mxu0 %v2734
    %2760 = vmatprep.subr.mxu0 0.0
    %2761 = vmatpush1.msra.mxu0 %v2735
    %2762 = vmatprep.subr.mxu0 0.0
    %2763 = vmatpush1.msra.mxu0 0.0
    %2764 = vmatprep.subr.mxu0 0.0
    %2765 = vmatpush1.msra.mxu0 0.0
    %2766 = vmatprep.subr.mxu0 0.0
    %2767 = vmatpush1.msra.mxu0 0.0
    %2768 = vmatprep.subr.mxu0 0.0
    %2769 = vmatpush1.msra.mxu0 0.0
    %2770 = vmatprep.subr.mxu0 0.0
    %2771 = vmatpush1.msra.mxu0 0.0
    %2772 = vmatprep.subr.mxu0 0.0
    %2773 = vmatpush1.msra.mxu0 0.0
    %2774 = vmatprep.subr.mxu0 0.0
    %2775 = vmatpush1.msra.mxu0 0.0
    %2776 = vmatprep.subr.mxu0 0.0
    %2777 = vmatpush1.msra.mxu0 0.0
    %2778 = vmatprep.subr.mxu0 0.0
    %2779 = vmatpush1.msra.mxu0 0.0
    %2780 = vmatprep.subr.mxu0 0.0
    %2781 = vmatpush1.msra.mxu0 0.0
    %2782 = vmatprep.subr.mxu0 0.0
    %2783 = vmatpush1.msra.mxu0 0.0
    %2784 = vmatprep.subr.mxu0 0.0
    %2785 = vmatpush1.msra.mxu0 0.0
    %2786 = vmatprep.subr.mxu0 0.0
    %2787 = vmatpush1.msra.mxu0 0.0
    %2788 = vmatprep.subr.mxu0 0.0
    %2789 = vmatpush1.msra.mxu0 0.0
    %2790 = vmatprep.subr.mxu0 0.0
    %2791 = vmatpush1.msra.mxu0 0.0
    %2792 = vmatprep.subr.mxu0 0.0
    %2793 = vmatpush1.msra.mxu0 0.0
    %2794 = vmatprep.subr.mxu0 0.0
    %2795 = vmatpush1.msra.mxu0 0.0
    %2796 = vmatprep.subr.mxu0 0.0
    %2797 = vmatpush1.msra.mxu0 0.0
    %2798 = vmatprep.subr.mxu0 0.0
    %2799 = vmatpush1.msra.mxu0 0.0
    %2800 = vmatprep.subr.mxu0 0.0
    %2801 = vmatpush1.msra.mxu0 0.0
    %2802 = vmatprep.subr.mxu0 0.0
    %2803 = vmatpush1.msra.mxu0 0.0
    %2804 = vmatprep.subr.mxu0 0.0
    %2805 = vmatpush1.msra.mxu0 0.0
    %2806 = vmatprep.subr.mxu0 0.0
    %2807 = vmatpush1.msra.mxu0 0.0
    %2808 = vmatprep.subr.mxu0 0.0
    %2809 = vmatpush1.msra.mxu0 0.0
    %2810 = vmatprep.subr.mxu0 0.0
    %2811 = vmatpush1.msra.mxu0 0.0
    %2812 = vmatprep.subr.mxu0 0.0
    %2813 = vmatpush1.msra.mxu0 0.0
    %2814 = vmatprep.subr.mxu0 0.0
    %2815 = vmatpush1.msra.mxu0 0.0
    %2816 = vmatprep.subr.mxu0 0.0
    %2817 = vmatpush1.msra.mxu0 0.0
    %2818 = vmatprep.mubr.f32.mxu0 0.0
    %2819 = vmatmul.mubr.f32.gmra.mrb[0].mxu0 %v2750
    %v2820 = vpop.f32.mrb[0].mxu0
    %v2821 = vadd.f32 %v2742, %v2820
    %v2822 = vpop.f32.mrb[0].mxu0
    %2823 = vmatprep.mubr.f32.mxu0 0.0
    %2824 = vmatmul.mubr.f32.gmra.mrb[0].mxu0 %v2752
    %v2825 = vpop.f32.mrb[0].mxu0
    %v2826 = vadd.f32 %v2742, %v2825
    %v2827 = vpop.f32.mrb[0].mxu0
    %2828 = vdwg.mxu0
    %v2829 = vmul.f32 %v2821, 0.5
    %v2830 = vmul.f32 %v2826, 0.5
    %v2831 = vmul.f32 %v2821, 0.70710677
    %v2832 = vmul.f32 %v2826, 0.70710677
    %v2833 = verf.f32.pop %v2831
    %v2834 = verf.f32.pop %v2832
    %v2835 = vadd.f32 %v2833, 1.0
    %v2836 = vadd.f32 %v2834, 1.0
    %v2837 = vmul.f32 %v2829, %v2835
    %v2838 = vmul.f32 %v2830, %v2836
    %s2839 = scalar_lea.vmem %s11, 128
    %v2840 = vld [vmem:[%s2839] sm:$0xff]
    %v2841 = vld [vmem:[%s2839 + $0x8] sm:$0xff]
    %v2842 = vld [vmem:[%s2839 + $0x10] sm:$0xff]
    %v2843 = vld [vmem:[%s2839 + $0x18] sm:$0xff]
    %v2844 = vld [vmem:[%s2839 + $0x20] sm:$0xff]
    %v2845 = vld [vmem:[%s2839 + $0x28] sm:$0xff]
    %v2846 = vld [vmem:[%s2839 + $0x30] sm:$0xff]
    %v2847 = vld [vmem:[%s2839 + $0x38] sm:$0xff]
    %v2848 = vld [vmem:[%s2839 + $0x40] sm:$0xff]
    %v2849 = vld [vmem:[%s2839 + $0x48] sm:$0xff]
    %v2850 = vld [vmem:[%s2839 + $0x50] sm:$0xff]
    %v2851 = vld [vmem:[%s2839 + $0x58] sm:$0xff]
    %v2852 = vld [vmem:[%s2839 + $0x60] sm:$0xff]
    %v2853 = vld [vmem:[%s2839 + $0x68] sm:$0xff]
    %v2854 = vld [vmem:[%s2839 + $0x70] sm:$0xff]
    %v2855 = vld [vmem:[%s2839 + $0x78] sm:$0xff]
    %s2856 = scalar_lea.vmem %s12, 1
    %v2857 = vld [vmem:[%s2856] sm:$0x1]
    %v2859 = vlaneseq
    %v2860 = vshrl.u32 %v2859, 7
    %v2861 = vsub.s32 0, %v2860
    %v2862 = vrot.slane %v2857, %v2861
    %2864 = vmatprep.subr.mxu0 0.0
    %2865 = vmatpush1.msra.mxu0 %v2840
    %2866 = vmatprep.subr.mxu0 0.0
    %2867 = vmatpush1.msra.mxu0 %v2841
    %2868 = vmatprep.subr.mxu0 0.0
    %2869 = vmatpush1.msra.mxu0 %v2842
    %2870 = vmatprep.subr.mxu0 0.0
    %2871 = vmatpush1.msra.mxu0 %v2843
    %2872 = vmatprep.subr.mxu0 0.0
    %2873 = vmatpush1.msra.mxu0 %v2844
    %2874 = vmatprep.subr.mxu0 0.0
    %2875 = vmatpush1.msra.mxu0 %v2845
    %2876 = vmatprep.subr.mxu0 0.0
    %2877 = vmatpush1.msra.mxu0 %v2846
    %2878 = vmatprep.subr.mxu0 0.0
    %2879 = vmatpush1.msra.mxu0 %v2847
    %2880 = vmatprep.subr.mxu0 0.0
    %2881 = vmatpush1.msra.mxu0 %v2848
    %2882 = vmatprep.subr.mxu0 0.0
    %2883 = vmatpush1.msra.mxu0 %v2849
    %2884 = vmatprep.subr.mxu0 0.0
    %2885 = vmatpush1.msra.mxu0 %v2850
    %2886 = vmatprep.subr.mxu0 0.0
    %2887 = vmatpush1.msra.mxu0 %v2851
    %2888 = vmatprep.subr.mxu0 0.0
    %2889 = vmatpush1.msra.mxu0 %v2852
    %2890 = vmatprep.subr.mxu0 0.0
    %2891 = vmatpush1.msra.mxu0 %v2853
    %2892 = vmatprep.subr.mxu0 0.0
    %2893 = vmatpush1.msra.mxu0 %v2854
    %2894 = vmatprep.subr.mxu0 0.0
    %2895 = vmatpush1.msra.mxu0 %v2855
    %2896 = vmatprep.subr.mxu0 0.0
    %2897 = vmatpush1.msra.mxu0 0.0
    %2898 = vmatprep.subr.mxu0 0.0
    %2899 = vmatpush1.msra.mxu0 0.0
    %2900 = vmatprep.subr.mxu0 0.0
    %2901 = vmatpush1.msra.mxu0 0.0
    %2902 = vmatprep.subr.mxu0 0.0
    %2903 = vmatpush1.msra.mxu0 0.0
    %2904 = vmatprep.subr.mxu0 0.0
    %2905 = vmatpush1.msra.mxu0 0.0
    %2906 = vmatprep.subr.mxu0 0.0
    %2907 = vmatpush1.msra.mxu0 0.0
    %2908 = vmatprep.subr.mxu0 0.0
    %2909 = vmatpush1.msra.mxu0 0.0
    %2910 = vmatprep.subr.mxu0 0.0
    %2911 = vmatpush1.msra.mxu0 0.0
    %2912 = vmatprep.subr.mxu0 0.0
    %2913 = vmatpush1.msra.mxu0 0.0
    %2914 = vmatprep.subr.mxu0 0.0
    %2915 = vmatpush1.msra.mxu0 0.0
    %2916 = vmatprep.subr.mxu0 0.0
    %2917 = vmatpush1.msra.mxu0 0.0
    %2918 = vmatprep.subr.mxu0 0.0
    %2919 = vmatpush1.msra.mxu0 0.0
    %2920 = vmatprep.subr.mxu0 0.0
    %2921 = vmatpush1.msra.mxu0 0.0
    %2922 = vmatprep.subr.mxu0 0.0
    %2923 = vmatpush1.msra.mxu0 0.0
    %2924 = vmatprep.subr.mxu0 0.0
    %2925 = vmatpush1.msra.mxu0 0.0
    %2926 = vmatprep.subr.mxu0 0.0
    %2927 = vmatpush1.msra.mxu0 0.0
    %2928 = vmatprep.mubr.f32.mxu0 0.0
    %2929 = vmatmul.mubr.f32.gmra.mrb[0].mxu0 %v2837
    %v2930 = vpop.f32.mrb[0].mxu0
    %v2931 = vadd.f32 %v2862, %v2930
    %v2932 = vpop.f32.mrb[0].mxu0
    %2933 = vmatprep.mubr.f32.mxu0 0.0
    %2934 = vmatmul.mubr.f32.gmra.mrb[0].mxu0 %v2838
    %v2935 = vpop.f32.mrb[0].mxu0
    %v2936 = vadd.f32 %v2862, %v2935
    %v2937 = vpop.f32.mrb[0].mxu0
    %2938 = vdwg.mxu0
    %v2939 = vmul.f32 %v2649, %v2663
    %v2940 = vmul.f32 %v2650, %v2664
    %2943 = vrot.lane.b32.xlu0 %v2931, 96
    %v2944 = vpop.permute.xlu0 %2943
    %2945 = vrot.lane.b32.xlu0 %v2936, 96
    %v2946 = vpop.permute.xlu0 %2945
    %v2949 = vmul.f32 %v1698, %v2944
    %v2950 = vmul.f32 %v1700, %v2946
    %v2951 = vadd.f32 %v2939, %v2949
    %v2952 = vadd.f32 %v2940, %v2950
    %v2953 = vadd.f32 %v2951, %v1209
    %v2954 = vadd.f32 %v2952, %v1211
    %v2955 = vld [vmem:[%s13] sm:$0x1]
    %v2956 = vld [vmem:[%s14] sm:$0x1]
    %2959 = vrot.lane.b32.xlu0 %v2953, 32
    %v2960 = vpop.permute.xlu0 %2959
    %2961 = vrot.lane.b32.xlu0 %v2954, 32
    %v2962 = vpop.permute.xlu0 %2961
    %v2965 = vsel %vm96, %v2960, 0.0
    %2966 = vadd.xlane.f32.xlu0 %v2965
    %v2967 = vpop.xlane.xlu0 %2966
    %v2968 = vsel %vm96, %v2962, 0.0
    %2969 = vadd.xlane.f32.xlu0 %v2968
    %v2970 = vpop.xlane.xlu0 %2969
    %v2971 = vmul.f32 %v2967, %v103
    %v2972 = vmul.f32 %v2970, %v103
    %v2973 = vsub.f32 %v2953, %v2971
    %v2974 = vsub.f32 %v2954, %v2972
    %v2975 = vmul.f32 %v2973, %v2973
    %v2976 = vmul.f32 %v2974, %v2974
    %2979 = vrot.lane.b32.xlu0 %v2975, 32
    %v2980 = vpop.permute.xlu0 %2979
    %2981 = vrot.lane.b32.xlu0 %v2976, 32
    %v2982 = vpop.permute.xlu0 %2981
    %v2985 = vsel %vm96, %v2980, 0.0
    %2986 = vadd.xlane.f32.xlu0 %v2985
    %v2987 = vpop.xlane.xlu0 %2986
    %v2988 = vsel %vm96, %v2982, 0.0
    %2989 = vadd.xlane.f32.xlu0 %v2988
    %v2990 = vpop.xlane.xlu0 %2989
    %v2991 = vmul.f32 %v2987, %v103
    %v2992 = vmul.f32 %v2990, %v103
    %v2993 = vadd.f32 %v2991, 1e-05
    %v2994 = vadd.f32 %v2992, 1e-05
    %v2995 = vrsqrt.pop %v2993
    %v2996 = vrsqrt.pop %v2994
    %v2997 = vmul.f32 %v2973, %v2995
    %v2998 = vmul.f32 %v2974, %v2996
    %v3000 = vlaneseq
    %v3001 = vshrl.u32 %v3000, 7
    %v3002 = vsub.s32 0, %v3001
    %v3003 = vrot.slane %v2955, %v3002
    %3004 = vrot.lane.b32.xlu0 %v3003, 96
    %v3005 = vpop.permute.xlu0 %3004
    %v3007 = vmul.f32 %v2997, %v3005
    %v3008 = vmul.f32 %v2998, %v3005
    %v3010 = vlaneseq
    %v3011 = vshrl.u32 %v3010, 7
    %v3012 = vsub.s32 0, %v3011
    %v3013 = vrot.slane %v2956, %v3012
    %3014 = vrot.lane.b32.xlu0 %v3013, 96
    %v3015 = vpop.permute.xlu0 %3014
    %v3017 = vadd.f32 %v3007, %v3015
    %v3018 = vadd.f32 %v3008, %v3015
    %3021 = vrot.lane.b32.xlu0 %v3017, 32
    %v3022 = vpop.permute.xlu0 %3021
    %3023 = vrot.lane.b32.xlu0 %v3018, 32
    %v3024 = vpop.permute.xlu0 %3023
    %3027 = vst.msk [vmem:[#allocation2] sm:$0xff] %vm96, %v3022
    %3028 = vst.msk [vmem:[#allocation2 + $0x8] sm:$0xff] %vm96, %v3024
    // Predicated region
    $region62: #{tpu_custom_call.1} parent=1 // pred_check
      _
    $region63: #{tpu_custom_call.1} parent=1 // pred_check_branch
      %3030 = sbr.rel (0) target = $region65
    $region64: #{tpu_custom_call.1} parent=1 // pred_region
      %s3032 = ssub.s32 256, 256
      %3033 = vsyncadd [#allocation3], %s3032
      %s3034 = sshll.u32 [#allocation2], 4
      %s3035 = int_to_ptr.vmem [resolvable:$true] %s3034
      %3040 = dma.vmem_to_hbm [thread:$0]  %s3035, 256, %s15, [#allocation3], 128, 128, 8
    $region65: #{tpu_custom_call.1} parent=1 // pred_fallthru
      _
    // Predicated region
    $region66: #{tpu_custom_call.1} parent=1 // pred_check
      _
    $region67: #{tpu_custom_call.1} parent=1 // pred_check_branch
      %3042 = sbr.rel (0) target = $region69
    $region68: #{tpu_custom_call.1} parent=1 // pred_region
      %s3044 = ssub.s32 512, 512
      %3045 = vsyncadd [#allocation5], %s3044
      %s3046 = sshll.u32 [#allocation4], 4
      %s3047 = int_to_ptr.vmem [resolvable:$true] %s3046
      %3052 = dma.vmem_to_hbm [thread:$0]  %s3047, 512, %s16, [#allocation5], 128, 128, 8
    $region69: #{tpu_custom_call.1} parent=1 // pred_fallthru
      _
    // Predicated region
    $region70: #{tpu_custom_call.1} parent=1 // pred_check
      _
    $region71: #{tpu_custom_call.1} parent=1 // pred_check_branch
      %3054 = sbr.rel (0) target = $region73
    $region72: #{tpu_custom_call.1} parent=1 // pred_region
      %s3056 = ssub.s32 512, 512
      %3057 = vsyncadd [#allocation5], %s3056
      %s3058 = sshll.u32 [#allocation6], 4
      %s3059 = int_to_ptr.vmem [resolvable:$true] %s3058
      %3064 = dma.vmem_to_hbm [thread:$0]  %s3059, 512, %s17, [#allocation5], 128, 128, 8
    $region73: #{tpu_custom_call.1} parent=1 // pred_fallthru
      _
    // Predicated region
    $region74: #{tpu_custom_call.1} parent=1 // pred_check
      _
    $region75: #{tpu_custom_call.1} parent=1 // pred_check_branch
      %3066 = sbr.rel (0) target = $region77
    $region76: #{tpu_custom_call.1} parent=1 // pred_region
      %3067 = dma.done [#allocation3], 256
    $region77: #{tpu_custom_call.1} parent=1 // pred_fallthru
      _
    // Predicated region
    $region78: #{tpu_custom_call.1} parent=1 // pred_check
      _
    $region79: #{tpu_custom_call.1} parent=1 // pred_check_branch
      %3069 = sbr.rel (0) target = $region81
    $region80: #{tpu_custom_call.1} parent=1 // pred_region
      %3070 = dma.done [#allocation5], 512
    $region81: #{tpu_custom_call.1} parent=1 // pred_fallthru
      _
    // Predicated region
    $region82: #{tpu_custom_call.1} parent=1 // pred_check
      _
    $region83: #{tpu_custom_call.1} parent=1 // pred_check_branch
      %3072 = sbr.rel (0) target = $region85
    $region84: #{tpu_custom_call.1} parent=1 // pred_region
      %3073 = dma.done [#allocation5], 512
    $region85: #{tpu_custom_call.1} parent=1 // pred_fallthru
      _
    %3074 = vsyncpa [#allocation3], 1
    %3075 = vsyncpa [#allocation5], 1

</llo_original>
